<compile_context>
chip_gen: v5e
topology: v5e:2x2
jax: 0.10.0
libtpu: 0.0.40
codegen_flags: <defaults>
</compile_context>

<pallas_src>
import jax
import jax.numpy as jnp
from jax.experimental import pallas as pl
from jax.experimental.pallas import tpu as pltpu

EPS = 1e-5      # nn.BatchNorm2d default eps
LANE = 128      # pad channels to a multiple of the TPU lane width

_COMPILER_PARAMS = pltpu.CompilerParams(
    dimension_semantics=("parallel",),     # image axis -> shard across TCs
    vmem_limit_bytes=32 * 1024 * 1024,     # explicit; safe on v5e/v6e/v7x
)


def _round_up(x, m):
    return (x + m - 1) // m * m


# ----------------------------- in-kernel conv --------------------------------

def _conv3x3_taps(load_tap, w_ref, hw, c_out):
    """3x3 conv as an accumulation of 9 shifted-tap MXU matmuls.

    load_tap(kh, kw) returns the (hw, c_in) slab of the zero-padded input
    shifted by (kh, kw); w_ref is a (9, c_in, c_out) VMEM ref.
    """
    acc = jnp.zeros((hw, c_out), jnp.float32)
    for k in range(9):
        kh, kw = divmod(k, 3)
        acc = acc + jnp.dot(load_tap(kh, kw), w_ref[k],
                            preferred_element_type=jnp.float32)
    return acc


# --------------------------------- kernels -----------------------------------

def _conv1_stats_kernel(xp_ref, w_ref, conv_ref, sum_ref, sq_ref):
    """conv1 over a spatially pre-padded NHWC tile + per-tile sum / sum-sq."""
    _, hp, wp, cin = xp_ref.shape
    h, w = hp - 2, wp - 2
    cout = conv_ref.shape[-1]

    def load_tap(kh, kw):
        return xp_ref[0, pl.ds(kh, h), pl.ds(kw, w), :].reshape(h * w, cin)

    acc = _conv3x3_taps(load_tap, w_ref, h * w, cout)
    conv_ref[...] = acc.reshape(1, h, w, cout)
    sum_ref[...] = jnp.sum(acc, axis=0, keepdims=True)[None]
    sq_ref[...] = jnp.sum(acc * acc, axis=0, keepdims=True)[None]


def _bnrelu_conv2_stats_kernel(c1_ref, sc_ref, sh_ref, w_ref,
                               conv_ref, sum_ref, sq_ref, pad_ref):
    """Folded BN(conv1-module)+BN(block)+ReLU, then conv2 + per-tile stats.

    The ReLU'd activation is zero-padded into a VMEM scratch so the second
    conv never round-trips an im2col / halo buffer through HBM.
    """
    _, h, w, c = c1_ref.shape
    cout = conv_ref.shape[-1]

    r = jnp.maximum(c1_ref[0].reshape(h * w, c) * sc_ref[...] + sh_ref[...], 0.0)
    pad_ref[...] = jnp.zeros_like(pad_ref)
    pad_ref[pl.ds(1, h), pl.ds(1, w), :] = r.reshape(h, w, c)

    def load_tap(kh, kw):
        return pad_ref[pl.ds(kh, h), pl.ds(kw, w), :].reshape(h * w, c)

    acc = _conv3x3_taps(load_tap, w_ref, h * w, cout)
    conv_ref[...] = acc.reshape(1, h, w, cout)
    sum_ref[...] = jnp.sum(acc, axis=0, keepdims=True)[None]
    sq_ref[...] = jnp.sum(acc * acc, axis=0, keepdims=True)[None]


def _bn_add_relu_kernel(c2_ref, sc_ref, sh_ref, xp_ref, o_ref):
    """Folded BN(conv2-module)+BN(block) + residual add + ReLU."""
    _, h, w, c = c2_ref.shape
    c2 = c2_ref[0].reshape(h * w, c)
    idn = xp_ref[0, pl.ds(1, h), pl.ds(1, w), :].reshape(h * w, c)
    y = jnp.maximum(c2 * sc_ref[...] + sh_ref[...] + idn, 0.0)
    o_ref[...] = y.reshape(1, h, w, c)


# ------------------------------ pallas_call wrappers --------------------------

def _call_conv1(xp, w_mat, h, w, cp):
    n = xp.shape[0]
    return pl.pallas_call(
        _conv1_stats_kernel,
        out_shape=(jax.ShapeDtypeStruct((n, h, w, cp), jnp.float32),
                   jax.ShapeDtypeStruct((n, 1, cp), jnp.float32),
                   jax.ShapeDtypeStruct((n, 1, cp), jnp.float32)),
        grid=(n,),
        in_specs=[pl.BlockSpec((1, h + 2, w + 2, cp), lambda i: (i, 0, 0, 0)),
                  pl.BlockSpec((9, cp, cp), lambda i: (0, 0, 0))],
        out_specs=(pl.BlockSpec((1, h, w, cp), lambda i: (i, 0, 0, 0)),
                   pl.BlockSpec((1, 1, cp), lambda i: (i, 0, 0)),
                   pl.BlockSpec((1, 1, cp), lambda i: (i, 0, 0))),
        compiler_params=_COMPILER_PARAMS,
    )(xp, w_mat)


def _call_bnrelu_conv2(conv1, sc1, sh1, w_mat, h, w, cp):
    n = conv1.shape[0]
    return pl.pallas_call(
        _bnrelu_conv2_stats_kernel,
        out_shape=(jax.ShapeDtypeStruct((n, h, w, cp), jnp.float32),
                   jax.ShapeDtypeStruct((n, 1, cp), jnp.float32),
                   jax.ShapeDtypeStruct((n, 1, cp), jnp.float32)),
        grid=(n,),
        in_specs=[pl.BlockSpec((1, h, w, cp), lambda i: (i, 0, 0, 0)),
                  pl.BlockSpec((1, cp), lambda i: (0, 0)),
                  pl.BlockSpec((1, cp), lambda i: (0, 0)),
                  pl.BlockSpec((9, cp, cp), lambda i: (0, 0, 0))],
        out_specs=(pl.BlockSpec((1, h, w, cp), lambda i: (i, 0, 0, 0)),
                   pl.BlockSpec((1, 1, cp), lambda i: (i, 0, 0)),
                   pl.BlockSpec((1, 1, cp), lambda i: (i, 0, 0))),
        scratch_shapes=[pltpu.VMEM((h + 2, w + 2, cp), jnp.float32)],
        compiler_params=_COMPILER_PARAMS,
    )(conv1, sc1, sh1, w_mat)


def _call_bn_add_relu(conv2, sc2, sh2, xp, h, w, cp):
    n = conv2.shape[0]
    return pl.pallas_call(
        _bn_add_relu_kernel,
        out_shape=jax.ShapeDtypeStruct((n, h, w, cp), jnp.float32),
        grid=(n,),
        in_specs=[pl.BlockSpec((1, h, w, cp), lambda i: (i, 0, 0, 0)),
                  pl.BlockSpec((1, cp), lambda i: (0, 0)),
                  pl.BlockSpec((1, cp), lambda i: (0, 0)),
                  pl.BlockSpec((1, h + 2, w + 2, cp), lambda i: (i, 0, 0, 0))],
        out_specs=pl.BlockSpec((1, h, w, cp), lambda i: (i, 0, 0, 0)),
        compiler_params=_COMPILER_PARAMS,
    )(conv2, sc2, sh2, xp)


# --------------------------------- JAX glue -----------------------------------

def _prep_weight(w_oihw, cp):
    """(Cout, Cin, 3, 3) -> (9, cp, cp), tap index kh*3+kw, zero-padded."""
    co, ci = w_oihw.shape[0], w_oihw.shape[1]
    w = jnp.transpose(w_oihw, (2, 3, 1, 0)).reshape(9, ci, co)
    return jnp.pad(w, ((0, 0), (0, cp - ci), (0, cp - co))).astype(jnp.float32)


def _pad_param(v, cp, fill):
    v = v.reshape(-1).astype(jnp.float32)
    return jnp.pad(v, (0, cp - v.shape[0]), constant_values=fill)


def _fold_double_bn(csum, csumsq, m, g_a, b_a, g_b, b_b):
    """Fold BN_a followed by BN_b (both batch-stat BNs of the same conv output)
    into one per-channel affine, using the exact identities
      mean(BN_a(x)) = b_a     var(BN_a(x)) = v * g_a^2 / (v + eps)."""
    mean = jnp.sum(csum, axis=(0, 1)) / m
    ex2 = jnp.sum(csumsq, axis=(0, 1)) / m
    var = jnp.maximum(ex2 - mean * mean, 0.0)
    s1 = jax.lax.rsqrt(var + EPS)
    v2 = var * jnp.square(g_a * s1)
    s2 = jax.lax.rsqrt(v2 + EPS)
    scale = s1 * g_a * s2 * g_b
    shift = b_b - mean * scale
    return scale.reshape(1, -1), shift.reshape(1, -1)


def basic_block_forward(x_nchw, params):
    """Pallas BasicBlock.forward (stride=1, downsample=None, training-mode BN)."""
    # TODO(synk): NCHW kept at the boundary for parity with the PyTorch module;
    #   an NHWC-native caller would drop these two XLA transposes.
    x_nhwc = jnp.transpose(x_nchw, (0, 2, 3, 1)).astype(jnp.float32)
    n, h, w, cin = x_nhwc.shape
    planes = params["w1"].shape[0]
    cp = _round_up(max(cin, planes), LANE)
    m = n * h * w

    # single XLA pad = spatial halo (pad=1) + channel pad to a lane multiple
    xp = jnp.pad(x_nhwc, ((0, 0), (1, 1), (1, 1), (0, cp - cin)))

    w1 = _prep_weight(params["w1"], cp)
    w2 = _prep_weight(params["w2"], cp)
    g1c = _pad_param(params["g1c"], cp, 1.0)
    b1c = _pad_param(params["b1c"], cp, 0.0)
    g1b = _pad_param(params["g1b"], cp, 1.0)
    b1b = _pad_param(params["b1b"], cp, 0.0)
    g2c = _pad_param(params["g2c"], cp, 1.0)
    b2c = _pad_param(params["b2c"], cp, 0.0)
    g2b = _pad_param(params["g2b"], cp, 1.0)
    b2b = _pad_param(params["b2b"], cp, 0.0)

    # stage 1: conv1 + per-image partial stats; fold bn1(conv-module)+bn1(block)
    conv1, sum1, sq1 = _call_conv1(xp, w1, h, w, cp)
    sc1, sh1 = _fold_double_bn(sum1, sq1, m, g1c, b1c, g1b, b1b)

    # stage 2: fused affine+ReLU feeding conv2 (halo built in VMEM) + stats
    conv2, sum2, sq2 = _call_bnrelu_conv2(conv1, sc1, sh1, w2, h, w, cp)
    sc2, sh2 = _fold_double_bn(sum2, sq2, m, g2c, b2c, g2b, b2b)

    # stage 3: fold bn2(conv-module)+bn2(block), add identity, ReLU
    out = _call_bn_add_relu(conv2, sc2, sh2, xp, h, w, cp)

    out = out[..., :planes]
    return jnp.transpose(out, (0, 3, 1, 2))      # back to NCHW


# -------------------------------- reference -----------------------------------

def reference_forward(x_nchw, params):
    def conv(x, w):
        return jax.lax.conv_general_dilated(
            x, w, window_strides=(1, 1), padding=((1, 1), (1, 1)),
            dimension_numbers=("NCHW", "OIHW", "NCHW"))

    def bn(x, g, b):
        mu = x.mean(axis=(0, 2, 3), keepdims=True)
        var = ((x - mu) ** 2).mean(axis=(0, 2, 3), keepdims=True)
        return (x - mu) / jnp.sqrt(var + EPS) * g.reshape(1, -1, 1, 1) \
            + b.reshape(1, -1, 1, 1)

    out = conv(x_nchw, params["w1"])
    out = bn(out, params["g1c"], params["b1c"])
    out = bn(out, params["g1b"], params["b1b"])
    out = jnp.maximum(out, 0.0)
    out = conv(out, params["w2"])
    out = bn(out, params["g2c"], params["b2c"])
    out = bn(out, params["g2b"], params["b2b"])
    out = out + x_nchw
    return jnp.maximum(out, 0.0)


# ----------------------------------- main --------------------------------------

if __name__ == "__main__":
    key = jax.random.PRNGKey(0)
    N, inplanes, planes, H, W = 2, 4, 4, 16, 16   # stride=1, downsample=None

    ks = jax.random.split(key, 11)
    bound1 = (1.0 / (inplanes * 9)) ** 0.5
    bound2 = (1.0 / (planes * 9)) ** 0.5
    params = {
        "w1": jax.random.uniform(ks[0], (planes, inplanes, 3, 3),
                                 jnp.float32, -bound1, bound1),
        "w2": jax.random.uniform(ks[1], (planes, planes, 3, 3),
                                 jnp.float32, -bound2, bound2),
        # BN of MaskedConv2d (conv1) and BasicBlock.bn1
        "g1c": 1.0 + 0.1 * jax.random.normal(ks[2], (planes,), jnp.float32),
        "b1c": 0.1 * jax.random.normal(ks[3], (planes,), jnp.float32),
        "g1b": 1.0 + 0.1 * jax.random.normal(ks[4], (planes,), jnp.float32),
        "b1b": 0.1 * jax.random.normal(ks[5], (planes,), jnp.float32),
        # BN of MaskedConv2d (conv2) and BasicBlock.bn2
        "g2c": 1.0 + 0.1 * jax.random.normal(ks[6], (planes,), jnp.float32),
        "b2c": 0.1 * jax.random.normal(ks[7], (planes,), jnp.float32),
        "g2b": 1.0 + 0.1 * jax.random.normal(ks[8], (planes,), jnp.float32),
        "b2b": 0.1 * jax.random.normal(ks[9], (planes,), jnp.float32),
    }
    x = jax.random.normal(ks[10], (N, inplanes, H, W), jnp.float32)

    fwd = jax.jit(basic_block_forward)
    ref_fn = jax.jit(reference_forward)

    out = jax.block_until_ready(fwd(x, params))
    ref = jax.block_until_ready(ref_fn(x, params))

    assert out.shape == (N, planes, H, W), out.shape
    err = float(jnp.max(jnp.abs(out - ref)))
    assert err < 2e-4, f"max abs err {err}"
    print("KERNEL_OK")
</pallas_src>

<mosaic_0001>
module attributes {stable_mosaic.version = 11 : i64} {
  func.func @_bn_add_relu_kernel(%arg0: i32, %arg1: memref<1x16x16x128xf32, #tpu.memory_space<vmem>>, %arg2: memref<1x128xf32, #tpu.memory_space<vmem>>, %arg3: memref<1x128xf32, #tpu.memory_space<vmem>>, %arg4: memref<1x18x18x128xf32, #tpu.memory_space<vmem>>, %arg5: memref<1x16x16x128xf32, #tpu.memory_space<vmem>>) attributes {dimension_semantics = [#tpu.dimension_semantics<parallel>], iteration_bounds = array<i64: 2>, scalar_prefetch = 0 : i64, scratch_operands = 0 : i64, tpu.core_type = #tpu.core_type<tc>, window_params = [{transform_indices = @transform_0, window_bounds = array<i64: 1, 16, 16, 128>}, {pipeline_mode = #tpu.pipeline_mode<synchronous>, transform_indices = @transform_1, window_bounds = array<i64: 1, 128>}, {pipeline_mode = #tpu.pipeline_mode<synchronous>, transform_indices = @transform_2, window_bounds = array<i64: 1, 128>}, {transform_indices = @transform_3, window_bounds = array<i64: 1, 18, 18, 128>}, {transform_indices = @transform_4, window_bounds = array<i64: 1, 16, 16, 128>}]} {
    %c0 = arith.constant 0 : index
    %c0_0 = arith.constant 0 : index
    %c0_1 = arith.constant 0 : index
    %c0_2 = arith.constant 0 : index
    %0 = vector.load %arg1[%c0, %c0_0, %c0_1, %c0_2] : memref<1x16x16x128xf32, #tpu.memory_space<vmem>>, vector<1x16x16x128xf32>
    %1 = vector.shape_cast %0 : vector<1x16x16x128xf32> to vector<16x16x128xf32>
    %2 = vector.shape_cast %1 : vector<16x16x128xf32> to vector<256x128xf32>
    %c0_3 = arith.constant 0 : index
    %c1 = arith.constant 1 : index
    %c1_4 = arith.constant 1 : index
    %c0_5 = arith.constant 0 : index
    %3 = vector.load %arg4[%c0_3, %c1, %c1_4, %c0_5] : memref<1x18x18x128xf32, #tpu.memory_space<vmem>>, vector<1x16x16x128xf32>
    %4 = vector.shape_cast %3 : vector<1x16x16x128xf32> to vector<16x16x128xf32>
    %5 = vector.shape_cast %4 : vector<16x16x128xf32> to vector<256x128xf32>
    %c0_6 = arith.constant 0 : index
    %c0_7 = arith.constant 0 : index
    %6 = vector.load %arg2[%c0_6, %c0_7] : memref<1x128xf32, #tpu.memory_space<vmem>>, vector<1x128xf32>
    %7 = vector.broadcast %6 : vector<1x128xf32> to vector<256x128xf32>
    %8 = arith.mulf %2, %7 : vector<256x128xf32>
    %c0_8 = arith.constant 0 : index
    %c0_9 = arith.constant 0 : index
    %9 = vector.load %arg3[%c0_8, %c0_9] : memref<1x128xf32, #tpu.memory_space<vmem>>, vector<1x128xf32>
    %10 = vector.broadcast %9 : vector<1x128xf32> to vector<256x128xf32>
    %11 = arith.addf %8, %10 : vector<256x128xf32>
    %12 = arith.addf %11, %5 : vector<256x128xf32>
    %cst = arith.constant 0.000000e+00 : f32
    %13 = vector.broadcast %cst : f32 to vector<256x128xf32>
    %14 = arith.maximumf %12, %13 : vector<256x128xf32>
    %15 = vector.shape_cast %14 : vector<256x128xf32> to vector<1x16x16x128xf32>
    %c0_10 = arith.constant 0 : index
    %c0_11 = arith.constant 0 : index
    %c0_12 = arith.constant 0 : index
    %c0_13 = arith.constant 0 : index
    %16 = vector.load %arg5[%c0_10, %c0_11, %c0_12, %c0_13] : memref<1x16x16x128xf32, #tpu.memory_space<vmem>>, vector<1x16x16x128xf32>
    tpu.vector_store %arg5[%c0_10, %c0_11, %c0_12, %c0_13], %15 {strides = array<i32>} : memref<1x16x16x128xf32, #tpu.memory_space<vmem>>, vector<1x16x16x128xf32>,
    return
  }
  func.func @transform_0(%arg0: i32) -> (i32, i32, i32, i32) {
    %c0_i32 = arith.constant 0 : i32
    %c0_i32_0 = arith.constant 0 : i32
    %c0_i32_1 = arith.constant 0 : i32
    %c0_i32_2 = arith.constant 0 : i32
    return %arg0, %c0_i32, %c0_i32_0, %c0_i32_1 : i32, i32, i32, i32
  }
  func.func @transform_1(%arg0: i32) -> (i32, i32) {
    %c0_i32 = arith.constant 0 : i32
    %c0_i32_0 = arith.constant 0 : i32
    %c0_i32_1 = arith.constant 0 : i32
    return %c0_i32, %c0_i32_0 : i32, i32
  }
  func.func @transform_2(%arg0: i32) -> (i32, i32) {
    %c0_i32 = arith.constant 0 : i32
    %c0_i32_0 = arith.constant 0 : i32
    %c0_i32_1 = arith.constant 0 : i32
    return %c0_i32, %c0_i32_0 : i32, i32
  }
  func.func @transform_3(%arg0: i32) -> (i32, i32, i32, i32) {
    %c0_i32 = arith.constant 0 : i32
    %c0_i32_0 = arith.constant 0 : i32
    %c0_i32_1 = arith.constant 0 : i32
    %c0_i32_2 = arith.constant 0 : i32
    return %arg0, %c0_i32, %c0_i32_0, %c0_i32_1 : i32, i32, i32, i32
  }
  func.func @transform_4(%arg0: i32) -> (i32, i32, i32, i32) {
    %c0_i32 = arith.constant 0 : i32
    %c0_i32_0 = arith.constant 0 : i32
    %c0_i32_1 = arith.constant 0 : i32
    %c0_i32_2 = arith.constant 0 : i32
    return %arg0, %c0_i32, %c0_i32_0, %c0_i32_1 : i32, i32, i32, i32
  }
}

module attributes {stable_mosaic.version = 11 : i64} {
  func.func @_bnrelu_conv2_stats_kernel(%arg0: i32, %arg1: memref<1x16x16x128xf32, #tpu.memory_space<vmem>>, %arg2: memref<1x128xf32, #tpu.memory_space<vmem>>, %arg3: memref<1x128xf32, #tpu.memory_space<vmem>>, %arg4: memref<9x128x128xf32, #tpu.memory_space<vmem>>, %arg5: memref<1x16x16x128xf32, #tpu.memory_space<vmem>>, %arg6: memref<1x1x128xf32, #tpu.memory_space<vmem>>, %arg7: memref<1x1x128xf32, #tpu.memory_space<vmem>>, %arg8: memref<18x18x128xf32, #tpu.memory_space<vmem>>) attributes {dimension_semantics = [#tpu.dimension_semantics<parallel>], iteration_bounds = array<i64: 2>, scalar_prefetch = 0 : i64, scratch_operands = 1 : i64, tpu.core_type = #tpu.core_type<tc>, window_params = [{transform_indices = @transform_0, window_bounds = array<i64: 1, 16, 16, 128>}, {pipeline_mode = #tpu.pipeline_mode<synchronous>, transform_indices = @transform_1, window_bounds = array<i64: 1, 128>}, {pipeline_mode = #tpu.pipeline_mode<synchronous>, transform_indices = @transform_2, window_bounds = array<i64: 1, 128>}, {pipeline_mode = #tpu.pipeline_mode<synchronous>, transform_indices = @transform_3, window_bounds = array<i64: 9, 128, 128>}, {transform_indices = @transform_4, window_bounds = array<i64: 1, 16, 16, 128>}, {transform_indices = @transform_5, window_bounds = array<i64: 1, 1, 128>}, {transform_indices = @transform_6, window_bounds = array<i64: 1, 1, 128>}]} {
    %c0 = arith.constant 0 : index
    %c0_0 = arith.constant 0 : index
    %c0_1 = arith.constant 0 : index
    %c0_2 = arith.constant 0 : index
    %0 = vector.load %arg1[%c0, %c0_0, %c0_1, %c0_2] : memref<1x16x16x128xf32, #tpu.memory_space<vmem>>, vector<1x16x16x128xf32>
    %1 = vector.shape_cast %0 : vector<1x16x16x128xf32> to vector<16x16x128xf32>
    %2 = vector.shape_cast %1 : vector<16x16x128xf32> to vector<256x128xf32>
    %c0_3 = arith.constant 0 : index
    %c0_4 = arith.constant 0 : index
    %3 = vector.load %arg2[%c0_3, %c0_4] : memref<1x128xf32, #tpu.memory_space<vmem>>, vector<1x128xf32>
    %4 = vector.broadcast %3 : vector<1x128xf32> to vector<256x128xf32>
    %5 = arith.mulf %2, %4 : vector<256x128xf32>
    %c0_5 = arith.constant 0 : index
    %c0_6 = arith.constant 0 : index
    %6 = vector.load %arg3[%c0_5, %c0_6] : memref<1x128xf32, #tpu.memory_space<vmem>>, vector<1x128xf32>
    %7 = vector.broadcast %6 : vector<1x128xf32> to vector<256x128xf32>
    %8 = arith.addf %5, %7 : vector<256x128xf32>
    %cst = arith.constant 0.000000e+00 : f32
    %9 = vector.broadcast %cst : f32 to vector<256x128xf32>
    %10 = arith.maximumf %8, %9 : vector<256x128xf32>
    %cst_7 = arith.constant 0.000000e+00 : f32
    %11 = vector.broadcast %cst_7 : f32 to vector<18x18x128xf32>
    %c0_8 = arith.constant 0 : index
    %c0_9 = arith.constant 0 : index
    %c0_10 = arith.constant 0 : index
    %12 = vector.load %arg8[%c0_8, %c0_9, %c0_10] : memref<18x18x128xf32, #tpu.memory_space<vmem>>, vector<18x18x128xf32>
    tpu.vector_store %arg8[%c0_8, %c0_9, %c0_10], %11 {strides = array<i32>} : memref<18x18x128xf32, #tpu.memory_space<vmem>>, vector<18x18x128xf32>,
    %13 = vector.shape_cast %10 : vector<256x128xf32> to vector<16x16x128xf32>
    %c1 = arith.constant 1 : index
    %c1_11 = arith.constant 1 : index
    %c0_12 = arith.constant 0 : index
    %14 = vector.load %arg8[%c1, %c1_11, %c0_12] : memref<18x18x128xf32, #tpu.memory_space<vmem>>, vector<16x16x128xf32>
    tpu.vector_store %arg8[%c1, %c1_11, %c0_12], %13 {strides = array<i32>} : memref<18x18x128xf32, #tpu.memory_space<vmem>>, vector<16x16x128xf32>,
    %cst_13 = arith.constant 0.000000e+00 : f32
    %15 = vector.broadcast %cst_13 : f32 to vector<256x128xf32>
    %c0_14 = arith.constant 0 : index
    %c0_15 = arith.constant 0 : index
    %c0_16 = arith.constant 0 : index
    %16 = vector.load %arg8[%c0_14, %c0_15, %c0_16] : memref<18x18x128xf32, #tpu.memory_space<vmem>>, vector<16x16x128xf32>
    %17 = vector.shape_cast %16 : vector<16x16x128xf32> to vector<256x128xf32>
    %c0_17 = arith.constant 0 : index
    %c0_18 = arith.constant 0 : index
    %c0_19 = arith.constant 0 : index
    %18 = vector.load %arg4[%c0_17, %c0_18, %c0_19] : memref<9x128x128xf32, #tpu.memory_space<vmem>>, vector<1x128x128xf32>
    %19 = vector.shape_cast %18 : vector<1x128x128xf32> to vector<128x128xf32>
    %cst_20 = arith.constant dense<0.000000e+00> : vector<256x128xf32>
    %20 = tpu.matmul %17, %19, %cst_20 {dimension_numbers = #tpu.dot_dimension_numbers<[1], [0], [0], [1], [0, 0, 1, 1], [], []>} : vector<256x128xf32>, vector<128x128xf32>, vector<256x128xf32> -> vector<256x128xf32>
    %21 = arith.addf %15, %20 : vector<256x128xf32>
    %c0_21 = arith.constant 0 : index
    %c1_22 = arith.constant 1 : index
    %c0_23 = arith.constant 0 : index
    %22 = vector.load %arg8[%c0_21, %c1_22, %c0_23] : memref<18x18x128xf32, #tpu.memory_space<vmem>>, vector<16x16x128xf32>
    %23 = vector.shape_cast %22 : vector<16x16x128xf32> to vector<256x128xf32>
    %c1_24 = arith.constant 1 : index
    %c0_25 = arith.constant 0 : index
    %c0_26 = arith.constant 0 : index
    %24 = vector.load %arg4[%c1_24, %c0_25, %c0_26] : memref<9x128x128xf32, #tpu.memory_space<vmem>>, vector<1x128x128xf32>
    %25 = vector.shape_cast %24 : vector<1x128x128xf32> to vector<128x128xf32>
    %cst_27 = arith.constant dense<0.000000e+00> : vector<256x128xf32>
    %26 = tpu.matmul %23, %25, %cst_27 {dimension_numbers = #tpu.dot_dimension_numbers<[1], [0], [0], [1], [0, 0, 1, 1], [], []>} : vector<256x128xf32>, vector<128x128xf32>, vector<256x128xf32> -> vector<256x128xf32>
    %27 = arith.addf %21, %26 : vector<256x128xf32>
    %c0_28 = arith.constant 0 : index
    %c2 = arith.constant 2 : index
    %c0_29 = arith.constant 0 : index
    %28 = vector.load %arg8[%c0_28, %c2, %c0_29] : memref<18x18x128xf32, #tpu.memory_space<vmem>>, vector<16x16x128xf32>
    %29 = vector.shape_cast %28 : vector<16x16x128xf32> to vector<256x128xf32>
    %c2_30 = arith.constant 2 : index
    %c0_31 = arith.constant 0 : index
    %c0_32 = arith.constant 0 : index
    %30 = vector.load %arg4[%c2_30, %c0_31, %c0_32] : memref<9x128x128xf32, #tpu.memory_space<vmem>>, vector<1x128x128xf32>
    %31 = vector.shape_cast %30 : vector<1x128x128xf32> to vector<128x128xf32>
    %cst_33 = arith.constant dense<0.000000e+00> : vector<256x128xf32>
    %32 = tpu.matmul %29, %31, %cst_33 {dimension_numbers = #tpu.dot_dimension_numbers<[1], [0], [0], [1], [0, 0, 1, 1], [], []>} : vector<256x128xf32>, vector<128x128xf32>, vector<256x128xf32> -> vector<256x128xf32>
    %33 = arith.addf %27, %32 : vector<256x128xf32>
    %c1_34 = arith.constant 1 : index
    %c0_35 = arith.constant 0 : index
    %c0_36 = arith.constant 0 : index
    %34 = vector.load %arg8[%c1_34, %c0_35, %c0_36] : memref<18x18x128xf32, #tpu.memory_space<vmem>>, vector<16x16x128xf32>
    %35 = vector.shape_cast %34 : vector<16x16x128xf32> to vector<256x128xf32>
    %c3 = arith.constant 3 : index
    %c0_37 = arith.constant 0 : index
    %c0_38 = arith.constant 0 : index
    %36 = vector.load %arg4[%c3, %c0_37, %c0_38] : memref<9x128x128xf32, #tpu.memory_space<vmem>>, vector<1x128x128xf32>
    %37 = vector.shape_cast %36 : vector<1x128x128xf32> to vector<128x128xf32>
    %cst_39 = arith.constant dense<0.000000e+00> : vector<256x128xf32>
    %38 = tpu.matmul %35, %37, %cst_39 {dimension_numbers = #tpu.dot_dimension_numbers<[1], [0], [0], [1], [0, 0, 1, 1], [], []>} : vector<256x128xf32>, vector<128x128xf32>, vector<256x128xf32> -> vector<256x128xf32>
    %39 = arith.addf %33, %38 : vector<256x128xf32>
    %c1_40 = arith.constant 1 : index
    %c1_41 = arith.constant 1 : index
    %c0_42 = arith.constant 0 : index
    %40 = vector.load %arg8[%c1_40, %c1_41, %c0_42] : memref<18x18x128xf32, #tpu.memory_space<vmem>>, vector<16x16x128xf32>
    %41 = vector.shape_cast %40 : vector<16x16x128xf32> to vector<256x128xf32>
    %c4 = arith.constant 4 : index
    %c0_43 = arith.constant 0 : index
    %c0_44 = arith.constant 0 : index
    %42 = vector.load %arg4[%c4, %c0_43, %c0_44] : memref<9x128x128xf32, #tpu.memory_space<vmem>>, vector<1x128x128xf32>
    %43 = vector.shape_cast %42 : vector<1x128x128xf32> to vector<128x128xf32>
    %cst_45 = arith.constant dense<0.000000e+00> : vector<256x128xf32>
    %44 = tpu.matmul %41, %43, %cst_45 {dimension_numbers = #tpu.dot_dimension_numbers<[1], [0], [0], [1], [0, 0, 1, 1], [], []>} : vector<256x128xf32>, vector<128x128xf32>, vector<256x128xf32> -> vector<256x128xf32>
    %45 = arith.addf %39, %44 : vector<256x128xf32>
    %c1_46 = arith.constant 1 : index
    %c2_47 = arith.constant 2 : index
    %c0_48 = arith.constant 0 : index
    %46 = vector.load %arg8[%c1_46, %c2_47, %c0_48] : memref<18x18x128xf32, #tpu.memory_space<vmem>>, vector<16x16x128xf32>
    %47 = vector.shape_cast %46 : vector<16x16x128xf32> to vector<256x128xf32>
    %c5 = arith.constant 5 : index
    %c0_49 = arith.constant 0 : index
    %c0_50 = arith.constant 0 : index
    %48 = vector.load %arg4[%c5, %c0_49, %c0_50] : memref<9x128x128xf32, #tpu.memory_space<vmem>>, vector<1x128x128xf32>
    %49 = vector.shape_cast %48 : vector<1x128x128xf32> to vector<128x128xf32>
    %cst_51 = arith.constant dense<0.000000e+00> : vector<256x128xf32>
    %50 = tpu.matmul %47, %49, %cst_51 {dimension_numbers = #tpu.dot_dimension_numbers<[1], [0], [0], [1], [0, 0, 1, 1], [], []>} : vector<256x128xf32>, vector<128x128xf32>, vector<256x128xf32> -> vector<256x128xf32>
    %51 = arith.addf %45, %50 : vector<256x128xf32>
    %c2_52 = arith.constant 2 : index
    %c0_53 = arith.constant 0 : index
    %c0_54 = arith.constant 0 : index
    %52 = vector.load %arg8[%c2_52, %c0_53, %c0_54] : memref<18x18x128xf32, #tpu.memory_space<vmem>>, vector<16x16x128xf32>
    %53 = vector.shape_cast %52 : vector<16x16x128xf32> to vector<256x128xf32>
    %c6 = arith.constant 6 : index
    %c0_55 = arith.constant 0 : index
    %c0_56 = arith.constant 0 : index
    %54 = vector.load %arg4[%c6, %c0_55, %c0_56] : memref<9x128x128xf32, #tpu.memory_space<vmem>>, vector<1x128x128xf32>
    %55 = vector.shape_cast %54 : vector<1x128x128xf32> to vector<128x128xf32>
    %cst_57 = arith.constant dense<0.000000e+00> : vector<256x128xf32>
    %56 = tpu.matmul %53, %55, %cst_57 {dimension_numbers = #tpu.dot_dimension_numbers<[1], [0], [0], [1], [0, 0, 1, 1], [], []>} : vector<256x128xf32>, vector<128x128xf32>, vector<256x128xf32> -> vector<256x128xf32>
    %57 = arith.addf %51, %56 : vector<256x128xf32>
    %c2_58 = arith.constant 2 : index
    %c1_59 = arith.constant 1 : index
    %c0_60 = arith.constant 0 : index
    %58 = vector.load %arg8[%c2_58, %c1_59, %c0_60] : memref<18x18x128xf32, #tpu.memory_space<vmem>>, vector<16x16x128xf32>
    %59 = vector.shape_cast %58 : vector<16x16x128xf32> to vector<256x128xf32>
    %c7 = arith.constant 7 : index
    %c0_61 = arith.constant 0 : index
    %c0_62 = arith.constant 0 : index
    %60 = vector.load %arg4[%c7, %c0_61, %c0_62] : memref<9x128x128xf32, #tpu.memory_space<vmem>>, vector<1x128x128xf32>
    %61 = vector.shape_cast %60 : vector<1x128x128xf32> to vector<128x128xf32>
    %cst_63 = arith.constant dense<0.000000e+00> : vector<256x128xf32>
    %62 = tpu.matmul %59, %61, %cst_63 {dimension_numbers = #tpu.dot_dimension_numbers<[1], [0], [0], [1], [0, 0, 1, 1], [], []>} : vector<256x128xf32>, vector<128x128xf32>, vector<256x128xf32> -> vector<256x128xf32>
    %63 = arith.addf %57, %62 : vector<256x128xf32>
    %c2_64 = arith.constant 2 : index
    %c2_65 = arith.constant 2 : index
    %c0_66 = arith.constant 0 : index
    %64 = vector.load %arg8[%c2_64, %c2_65, %c0_66] : memref<18x18x128xf32, #tpu.memory_space<vmem>>, vector<16x16x128xf32>
    %65 = vector.shape_cast %64 : vector<16x16x128xf32> to vector<256x128xf32>
    %c8 = arith.constant 8 : index
    %c0_67 = arith.constant 0 : index
    %c0_68 = arith.constant 0 : index
    %66 = vector.load %arg4[%c8, %c0_67, %c0_68] : memref<9x128x128xf32, #tpu.memory_space<vmem>>, vector<1x128x128xf32>
    %67 = vector.shape_cast %66 : vector<1x128x128xf32> to vector<128x128xf32>
    %cst_69 = arith.constant dense<0.000000e+00> : vector<256x128xf32>
    %68 = tpu.matmul %65, %67, %cst_69 {dimension_numbers = #tpu.dot_dimension_numbers<[1], [0], [0], [1], [0, 0, 1, 1], [], []>} : vector<256x128xf32>, vector<128x128xf32>, vector<256x128xf32> -> vector<256x128xf32>
    %69 = arith.addf %63, %68 : vector<256x128xf32>
    %70 = vector.shape_cast %69 : vector<256x128xf32> to vector<1x16x16x128xf32>
    %c0_70 = arith.constant 0 : index
    %c0_71 = arith.constant 0 : index
    %c0_72 = arith.constant 0 : index
    %c0_73 = arith.constant 0 : index
    %71 = vector.load %arg5[%c0_70, %c0_71, %c0_72, %c0_73] : memref<1x16x16x128xf32, #tpu.memory_space<vmem>>, vector<1x16x16x128xf32>
    tpu.vector_store %arg5[%c0_70, %c0_71, %c0_72, %c0_73], %70 {strides = array<i32>} : memref<1x16x16x128xf32, #tpu.memory_space<vmem>>, vector<1x16x16x128xf32>,
    %cst_74 = arith.constant dense<0.000000e+00> : vector<128xf32>
    %72 = vector.multi_reduction <add>, %69, %cst_74 [0] : vector<256x128xf32> to vector<128xf32>
    %73 = vector.shape_cast %72 : vector<128xf32> to vector<1x128xf32>
    %74 = vector.shape_cast %73 : vector<1x128xf32> to vector<1x1x128xf32>
    %c0_75 = arith.constant 0 : index
    %c0_76 = arith.constant 0 : index
    %c0_77 = arith.constant 0 : index
    %75 = vector.load %arg6[%c0_75, %c0_76, %c0_77] : memref<1x1x128xf32, #tpu.memory_space<vmem>>, vector<1x1x128xf32>
    tpu.vector_store %arg6[%c0_75, %c0_76, %c0_77], %74 {strides = array<i32>} : memref<1x1x128xf32, #tpu.memory_space<vmem>>, vector<1x1x128xf32>,
    %76 = arith.mulf %69, %69 : vector<256x128xf32>
    %cst_78 = arith.constant dense<0.000000e+00> : vector<128xf32>
    %77 = vector.multi_reduction <add>, %76, %cst_78 [0] : vector<256x128xf32> to vector<128xf32>
    %78 = vector.shape_cast %77 : vector<128xf32> to vector<1x128xf32>
    %79 = vector.shape_cast %78 : vector<1x128xf32> to vector<1x1x128xf32>
    %c0_79 = arith.constant 0 : index
    %c0_80 = arith.constant 0 : index
    %c0_81 = arith.constant 0 : index
    %80 = vector.load %arg7[%c0_79, %c0_80, %c0_81] : memref<1x1x128xf32, #tpu.memory_space<vmem>>, vector<1x1x128xf32>
    tpu.vector_store %arg7[%c0_79, %c0_80, %c0_81], %79 {strides = array<i32>} : memref<1x1x128xf32, #tpu.memory_space<vmem>>, vector<1x1x128xf32>,
    return
  }
  func.func @transform_0(%arg0: i32) -> (i32, i32, i32, i32) {
    %c0_i32 = arith.constant 0 : i32
    %c0_i32_0 = arith.constant 0 : i32
    %c0_i32_1 = arith.constant 0 : i32
    %c0_i32_2 = arith.constant 0 : i32
    return %arg0, %c0_i32, %c0_i32_0, %c0_i32_1 : i32, i32, i32, i32
  }
  func.func @transform_1(%arg0: i32) -> (i32, i32) {
    %c0_i32 = arith.constant 0 : i32
    %c0_i32_0 = arith.constant 0 : i32
    %c0_i32_1 = arith.constant 0 : i32
    return %c0_i32, %c0_i32_0 : i32, i32
  }
  func.func @transform_2(%arg0: i32) -> (i32, i32) {
    %c0_i32 = arith.constant 0 : i32
    %c0_i32_0 = arith.constant 0 : i32
    %c0_i32_1 = arith.constant 0 : i32
    return %c0_i32, %c0_i32_0 : i32, i32
  }
  func.func @transform_3(%arg0: i32) -> (i32, i32, i32) {
    %c0_i32 = arith.constant 0 : i32
    %c0_i32_0 = arith.constant 0 : i32
    %c0_i32_1 = arith.constant 0 : i32
    %c0_i32_2 = arith.constant 0 : i32
    return %c0_i32, %c0_i32_0, %c0_i32_1 : i32, i32, i32
  }
  func.func @transform_4(%arg0: i32) -> (i32, i32, i32, i32) {
    %c0_i32 = arith.constant 0 : i32
    %c0_i32_0 = arith.constant 0 : i32
    %c0_i32_1 = arith.constant 0 : i32
    %c0_i32_2 = arith.constant 0 : i32
    return %arg0, %c0_i32, %c0_i32_0, %c0_i32_1 : i32, i32, i32, i32
  }
  func.func @transform_5(%arg0: i32) -> (i32, i32, i32) {
    %c0_i32 = arith.constant 0 : i32
    %c0_i32_0 = arith.constant 0 : i32
    %c0_i32_1 = arith.constant 0 : i32
    return %arg0, %c0_i32, %c0_i32_0 : i32, i32, i32
  }
  func.func @transform_6(%arg0: i32) -> (i32, i32, i32) {
    %c0_i32 = arith.constant 0 : i32
    %c0_i32_0 = arith.constant 0 : i32
    %c0_i32_1 = arith.constant 0 : i32
    return %arg0, %c0_i32, %c0_i32_0 : i32, i32, i32
  }
}

module attributes {stable_mosaic.version = 11 : i64} {
  func.func @_conv1_stats_kernel(%arg0: i32, %arg1: memref<1x18x18x128xf32, #tpu.memory_space<vmem>>, %arg2: memref<9x128x128xf32, #tpu.memory_space<vmem>>, %arg3: memref<1x16x16x128xf32, #tpu.memory_space<vmem>>, %arg4: memref<1x1x128xf32, #tpu.memory_space<vmem>>, %arg5: memref<1x1x128xf32, #tpu.memory_space<vmem>>) attributes {dimension_semantics = [#tpu.dimension_semantics<parallel>], iteration_bounds = array<i64: 2>, scalar_prefetch = 0 : i64, scratch_operands = 0 : i64, tpu.core_type = #tpu.core_type<tc>, window_params = [{transform_indices = @transform_0, window_bounds = array<i64: 1, 18, 18, 128>}, {pipeline_mode = #tpu.pipeline_mode<synchronous>, transform_indices = @transform_1, window_bounds = array<i64: 9, 128, 128>}, {transform_indices = @transform_2, window_bounds = array<i64: 1, 16, 16, 128>}, {transform_indices = @transform_3, window_bounds = array<i64: 1, 1, 128>}, {transform_indices = @transform_4, window_bounds = array<i64: 1, 1, 128>}]} {
    %cst = arith.constant 0.000000e+00 : f32
    %0 = vector.broadcast %cst : f32 to vector<256x128xf32>
    %c0 = arith.constant 0 : index
    %c0_0 = arith.constant 0 : index
    %c0_1 = arith.constant 0 : index
    %c0_2 = arith.constant 0 : index
    %1 = vector.load %arg1[%c0, %c0_0, %c0_1, %c0_2] : memref<1x18x18x128xf32, #tpu.memory_space<vmem>>, vector<1x16x16x128xf32>
    %2 = vector.shape_cast %1 : vector<1x16x16x128xf32> to vector<16x16x128xf32>
    %3 = vector.shape_cast %2 : vector<16x16x128xf32> to vector<256x128xf32>
    %c0_3 = arith.constant 0 : index
    %c0_4 = arith.constant 0 : index
    %c0_5 = arith.constant 0 : index
    %4 = vector.load %arg2[%c0_3, %c0_4, %c0_5] : memref<9x128x128xf32, #tpu.memory_space<vmem>>, vector<1x128x128xf32>
    %5 = vector.shape_cast %4 : vector<1x128x128xf32> to vector<128x128xf32>
    %cst_6 = arith.constant dense<0.000000e+00> : vector<256x128xf32>
    %6 = tpu.matmul %3, %5, %cst_6 {dimension_numbers = #tpu.dot_dimension_numbers<[1], [0], [0], [1], [0, 0, 1, 1], [], []>} : vector<256x128xf32>, vector<128x128xf32>, vector<256x128xf32> -> vector<256x128xf32>
    %7 = arith.addf %0, %6 : vector<256x128xf32>
    %c0_7 = arith.constant 0 : index
    %c0_8 = arith.constant 0 : index
    %c1 = arith.constant 1 : index
    %c0_9 = arith.constant 0 : index
    %8 = vector.load %arg1[%c0_7, %c0_8, %c1, %c0_9] : memref<1x18x18x128xf32, #tpu.memory_space<vmem>>, vector<1x16x16x128xf32>
    %9 = vector.shape_cast %8 : vector<1x16x16x128xf32> to vector<16x16x128xf32>
    %10 = vector.shape_cast %9 : vector<16x16x128xf32> to vector<256x128xf32>
    %c1_10 = arith.constant 1 : index
    %c0_11 = arith.constant 0 : index
    %c0_12 = arith.constant 0 : index
    %11 = vector.load %arg2[%c1_10, %c0_11, %c0_12] : memref<9x128x128xf32, #tpu.memory_space<vmem>>, vector<1x128x128xf32>
    %12 = vector.shape_cast %11 : vector<1x128x128xf32> to vector<128x128xf32>
    %cst_13 = arith.constant dense<0.000000e+00> : vector<256x128xf32>
    %13 = tpu.matmul %10, %12, %cst_13 {dimension_numbers = #tpu.dot_dimension_numbers<[1], [0], [0], [1], [0, 0, 1, 1], [], []>} : vector<256x128xf32>, vector<128x128xf32>, vector<256x128xf32> -> vector<256x128xf32>
    %14 = arith.addf %7, %13 : vector<256x128xf32>
    %c0_14 = arith.constant 0 : index
    %c0_15 = arith.constant 0 : index
    %c2 = arith.constant 2 : index
    %c0_16 = arith.constant 0 : index
    %15 = vector.load %arg1[%c0_14, %c0_15, %c2, %c0_16] : memref<1x18x18x128xf32, #tpu.memory_space<vmem>>, vector<1x16x16x128xf32>
    %16 = vector.shape_cast %15 : vector<1x16x16x128xf32> to vector<16x16x128xf32>
    %17 = vector.shape_cast %16 : vector<16x16x128xf32> to vector<256x128xf32>
    %c2_17 = arith.constant 2 : index
    %c0_18 = arith.constant 0 : index
    %c0_19 = arith.constant 0 : index
    %18 = vector.load %arg2[%c2_17, %c0_18, %c0_19] : memref<9x128x128xf32, #tpu.memory_space<vmem>>, vector<1x128x128xf32>
    %19 = vector.shape_cast %18 : vector<1x128x128xf32> to vector<128x128xf32>
    %cst_20 = arith.constant dense<0.000000e+00> : vector<256x128xf32>
    %20 = tpu.matmul %17, %19, %cst_20 {dimension_numbers = #tpu.dot_dimension_numbers<[1], [0], [0], [1], [0, 0, 1, 1], [], []>} : vector<256x128xf32>, vector<128x128xf32>, vector<256x128xf32> -> vector<256x128xf32>
    %21 = arith.addf %14, %20 : vector<256x128xf32>
    %c0_21 = arith.constant 0 : index
    %c1_22 = arith.constant 1 : index
    %c0_23 = arith.constant 0 : index
    %c0_24 = arith.constant 0 : index
    %22 = vector.load %arg1[%c0_21, %c1_22, %c0_23, %c0_24] : memref<1x18x18x128xf32, #tpu.memory_space<vmem>>, vector<1x16x16x128xf32>
    %23 = vector.shape_cast %22 : vector<1x16x16x128xf32> to vector<16x16x128xf32>
    %24 = vector.shape_cast %23 : vector<16x16x128xf32> to vector<256x128xf32>
    %c3 = arith.constant 3 : index
    %c0_25 = arith.constant 0 : index
    %c0_26 = arith.constant 0 : index
    %25 = vector.load %arg2[%c3, %c0_25, %c0_26] : memref<9x128x128xf32, #tpu.memory_space<vmem>>, vector<1x128x128xf32>
    %26 = vector.shape_cast %25 : vector<1x128x128xf32> to vector<128x128xf32>
    %cst_27 = arith.constant dense<0.000000e+00> : vector<256x128xf32>
    %27 = tpu.matmul %24, %26, %cst_27 {dimension_numbers = #tpu.dot_dimension_numbers<[1], [0], [0], [1], [0, 0, 1, 1], [], []>} : vector<256x128xf32>, vector<128x128xf32>, vector<256x128xf32> -> vector<256x128xf32>
    %28 = arith.addf %21, %27 : vector<256x128xf32>
    %c0_28 = arith.constant 0 : index
    %c1_29 = arith.constant 1 : index
    %c1_30 = arith.constant 1 : index
    %c0_31 = arith.constant 0 : index
    %29 = vector.load %arg1[%c0_28, %c1_29, %c1_30, %c0_31] : memref<1x18x18x128xf32, #tpu.memory_space<vmem>>, vector<1x16x16x128xf32>
    %30 = vector.shape_cast %29 : vector<1x16x16x128xf32> to vector<16x16x128xf32>
    %31 = vector.shape_cast %30 : vector<16x16x128xf32> to vector<256x128xf32>
    %c4 = arith.constant 4 : index
    %c0_32 = arith.constant 0 : index
    %c0_33 = arith.constant 0 : index
    %32 = vector.load %arg2[%c4, %c0_32, %c0_33] : memref<9x128x128xf32, #tpu.memory_space<vmem>>, vector<1x128x128xf32>
    %33 = vector.shape_cast %32 : vector<1x128x128xf32> to vector<128x128xf32>
    %cst_34 = arith.constant dense<0.000000e+00> : vector<256x128xf32>
    %34 = tpu.matmul %31, %33, %cst_34 {dimension_numbers = #tpu.dot_dimension_numbers<[1], [0], [0], [1], [0, 0, 1, 1], [], []>} : vector<256x128xf32>, vector<128x128xf32>, vector<256x128xf32> -> vector<256x128xf32>
    %35 = arith.addf %28, %34 : vector<256x128xf32>
    %c0_35 = arith.constant 0 : index
    %c1_36 = arith.constant 1 : index
    %c2_37 = arith.constant 2 : index
    %c0_38 = arith.constant 0 : index
    %36 = vector.load %arg1[%c0_35, %c1_36, %c2_37, %c0_38] : memref<1x18x18x128xf32, #tpu.memory_space<vmem>>, vector<1x16x16x128xf32>
    %37 = vector.shape_cast %36 : vector<1x16x16x128xf32> to vector<16x16x128xf32>
    %38 = vector.shape_cast %37 : vector<16x16x128xf32> to vector<256x128xf32>
    %c5 = arith.constant 5 : index
    %c0_39 = arith.constant 0 : index
    %c0_40 = arith.constant 0 : index
    %39 = vector.load %arg2[%c5, %c0_39, %c0_40] : memref<9x128x128xf32, #tpu.memory_space<vmem>>, vector<1x128x128xf32>
    %40 = vector.shape_cast %39 : vector<1x128x128xf32> to vector<128x128xf32>
    %cst_41 = arith.constant dense<0.000000e+00> : vector<256x128xf32>
    %41 = tpu.matmul %38, %40, %cst_41 {dimension_numbers = #tpu.dot_dimension_numbers<[1], [0], [0], [1], [0, 0, 1, 1], [], []>} : vector<256x128xf32>, vector<128x128xf32>, vector<256x128xf32> -> vector<256x128xf32>
    %42 = arith.addf %35, %41 : vector<256x128xf32>
    %c0_42 = arith.constant 0 : index
    %c2_43 = arith.constant 2 : index
    %c0_44 = arith.constant 0 : index
    %c0_45 = arith.constant 0 : index
    %43 = vector.load %arg1[%c0_42, %c2_43, %c0_44, %c0_45] : memref<1x18x18x128xf32, #tpu.memory_space<vmem>>, vector<1x16x16x128xf32>
    %44 = vector.shape_cast %43 : vector<1x16x16x128xf32> to vector<16x16x128xf32>
    %45 = vector.shape_cast %44 : vector<16x16x128xf32> to vector<256x128xf32>
    %c6 = arith.constant 6 : index
    %c0_46 = arith.constant 0 : index
    %c0_47 = arith.constant 0 : index
    %46 = vector.load %arg2[%c6, %c0_46, %c0_47] : memref<9x128x128xf32, #tpu.memory_space<vmem>>, vector<1x128x128xf32>
    %47 = vector.shape_cast %46 : vector<1x128x128xf32> to vector<128x128xf32>
    %cst_48 = arith.constant dense<0.000000e+00> : vector<256x128xf32>
    %48 = tpu.matmul %45, %47, %cst_48 {dimension_numbers = #tpu.dot_dimension_numbers<[1], [0], [0], [1], [0, 0, 1, 1], [], []>} : vector<256x128xf32>, vector<128x128xf32>, vector<256x128xf32> -> vector<256x128xf32>
    %49 = arith.addf %42, %48 : vector<256x128xf32>
    %c0_49 = arith.constant 0 : index
    %c2_50 = arith.constant 2 : index
    %c1_51 = arith.constant 1 : index
    %c0_52 = arith.constant 0 : index
    %50 = vector.load %arg1[%c0_49, %c2_50, %c1_51, %c0_52] : memref<1x18x18x128xf32, #tpu.memory_space<vmem>>, vector<1x16x16x128xf32>
    %51 = vector.shape_cast %50 : vector<1x16x16x128xf32> to vector<16x16x128xf32>
    %52 = vector.shape_cast %51 : vector<16x16x128xf32> to vector<256x128xf32>
    %c7 = arith.constant 7 : index
    %c0_53 = arith.constant 0 : index
    %c0_54 = arith.constant 0 : index
    %53 = vector.load %arg2[%c7, %c0_53, %c0_54] : memref<9x128x128xf32, #tpu.memory_space<vmem>>, vector<1x128x128xf32>
    %54 = vector.shape_cast %53 : vector<1x128x128xf32> to vector<128x128xf32>
    %cst_55 = arith.constant dense<0.000000e+00> : vector<256x128xf32>
    %55 = tpu.matmul %52, %54, %cst_55 {dimension_numbers = #tpu.dot_dimension_numbers<[1], [0], [0], [1], [0, 0, 1, 1], [], []>} : vector<256x128xf32>, vector<128x128xf32>, vector<256x128xf32> -> vector<256x128xf32>
    %56 = arith.addf %49, %55 : vector<256x128xf32>
    %c0_56 = arith.constant 0 : index
    %c2_57 = arith.constant 2 : index
    %c2_58 = arith.constant 2 : index
    %c0_59 = arith.constant 0 : index
    %57 = vector.load %arg1[%c0_56, %c2_57, %c2_58, %c0_59] : memref<1x18x18x128xf32, #tpu.memory_space<vmem>>, vector<1x16x16x128xf32>
    %58 = vector.shape_cast %57 : vector<1x16x16x128xf32> to vector<16x16x128xf32>
    %59 = vector.shape_cast %58 : vector<16x16x128xf32> to vector<256x128xf32>
    %c8 = arith.constant 8 : index
    %c0_60 = arith.constant 0 : index
    %c0_61 = arith.constant 0 : index
    %60 = vector.load %arg2[%c8, %c0_60, %c0_61] : memref<9x128x128xf32, #tpu.memory_space<vmem>>, vector<1x128x128xf32>
    %61 = vector.shape_cast %60 : vector<1x128x128xf32> to vector<128x128xf32>
    %cst_62 = arith.constant dense<0.000000e+00> : vector<256x128xf32>
    %62 = tpu.matmul %59, %61, %cst_62 {dimension_numbers = #tpu.dot_dimension_numbers<[1], [0], [0], [1], [0, 0, 1, 1], [], []>} : vector<256x128xf32>, vector<128x128xf32>, vector<256x128xf32> -> vector<256x128xf32>
    %63 = arith.addf %56, %62 : vector<256x128xf32>
    %64 = vector.shape_cast %63 : vector<256x128xf32> to vector<1x16x16x128xf32>
    %c0_63 = arith.constant 0 : index
    %c0_64 = arith.constant 0 : index
    %c0_65 = arith.constant 0 : index
    %c0_66 = arith.constant 0 : index
    %65 = vector.load %arg3[%c0_63, %c0_64, %c0_65, %c0_66] : memref<1x16x16x128xf32, #tpu.memory_space<vmem>>, vector<1x16x16x128xf32>
    tpu.vector_store %arg3[%c0_63, %c0_64, %c0_65, %c0_66], %64 {strides = array<i32>} : memref<1x16x16x128xf32, #tpu.memory_space<vmem>>, vector<1x16x16x128xf32>,
    %cst_67 = arith.constant dense<0.000000e+00> : vector<128xf32>
    %66 = vector.multi_reduction <add>, %63, %cst_67 [0] : vector<256x128xf32> to vector<128xf32>
    %67 = vector.shape_cast %66 : vector<128xf32> to vector<1x128xf32>
    %68 = vector.shape_cast %67 : vector<1x128xf32> to vector<1x1x128xf32>
    %c0_68 = arith.constant 0 : index
    %c0_69 = arith.constant 0 : index
    %c0_70 = arith.constant 0 : index
    %69 = vector.load %arg4[%c0_68, %c0_69, %c0_70] : memref<1x1x128xf32, #tpu.memory_space<vmem>>, vector<1x1x128xf32>
    tpu.vector_store %arg4[%c0_68, %c0_69, %c0_70], %68 {strides = array<i32>} : memref<1x1x128xf32, #tpu.memory_space<vmem>>, vector<1x1x128xf32>,
    %70 = arith.mulf %63, %63 : vector<256x128xf32>
    %cst_71 = arith.constant dense<0.000000e+00> : vector<128xf32>
    %71 = vector.multi_reduction <add>, %70, %cst_71 [0] : vector<256x128xf32> to vector<128xf32>
    %72 = vector.shape_cast %71 : vector<128xf32> to vector<1x128xf32>
    %73 = vector.shape_cast %72 : vector<1x128xf32> to vector<1x1x128xf32>
    %c0_72 = arith.constant 0 : index
    %c0_73 = arith.constant 0 : index
    %c0_74 = arith.constant 0 : index
    %74 = vector.load %arg5[%c0_72, %c0_73, %c0_74] : memref<1x1x128xf32, #tpu.memory_space<vmem>>, vector<1x1x128xf32>
    tpu.vector_store %arg5[%c0_72, %c0_73, %c0_74], %73 {strides = array<i32>} : memref<1x1x128xf32, #tpu.memory_space<vmem>>, vector<1x1x128xf32>,
    return
  }
  func.func @transform_0(%arg0: i32) -> (i32, i32, i32, i32) {
    %c0_i32 = arith.constant 0 : i32
    %c0_i32_0 = arith.constant 0 : i32
    %c0_i32_1 = arith.constant 0 : i32
    %c0_i32_2 = arith.constant 0 : i32
    return %arg0, %c0_i32, %c0_i32_0, %c0_i32_1 : i32, i32, i32, i32
  }
  func.func @transform_1(%arg0: i32) -> (i32, i32, i32) {
    %c0_i32 = arith.constant 0 : i32
    %c0_i32_0 = arith.constant 0 : i32
    %c0_i32_1 = arith.constant 0 : i32
    %c0_i32_2 = arith.constant 0 : i32
    return %c0_i32, %c0_i32_0, %c0_i32_1 : i32, i32, i32
  }
  func.func @transform_2(%arg0: i32) -> (i32, i32, i32, i32) {
    %c0_i32 = arith.constant 0 : i32
    %c0_i32_0 = arith.constant 0 : i32
    %c0_i32_1 = arith.constant 0 : i32
    %c0_i32_2 = arith.constant 0 : i32
    return %arg0, %c0_i32, %c0_i32_0, %c0_i32_1 : i32, i32, i32, i32
  }
  func.func @transform_3(%arg0: i32) -> (i32, i32, i32) {
    %c0_i32 = arith.constant 0 : i32
    %c0_i32_0 = arith.constant 0 : i32
    %c0_i32_1 = arith.constant 0 : i32
    return %arg0, %c0_i32, %c0_i32_0 : i32, i32, i32
  }
  func.func @transform_4(%arg0: i32) -> (i32, i32, i32) {
    %c0_i32 = arith.constant 0 : i32
    %c0_i32_0 = arith.constant 0 : i32
    %c0_i32_1 = arith.constant 0 : i32
    return %arg0, %c0_i32, %c0_i32_0 : i32, i32, i32
  }
}

</mosaic_0001>

<llo_original>
// kernel: basic_block_forward.5
$region0: #{basic_block_forward.5}
  #allocation0 [shape = 'u32[]', space=smem, size = 0x4, offset = 0x4, fixed_abs, tag = 'smem constant byte address 0x4 - core index']
  #allocation1 [shape = 'u32[72,128]{1,0:T(1,128)}', space=vmem, size = 0x9000, scoped, tag = 'internal scratch']
  %s0 = inlined_call_operand.vmem [shape: f32[2,16,16,128], index: 0, kind: input, shape index: {}]
  %s1 = inlined_call_operand.vmem [shape: f32[1,128], index: 1, kind: input, shape index: {}]
  %s2 = inlined_call_operand.vmem [shape: f32[1,128], index: 2, kind: input, shape index: {}]
  %s3 = inlined_call_operand.vmem [shape: f32[2,18,18,128], index: 3, kind: input, shape index: {}]
  %s4 = inlined_call_operand.vmem [shape: f32[2,16,16,128], index: 4, kind: output, shape index: {}]
  %s5 = sld [smem:[#allocation0]]
  $region49: #{basic_block_forward.5} parent=0
    _
  %s7 = ssub.s32 1, %s5
  %s8 = scalar_select 0, %s7, %s5
  loop: start=0, step=1, limit=4
  $region2: #{basic_block_forward.5} parent=0 // loop_pre_header
    _
  $region3: #{basic_block_forward.5} parent=0 // loop_header
    %s10 = sphi 0, %s14
    %p11 = scmp.ge.s32.totalorder %s10, 4
    %s20 = sphi 0, %s22
    %s23 = sphi 0, %s20
    %s24 = sphi 0, %s23
    %s40 = sphi 0, %s24
    %s44 = sphi 0, %s44
    %s46 = sphi 0, %s44
    %s47 = sphi 0, %s46
    %s61 = sphi 0, %s47
    %s65 = sphi 0, %s65
    %s67 = sphi 0, %s65
    %s68 = sphi 0, %s67
    %s82 = sphi 0, %s68
    %s88 = sphi 0, %s90
    %s91 = sphi 0, %s88
    %s92 = sphi 0, %s91
    %s108 = sphi 0, %s92
    %s114 = sphi 0, %s116
    %s117 = sphi 0, %s114
    %s118 = sphi 0, %s117
    %s134 = sphi 0, %s118
  $region4: #{basic_block_forward.5} parent=0 // loop_header_branch
    %13 = sbr.rel (%p11) target = $region8
  $region5: #{basic_block_forward.5} parent=0 // loop_body
    %s15 = ssub.s32 %s10, 1
    %s16 = ssub.s32 %s10, 2
    %s17 = sadd.s32 %s10, 1
    %s18 = ssub.s32 %s10, %s17
    %p19 = scmp.eq.s32.totalorder %s18, 0
    %s21 = sadd.s32 %s20, 1
    %s22 = scalar_select %p19, %s20, %s21
    %p25 = pneg %p19
    %p26 = scmp.eq.s32.totalorder %s10, 1
    %p27 = por %p25, %p26
    %p28 = scmp.ne.s32.totalorder %s20, %s23
    %p29 = scmp.eq.s32.totalorder %s10, 0
    %p30 = por %p28, %p29
    %p31 = scmp.ne.s32.totalorder %s20, %s23
    %p32 = scmp.eq.s32.totalorder %s15, 1
    %p33 = por %p31, %p32
    %p34 = scmp.ne.s32.totalorder %s23, %s24
    %p35 = scmp.eq.s32.totalorder %s15, 0
    %p36 = por %p34, %p35
    %p37 = scmp.ne.s32.totalorder %s23, %s24
    %p38 = scmp.eq.s32.totalorder %s16, 1
    %p39 = por %p37, %p38
    %p41 = scmp.ne.s32.totalorder %s24, %s40
    %p42 = scmp.eq.s32.totalorder %s16, 0
    %p43 = por %p41, %p42
    %s45 = sadd.s32 %s44, 1
    %p48 = scmp.eq.s32.totalorder %s10, 1
    %p49 = scmp.ne.s32.totalorder %s44, %s46
    %p50 = scmp.eq.s32.totalorder %s10, 0
    %p51 = por %p49, %p50
    %p52 = scmp.ne.s32.totalorder %s44, %s46
    %p53 = scmp.eq.s32.totalorder %s15, 1
    %p54 = por %p52, %p53
    %p55 = scmp.ne.s32.totalorder %s46, %s47
    %p56 = scmp.eq.s32.totalorder %s15, 0
    %p57 = por %p55, %p56
    %p58 = scmp.ne.s32.totalorder %s46, %s47
    %p59 = scmp.eq.s32.totalorder %s16, 1
    %p60 = por %p58, %p59
    %p62 = scmp.ne.s32.totalorder %s47, %s61
    %p63 = scmp.eq.s32.totalorder %s16, 0
    %p64 = por %p62, %p63
    %s66 = sadd.s32 %s65, 1
    %p69 = scmp.eq.s32.totalorder %s10, 1
    %p70 = scmp.ne.s32.totalorder %s65, %s67
    %p71 = scmp.eq.s32.totalorder %s10, 0
    %p72 = por %p70, %p71
    %p73 = scmp.ne.s32.totalorder %s65, %s67
    %p74 = scmp.eq.s32.totalorder %s15, 1
    %p75 = por %p73, %p74
    %p76 = scmp.ne.s32.totalorder %s67, %s68
    %p77 = scmp.eq.s32.totalorder %s15, 0
    %p78 = por %p76, %p77
    %p79 = scmp.ne.s32.totalorder %s67, %s68
    %p80 = scmp.eq.s32.totalorder %s16, 1
    %p81 = por %p79, %p80
    %p83 = scmp.ne.s32.totalorder %s68, %s82
    %p84 = scmp.eq.s32.totalorder %s16, 0
    %p85 = por %p83, %p84
    %s86 = ssub.s32 %s10, %s17
    %p87 = scmp.eq.s32.totalorder %s86, 0
    %s89 = sadd.s32 %s88, 1
    %s90 = scalar_select %p87, %s88, %s89
    %p93 = pneg %p87
    %p94 = scmp.eq.s32.totalorder %s10, 1
    %p95 = por %p93, %p94
    %p96 = scmp.ne.s32.totalorder %s88, %s91
    %p97 = scmp.eq.s32.totalorder %s10, 0
    %p98 = por %p96, %p97
    %p99 = scmp.ne.s32.totalorder %s88, %s91
    %p100 = scmp.eq.s32.totalorder %s15, 1
    %p101 = por %p99, %p100
    %p102 = scmp.ne.s32.totalorder %s91, %s92
    %p103 = scmp.eq.s32.totalorder %s15, 0
    %p104 = por %p102, %p103
    %p105 = scmp.ne.s32.totalorder %s91, %s92
    %p106 = scmp.eq.s32.totalorder %s16, 1
    %p107 = por %p105, %p106
    %p109 = scmp.ne.s32.totalorder %s92, %s108
    %p110 = scmp.eq.s32.totalorder %s16, 0
    %p111 = por %p109, %p110
    %s112 = ssub.s32 %s10, %s17
    %p113 = scmp.eq.s32.totalorder %s112, 0
    %s115 = sadd.s32 %s114, 1
    %s116 = scalar_select %p113, %s114, %s115
    %p119 = pneg %p113
    %p120 = scmp.eq.s32.totalorder %s10, 1
    %p121 = por %p119, %p120
    %p122 = scmp.ne.s32.totalorder %s114, %s117
    %p123 = scmp.eq.s32.totalorder %s10, 0
    %p124 = por %p122, %p123
    %p125 = scmp.ne.s32.totalorder %s114, %s117
    %p126 = scmp.eq.s32.totalorder %s15, 1
    %p127 = por %p125, %p126
    %p128 = scmp.ne.s32.totalorder %s117, %s118
    %p129 = scmp.eq.s32.totalorder %s15, 0
    %p130 = por %p128, %p129
    %p131 = scmp.ne.s32.totalorder %s117, %s118
    %p132 = scmp.eq.s32.totalorder %s16, 1
    %p133 = por %p131, %p132
    %p135 = scmp.ne.s32.totalorder %s118, %s134
    %p136 = scmp.eq.s32.totalorder %s16, 0
    %p137 = por %p135, %p136
    %p138 = scmp.le.s32.totalorder 1, %s10
    %p139 = scmp.lt.s32.totalorder %s10, 3
    %p140 = pnand %p138, %p139
    %p141 = pneg %p140
    // Predicated region
    $region9: #{basic_block_forward.5} parent=5 // pred_check
      _
    $region10: #{basic_block_forward.5} parent=5 // pred_check_branch
      %143 = sbr.rel (%p140) target = $region12
    $region11: #{basic_block_forward.5} parent=5 // pred_region
      %s144 = ssub.s32 %s10, 1
      // Predicated region
      $region13: #{basic_block_forward.5} parent=11 // pred_check
        %p145 = pneg %p57
      $region14: #{basic_block_forward.5} parent=11 // pred_check_branch
        %147 = sbr.rel (%p145) target = $region16
      $region15: #{basic_block_forward.5} parent=11 // pred_region
        _
      $region16: #{basic_block_forward.5} parent=11 // pred_fallthru
        _
      // Predicated region
      $region17: #{basic_block_forward.5} parent=11 // pred_check
        %p148 = pneg %p78
      $region18: #{basic_block_forward.5} parent=11 // pred_check_branch
        %150 = sbr.rel (%p148) target = $region20
      $region19: #{basic_block_forward.5} parent=11 // pred_region
        _
      $region20: #{basic_block_forward.5} parent=11 // pred_fallthru
        _
    $region12: #{basic_block_forward.5} parent=5 // pred_fallthru
      _
    %p151 = scmp.lt.s32.totalorder %s10, 2
    // Predicated region
    $region21: #{basic_block_forward.5} parent=5 // pred_check
      %p152 = pneg %p151
    $region22: #{basic_block_forward.5} parent=5 // pred_check_branch
      %154 = sbr.rel (%p152) target = $region24
    $region23: #{basic_block_forward.5} parent=5 // pred_region
      // Predicated region
      $region25: #{basic_block_forward.5} parent=23 // pred_check
        %p155 = pneg %p30
      $region26: #{basic_block_forward.5} parent=23 // pred_check_branch
        %157 = sbr.rel (%p155) target = $region28
      $region27: #{basic_block_forward.5} parent=23 // pred_region
        %p158 = scmp.lt.s32.totalorder %s10, 1
        %s159 = scalar_select %p158, %s10, 1
        %s160 = smul.addr %s159, 32
        %s161 = smul.addr %s160, 8
        %s162 = scalar_lea.vmem %s0, %s161
      $region28: #{basic_block_forward.5} parent=23 // pred_fallthru
        _
      // Predicated region
      $region29: #{basic_block_forward.5} parent=23 // pred_check
        %p163 = pneg %p98
      $region30: #{basic_block_forward.5} parent=23 // pred_check_branch
        %165 = sbr.rel (%p163) target = $region32
      $region31: #{basic_block_forward.5} parent=23 // pred_region
        %p166 = scmp.lt.s32.totalorder %s10, 1
        %s167 = scalar_select %p166, %s10, 1
        %s168 = smul.addr %s167, 54
        %s169 = smul.addr %s168, 8
        %s170 = scalar_lea.vmem %s3, %s169
      $region32: #{basic_block_forward.5} parent=23 // pred_fallthru
        _
    $region24: #{basic_block_forward.5} parent=5 // pred_fallthru
      _
    %p171 = scmp.le.s32.totalorder 1, %s10
    %p172 = scmp.lt.s32.totalorder %s10, 3
    %p173 = pnand %p171, %p172
    %p174 = pneg %p173
    // Predicated region
    $region33: #{basic_block_forward.5} parent=5 // pred_check
      _
    $region34: #{basic_block_forward.5} parent=5 // pred_check_branch
      %176 = sbr.rel (%p173) target = $region36
    $region35: #{basic_block_forward.5} parent=5 // pred_region
      %s177 = ssub.s32 %s10, 1
      %p178 = scmp.lt.s32.totalorder %s15, 1
      %s179 = scalar_select %p178, %s15, 1
      %s180 = smul.addr %s179, 32
      %s181 = smul.addr %s180, 8
      %s182 = scalar_lea.vmem %s0, %s181
      %p183 = pneg %p36
      %p184 = pneg %p33
      %p185 = pneg %p57
      %p186 = pneg %p54
      %p187 = pneg %p78
      %p188 = pneg %p75
      %p189 = scmp.lt.s32.totalorder %s15, 1
      %s190 = scalar_select %p189, %s15, 1
      %s191 = smul.addr %s190, 54
      %s192 = smul.addr %s191, 8
      %s193 = scalar_lea.vmem %s3, %s192
      %p194 = pneg %p104
      %p195 = pneg %p101
      %p196 = pneg %p130
      %p197 = pneg %p127
      %p198 = scmp.lt.s32.totalorder %s15, 1
      %s199 = scalar_select %p198, %s15, 1
      %s200 = smul.addr %s199, 32
      %s201 = smul.addr %s200, 8
      %s202 = scalar_lea.vmem %s4, %s201
      %p203 = scmp.lt.s32.totalorder %s15, 1
      %s204 = scalar_select %p203, %s15, 1
      %s205 = smul.addr %s204, 32
      %s206 = smul.addr %s205, 8
      %s207 = scalar_lea.vmem %s0, %s206
      %p208 = scmp.lt.s32.totalorder %s15, 1
      %s209 = scalar_select %p208, %s15, 1
      %s210 = smul.addr %s209, 54
      %s211 = smul.addr %s210, 8
      %s212 = scalar_lea.vmem %s3, %s211
      %p213 = scmp.lt.s32.totalorder %s15, 1
      %s214 = scalar_select %p213, %s15, 1
      %s215 = smul.addr %s214, 32
      %s216 = smul.addr %s215, 8
      %s217 = scalar_lea.vmem %s4, %s216
      %v218 = vld [vmem:[%s207] sm:$0xff]
      %v219 = vld [vmem:[%s207 + $0x8] sm:$0xff]
      %v220 = vld [vmem:[%s207 + $0x10] sm:$0xff]
      %v221 = vld [vmem:[%s207 + $0x18] sm:$0xff]
      %v222 = vld [vmem:[%s207 + $0x20] sm:$0xff]
      %v223 = vld [vmem:[%s207 + $0x28] sm:$0xff]
      %v224 = vld [vmem:[%s207 + $0x30] sm:$0xff]
      %v225 = vld [vmem:[%s207 + $0x38] sm:$0xff]
      %v226 = vld [vmem:[%s207 + $0x40] sm:$0xff]
      %v227 = vld [vmem:[%s207 + $0x48] sm:$0xff]
      %v228 = vld [vmem:[%s207 + $0x50] sm:$0xff]
      %v229 = vld [vmem:[%s207 + $0x58] sm:$0xff]
      %v230 = vld [vmem:[%s207 + $0x60] sm:$0xff]
      %v231 = vld [vmem:[%s207 + $0x68] sm:$0xff]
      %v232 = vld [vmem:[%s207 + $0x70] sm:$0xff]
      %v233 = vld [vmem:[%s207 + $0x78] sm:$0xff]
      %v234 = vld [vmem:[%s207 + $0x80] sm:$0xff]
      %v235 = vld [vmem:[%s207 + $0x88] sm:$0xff]
      %v236 = vld [vmem:[%s207 + $0x90] sm:$0xff]
      %v237 = vld [vmem:[%s207 + $0x98] sm:$0xff]
      %v238 = vld [vmem:[%s207 + $0xa0] sm:$0xff]
      %v239 = vld [vmem:[%s207 + $0xa8] sm:$0xff]
      %v240 = vld [vmem:[%s207 + $0xb0] sm:$0xff]
      %v241 = vld [vmem:[%s207 + $0xb8] sm:$0xff]
      %v242 = vld [vmem:[%s207 + $0xc0] sm:$0xff]
      %v243 = vld [vmem:[%s207 + $0xc8] sm:$0xff]
      %v244 = vld [vmem:[%s207 + $0xd0] sm:$0xff]
      %v245 = vld [vmem:[%s207 + $0xd8] sm:$0xff]
      %v246 = vld [vmem:[%s207 + $0xe0] sm:$0xff]
      %v247 = vld [vmem:[%s207 + $0xe8] sm:$0xff]
      %v248 = vld [vmem:[%s207 + $0xf0] sm:$0xff]
      %v249 = vld [vmem:[%s207 + $0xf8] sm:$0xff]
      %s250 = scalar_lea.vmem %s212, 24
      %v251 = vld [vmem:[%s250 + $0x1] sm:$0xff]
      %v252 = vld [vmem:[%s250 + $0x9] sm:$0xff]
      %v253 = vld [vmem:[%s250 + $0x19] sm:$0xff]
      %v254 = vld [vmem:[%s250 + $0x21] sm:$0xff]
      %v255 = vld [vmem:[%s250 + $0x31] sm:$0xff]
      %v256 = vld [vmem:[%s250 + $0x39] sm:$0xff]
      %v257 = vld [vmem:[%s250 + $0x49] sm:$0xff]
      %v258 = vld [vmem:[%s250 + $0x51] sm:$0xff]
      %v259 = vld [vmem:[%s250 + $0x61] sm:$0xff]
      %v260 = vld [vmem:[%s250 + $0x69] sm:$0xff]
      %v261 = vld [vmem:[%s250 + $0x79] sm:$0xff]
      %v262 = vld [vmem:[%s250 + $0x81] sm:$0xff]
      %v263 = vld [vmem:[%s250 + $0x91] sm:$0xff]
      %v264 = vld [vmem:[%s250 + $0x99] sm:$0xff]
      %v265 = vld [vmem:[%s250 + $0xa9] sm:$0xff]
      %v266 = vld [vmem:[%s250 + $0xb1] sm:$0xff]
      %v267 = vld [vmem:[%s250 + $0xc1] sm:$0xff]
      %v268 = vld [vmem:[%s250 + $0xc9] sm:$0xff]
      %v269 = vld [vmem:[%s250 + $0xd9] sm:$0xff]
      %v270 = vld [vmem:[%s250 + $0xe1] sm:$0xff]
      %v271 = vld [vmem:[%s250 + $0xf1] sm:$0xff]
      %v272 = vld [vmem:[%s250 + $0xf9] sm:$0xff]
      %v273 = vld [vmem:[%s250 + $0x109] sm:$0xff]
      %v274 = vld [vmem:[%s250 + $0x111] sm:$0xff]
      %v275 = vld [vmem:[%s250 + $0x121] sm:$0xff]
      %v276 = vld [vmem:[%s250 + $0x129] sm:$0xff]
      %v277 = vld [vmem:[%s250 + $0x139] sm:$0xff]
      %v278 = vld [vmem:[%s250 + $0x141] sm:$0xff]
      %v279 = vld [vmem:[%s250 + $0x151] sm:$0xff]
      %v280 = vld [vmem:[%s250 + $0x159] sm:$0xff]
      %v281 = vld [vmem:[%s250 + $0x169] sm:$0xff]
      %v282 = vld [vmem:[%s250 + $0x171] sm:$0xff]
      %v283 = vld [vmem:[%s1] sm:$0x1]
      %v285 = vperm.slane %v283, 0
      %v287 = vmul.f32 %v218, %v285
      %v288 = vmul.f32 %v219, %v285
      %v289 = vmul.f32 %v220, %v285
      %v290 = vmul.f32 %v221, %v285
      %v291 = vmul.f32 %v222, %v285
      %v292 = vmul.f32 %v223, %v285
      %v293 = vmul.f32 %v224, %v285
      %v294 = vmul.f32 %v225, %v285
      %v295 = vmul.f32 %v226, %v285
      %v296 = vmul.f32 %v227, %v285
      %v297 = vmul.f32 %v228, %v285
      %v298 = vmul.f32 %v229, %v285
      %v299 = vmul.f32 %v230, %v285
      %v300 = vmul.f32 %v231, %v285
      %v301 = vmul.f32 %v232, %v285
      %v302 = vmul.f32 %v233, %v285
      %v303 = vmul.f32 %v234, %v285
      %v304 = vmul.f32 %v235, %v285
      %v305 = vmul.f32 %v236, %v285
      %v306 = vmul.f32 %v237, %v285
      %v307 = vmul.f32 %v238, %v285
      %v308 = vmul.f32 %v239, %v285
      %v309 = vmul.f32 %v240, %v285
      %v310 = vmul.f32 %v241, %v285
      %v311 = vmul.f32 %v242, %v285
      %v312 = vmul.f32 %v243, %v285
      %v313 = vmul.f32 %v244, %v285
      %v314 = vmul.f32 %v245, %v285
      %v315 = vmul.f32 %v246, %v285
      %v316 = vmul.f32 %v247, %v285
      %v317 = vmul.f32 %v248, %v285
      %v318 = vmul.f32 %v249, %v285
      %v319 = vld [vmem:[%s2] sm:$0x1]
      %v321 = vperm.slane %v319, 0
      %v323 = vadd.f32 %v287, %v321
      %v324 = vadd.f32 %v288, %v321
      %v325 = vadd.f32 %v289, %v321
      %v326 = vadd.f32 %v290, %v321
      %v327 = vadd.f32 %v291, %v321
      %v328 = vadd.f32 %v292, %v321
      %v329 = vadd.f32 %v293, %v321
      %v330 = vadd.f32 %v294, %v321
      %v331 = vadd.f32 %v295, %v321
      %v332 = vadd.f32 %v296, %v321
      %v333 = vadd.f32 %v297, %v321
      %v334 = vadd.f32 %v298, %v321
      %v335 = vadd.f32 %v299, %v321
      %v336 = vadd.f32 %v300, %v321
      %v337 = vadd.f32 %v301, %v321
      %v338 = vadd.f32 %v302, %v321
      %v339 = vadd.f32 %v303, %v321
      %v340 = vadd.f32 %v304, %v321
      %v341 = vadd.f32 %v305, %v321
      %v342 = vadd.f32 %v306, %v321
      %v343 = vadd.f32 %v307, %v321
      %v344 = vadd.f32 %v308, %v321
      %v345 = vadd.f32 %v309, %v321
      %v346 = vadd.f32 %v310, %v321
      %v347 = vadd.f32 %v311, %v321
      %v348 = vadd.f32 %v312, %v321
      %v349 = vadd.f32 %v313, %v321
      %v350 = vadd.f32 %v314, %v321
      %v351 = vadd.f32 %v315, %v321
      %v352 = vadd.f32 %v316, %v321
      %v353 = vadd.f32 %v317, %v321
      %v354 = vadd.f32 %v318, %v321
      %v355 = vadd.f32 %v323, %v251
      %v356 = vadd.f32 %v324, %v252
      %v357 = vadd.f32 %v325, %v253
      %v358 = vadd.f32 %v326, %v254
      %v359 = vadd.f32 %v327, %v255
      %v360 = vadd.f32 %v328, %v256
      %v361 = vadd.f32 %v329, %v257
      %v362 = vadd.f32 %v330, %v258
      %v363 = vadd.f32 %v331, %v259
      %v364 = vadd.f32 %v332, %v260
      %v365 = vadd.f32 %v333, %v261
      %v366 = vadd.f32 %v334, %v262
      %v367 = vadd.f32 %v335, %v263
      %v368 = vadd.f32 %v336, %v264
      %v369 = vadd.f32 %v337, %v265
      %v370 = vadd.f32 %v338, %v266
      %v371 = vadd.f32 %v339, %v267
      %v372 = vadd.f32 %v340, %v268
      %v373 = vadd.f32 %v341, %v269
      %v374 = vadd.f32 %v342, %v270
      %v375 = vadd.f32 %v343, %v271
      %v376 = vadd.f32 %v344, %v272
      %v377 = vadd.f32 %v345, %v273
      %v378 = vadd.f32 %v346, %v274
      %v379 = vadd.f32 %v347, %v275
      %v380 = vadd.f32 %v348, %v276
      %v381 = vadd.f32 %v349, %v277
      %v382 = vadd.f32 %v350, %v278
      %v383 = vadd.f32 %v351, %v279
      %v384 = vadd.f32 %v352, %v280
      %v385 = vadd.f32 %v353, %v281
      %v386 = vadd.f32 %v354, %v282
      %v387 = vmax.f32 %v355, 0.0
      %v388 = vmax.f32 %v356, 0.0
      %v389 = vmax.f32 %v357, 0.0
      %v390 = vmax.f32 %v358, 0.0
      %v391 = vmax.f32 %v359, 0.0
      %v392 = vmax.f32 %v360, 0.0
      %v393 = vmax.f32 %v361, 0.0
      %v394 = vmax.f32 %v362, 0.0
      %v395 = vmax.f32 %v363, 0.0
      %v396 = vmax.f32 %v364, 0.0
      %v397 = vmax.f32 %v365, 0.0
      %v398 = vmax.f32 %v366, 0.0
      %v399 = vmax.f32 %v367, 0.0
      %v400 = vmax.f32 %v368, 0.0
      %v401 = vmax.f32 %v369, 0.0
      %v402 = vmax.f32 %v370, 0.0
      %v403 = vmax.f32 %v371, 0.0
      %v404 = vmax.f32 %v372, 0.0
      %v405 = vmax.f32 %v373, 0.0
      %v406 = vmax.f32 %v374, 0.0
      %v407 = vmax.f32 %v375, 0.0
      %v408 = vmax.f32 %v376, 0.0
      %v409 = vmax.f32 %v377, 0.0
      %v410 = vmax.f32 %v378, 0.0
      %v411 = vmax.f32 %v379, 0.0
      %v412 = vmax.f32 %v380, 0.0
      %v413 = vmax.f32 %v381, 0.0
      %v414 = vmax.f32 %v382, 0.0
      %v415 = vmax.f32 %v383, 0.0
      %v416 = vmax.f32 %v384, 0.0
      %v417 = vmax.f32 %v385, 0.0
      %v418 = vmax.f32 %v386, 0.0
      %419 = vst [vmem:[%s217] sm:$0xff] %v387
      %420 = vst [vmem:[%s217 + $0x8] sm:$0xff] %v388
      %421 = vst [vmem:[%s217 + $0x10] sm:$0xff] %v389
      %422 = vst [vmem:[%s217 + $0x18] sm:$0xff] %v390
      %423 = vst [vmem:[%s217 + $0x20] sm:$0xff] %v391
      %424 = vst [vmem:[%s217 + $0x28] sm:$0xff] %v392
      %425 = vst [vmem:[%s217 + $0x30] sm:$0xff] %v393
      %426 = vst [vmem:[%s217 + $0x38] sm:$0xff] %v394
      %427 = vst [vmem:[%s217 + $0x40] sm:$0xff] %v395
      %428 = vst [vmem:[%s217 + $0x48] sm:$0xff] %v396
      %429 = vst [vmem:[%s217 + $0x50] sm:$0xff] %v397
      %430 = vst [vmem:[%s217 + $0x58] sm:$0xff] %v398
      %431 = vst [vmem:[%s217 + $0x60] sm:$0xff] %v399
      %432 = vst [vmem:[%s217 + $0x68] sm:$0xff] %v400
      %433 = vst [vmem:[%s217 + $0x70] sm:$0xff] %v401
      %434 = vst [vmem:[%s217 + $0x78] sm:$0xff] %v402
      %435 = vst [vmem:[%s217 + $0x80] sm:$0xff] %v403
      %436 = vst [vmem:[%s217 + $0x88] sm:$0xff] %v404
      %437 = vst [vmem:[%s217 + $0x90] sm:$0xff] %v405
      %438 = vst [vmem:[%s217 + $0x98] sm:$0xff] %v406
      %439 = vst [vmem:[%s217 + $0xa0] sm:$0xff] %v407
      %440 = vst [vmem:[%s217 + $0xa8] sm:$0xff] %v408
      %441 = vst [vmem:[%s217 + $0xb0] sm:$0xff] %v409
      %442 = vst [vmem:[%s217 + $0xb8] sm:$0xff] %v410
      %443 = vst [vmem:[%s217 + $0xc0] sm:$0xff] %v411
      %444 = vst [vmem:[%s217 + $0xc8] sm:$0xff] %v412
      %445 = vst [vmem:[%s217 + $0xd0] sm:$0xff] %v413
      %446 = vst [vmem:[%s217 + $0xd8] sm:$0xff] %v414
      %447 = vst [vmem:[%s217 + $0xe0] sm:$0xff] %v415
      %448 = vst [vmem:[%s217 + $0xe8] sm:$0xff] %v416
      %449 = vst [vmem:[%s217 + $0xf0] sm:$0xff] %v417
      %450 = vst [vmem:[%s217 + $0xf8] sm:$0xff] %v418
      %p451 = scmp.lt.s32.totalorder %s15, 1
      %s452 = scalar_select %p451, %s15, 1
      %s453 = smul.addr %s452, 32
      %s454 = smul.addr %s453, 8
      %s455 = scalar_lea.vmem %s4, %s454
      // Predicated region
      $region37: #{basic_block_forward.5} parent=35 // pred_check
        %p456 = pneg %p127
      $region38: #{basic_block_forward.5} parent=35 // pred_check_branch
        %458 = sbr.rel (%p456) target = $region40
      $region39: #{basic_block_forward.5} parent=35 // pred_region
        _
      $region40: #{basic_block_forward.5} parent=35 // pred_fallthru
        _
    $region36: #{basic_block_forward.5} parent=5 // pred_fallthru
      _
    %p459 = scmp.le.s32.totalorder 2, %s10
    // Predicated region
    $region41: #{basic_block_forward.5} parent=5 // pred_check
      %p460 = pneg %p459
    $region42: #{basic_block_forward.5} parent=5 // pred_check_branch
      %462 = sbr.rel (%p460) target = $region44
    $region43: #{basic_block_forward.5} parent=5 // pred_region
      %s463 = ssub.s32 %s10, 2
      // Predicated region
      $region45: #{basic_block_forward.5} parent=43 // pred_check
        %p464 = pneg %p133
      $region46: #{basic_block_forward.5} parent=43 // pred_check_branch
        %466 = sbr.rel (%p464) target = $region48
      $region47: #{basic_block_forward.5} parent=43 // pred_region
        %p467 = scmp.lt.s32.totalorder %s16, 1
        %s468 = scalar_select %p467, %s16, 1
        %s469 = smul.addr %s468, 32
        %s470 = smul.addr %s469, 8
        %s471 = scalar_lea.vmem %s4, %s470
      $region48: #{basic_block_forward.5} parent=43 // pred_fallthru
        _
    $region44: #{basic_block_forward.5} parent=5 // pred_fallthru
      _
  $region6: #{basic_block_forward.5} parent=0 // loop_footer
    %s14 = sadd.s32 1, %s10
  $region7: #{basic_block_forward.5} parent=0 // loop_footer_branch
    %9 = sbr.rel target = $region3
  $region8: #{basic_block_forward.5} parent=0 // loop_exit
    _

// kernel: basic_block_forward.4
$region0: #{basic_block_forward.4}
  #allocation0 [shape = 'u32[]', space=smem, size = 0x4, offset = 0x4, fixed_abs, tag = 'smem constant byte address 0x4 - core index']
  #allocation1 [shape = 'u32[72,128]{1,0:T(1,128)}', space=vmem, size = 0x9000, scoped, tag = 'internal scratch']
  #allocation2 [shape = 'f32[18,18,128]{2,1,0:T(8,128)}', space=vmem, size = 0x36000, scoped, tag = 'scratch operand']
  %s0 = inlined_call_operand.vmem [shape: f32[2,16,16,128], index: 0, kind: input, shape index: {}]
  %s1 = inlined_call_operand.vmem [shape: f32[1,128], index: 1, kind: input, shape index: {}]
  %s2 = inlined_call_operand.vmem [shape: f32[1,128], index: 2, kind: input, shape index: {}]
  %s3 = inlined_call_operand.vmem [shape: f32[9,128,128], index: 3, kind: input, shape index: {}]
  %s4 = inlined_call_operand.vmem [shape: f32[2,16,16,128], index: 4, kind: output, shape index: {0}]
  %s5 = inlined_call_operand.vmem [shape: f32[2,1,128], index: 5, kind: output, shape index: {1}]
  %s6 = inlined_call_operand.vmem [shape: f32[2,1,128], index: 6, kind: output, shape index: {2}]
  %7 = xla_tuple %s4, %s5, %s6
  %s8 = sld [smem:[#allocation0]]
  $region65: #{basic_block_forward.4} parent=0
    _
  %s10 = ssub.s32 1, %s8
  %s11 = scalar_select 0, %s10, %s8
  loop: start=0, step=1, limit=4
  $region2: #{basic_block_forward.4} parent=0 // loop_pre_header
    _
  $region3: #{basic_block_forward.4} parent=0 // loop_header
    %s13 = sphi 0, %s17
    %p14 = scmp.ge.s32.totalorder %s13, 4
    %s23 = sphi 0, %s25
    %s26 = sphi 0, %s23
    %s27 = sphi 0, %s26
    %s43 = sphi 0, %s27
    %s47 = sphi 0, %s47
    %s49 = sphi 0, %s47
    %s50 = sphi 0, %s49
    %s64 = sphi 0, %s50
    %s68 = sphi 0, %s68
    %s70 = sphi 0, %s68
    %s71 = sphi 0, %s70
    %s85 = sphi 0, %s71
    %s89 = sphi 0, %s89
    %s91 = sphi 0, %s89
    %s92 = sphi 0, %s91
    %s106 = sphi 0, %s92
    %s112 = sphi 0, %s114
    %s115 = sphi 0, %s112
    %s116 = sphi 0, %s115
    %s132 = sphi 0, %s116
    %s138 = sphi 0, %s140
    %s141 = sphi 0, %s138
    %s142 = sphi 0, %s141
    %s158 = sphi 0, %s142
    %s164 = sphi 0, %s166
    %s167 = sphi 0, %s164
    %s168 = sphi 0, %s167
    %s184 = sphi 0, %s168
  $region4: #{basic_block_forward.4} parent=0 // loop_header_branch
    %16 = sbr.rel (%p14) target = $region8
  $region5: #{basic_block_forward.4} parent=0 // loop_body
    %s18 = ssub.s32 %s13, 1
    %s19 = ssub.s32 %s13, 2
    %s20 = sadd.s32 %s13, 1
    %s21 = ssub.s32 %s13, %s20
    %p22 = scmp.eq.s32.totalorder %s21, 0
    %s24 = sadd.s32 %s23, 1
    %s25 = scalar_select %p22, %s23, %s24
    %p28 = pneg %p22
    %p29 = scmp.eq.s32.totalorder %s13, 1
    %p30 = por %p28, %p29
    %p31 = scmp.ne.s32.totalorder %s23, %s26
    %p32 = scmp.eq.s32.totalorder %s13, 0
    %p33 = por %p31, %p32
    %p34 = scmp.ne.s32.totalorder %s23, %s26
    %p35 = scmp.eq.s32.totalorder %s18, 1
    %p36 = por %p34, %p35
    %p37 = scmp.ne.s32.totalorder %s26, %s27
    %p38 = scmp.eq.s32.totalorder %s18, 0
    %p39 = por %p37, %p38
    %p40 = scmp.ne.s32.totalorder %s26, %s27
    %p41 = scmp.eq.s32.totalorder %s19, 1
    %p42 = por %p40, %p41
    %p44 = scmp.ne.s32.totalorder %s27, %s43
    %p45 = scmp.eq.s32.totalorder %s19, 0
    %p46 = por %p44, %p45
    %s48 = sadd.s32 %s47, 1
    %p51 = scmp.eq.s32.totalorder %s13, 1
    %p52 = scmp.ne.s32.totalorder %s47, %s49
    %p53 = scmp.eq.s32.totalorder %s13, 0
    %p54 = por %p52, %p53
    %p55 = scmp.ne.s32.totalorder %s47, %s49
    %p56 = scmp.eq.s32.totalorder %s18, 1
    %p57 = por %p55, %p56
    %p58 = scmp.ne.s32.totalorder %s49, %s50
    %p59 = scmp.eq.s32.totalorder %s18, 0
    %p60 = por %p58, %p59
    %p61 = scmp.ne.s32.totalorder %s49, %s50
    %p62 = scmp.eq.s32.totalorder %s19, 1
    %p63 = por %p61, %p62
    %p65 = scmp.ne.s32.totalorder %s50, %s64
    %p66 = scmp.eq.s32.totalorder %s19, 0
    %p67 = por %p65, %p66
    %s69 = sadd.s32 %s68, 1
    %p72 = scmp.eq.s32.totalorder %s13, 1
    %p73 = scmp.ne.s32.totalorder %s68, %s70
    %p74 = scmp.eq.s32.totalorder %s13, 0
    %p75 = por %p73, %p74
    %p76 = scmp.ne.s32.totalorder %s68, %s70
    %p77 = scmp.eq.s32.totalorder %s18, 1
    %p78 = por %p76, %p77
    %p79 = scmp.ne.s32.totalorder %s70, %s71
    %p80 = scmp.eq.s32.totalorder %s18, 0
    %p81 = por %p79, %p80
    %p82 = scmp.ne.s32.totalorder %s70, %s71
    %p83 = scmp.eq.s32.totalorder %s19, 1
    %p84 = por %p82, %p83
    %p86 = scmp.ne.s32.totalorder %s71, %s85
    %p87 = scmp.eq.s32.totalorder %s19, 0
    %p88 = por %p86, %p87
    %s90 = sadd.s32 %s89, 1
    %p93 = scmp.eq.s32.totalorder %s13, 1
    %p94 = scmp.ne.s32.totalorder %s89, %s91
    %p95 = scmp.eq.s32.totalorder %s13, 0
    %p96 = por %p94, %p95
    %p97 = scmp.ne.s32.totalorder %s89, %s91
    %p98 = scmp.eq.s32.totalorder %s18, 1
    %p99 = por %p97, %p98
    %p100 = scmp.ne.s32.totalorder %s91, %s92
    %p101 = scmp.eq.s32.totalorder %s18, 0
    %p102 = por %p100, %p101
    %p103 = scmp.ne.s32.totalorder %s91, %s92
    %p104 = scmp.eq.s32.totalorder %s19, 1
    %p105 = por %p103, %p104
    %p107 = scmp.ne.s32.totalorder %s92, %s106
    %p108 = scmp.eq.s32.totalorder %s19, 0
    %p109 = por %p107, %p108
    %s110 = ssub.s32 %s13, %s20
    %p111 = scmp.eq.s32.totalorder %s110, 0
    %s113 = sadd.s32 %s112, 1
    %s114 = scalar_select %p111, %s112, %s113
    %p117 = pneg %p111
    %p118 = scmp.eq.s32.totalorder %s13, 1
    %p119 = por %p117, %p118
    %p120 = scmp.ne.s32.totalorder %s112, %s115
    %p121 = scmp.eq.s32.totalorder %s13, 0
    %p122 = por %p120, %p121
    %p123 = scmp.ne.s32.totalorder %s112, %s115
    %p124 = scmp.eq.s32.totalorder %s18, 1
    %p125 = por %p123, %p124
    %p126 = scmp.ne.s32.totalorder %s115, %s116
    %p127 = scmp.eq.s32.totalorder %s18, 0
    %p128 = por %p126, %p127
    %p129 = scmp.ne.s32.totalorder %s115, %s116
    %p130 = scmp.eq.s32.totalorder %s19, 1
    %p131 = por %p129, %p130
    %p133 = scmp.ne.s32.totalorder %s116, %s132
    %p134 = scmp.eq.s32.totalorder %s19, 0
    %p135 = por %p133, %p134
    %s136 = ssub.s32 %s13, %s20
    %p137 = scmp.eq.s32.totalorder %s136, 0
    %s139 = sadd.s32 %s138, 1
    %s140 = scalar_select %p137, %s138, %s139
    %p143 = pneg %p137
    %p144 = scmp.eq.s32.totalorder %s13, 1
    %p145 = por %p143, %p144
    %p146 = scmp.ne.s32.totalorder %s138, %s141
    %p147 = scmp.eq.s32.totalorder %s13, 0
    %p148 = por %p146, %p147
    %p149 = scmp.ne.s32.totalorder %s138, %s141
    %p150 = scmp.eq.s32.totalorder %s18, 1
    %p151 = por %p149, %p150
    %p152 = scmp.ne.s32.totalorder %s141, %s142
    %p153 = scmp.eq.s32.totalorder %s18, 0
    %p154 = por %p152, %p153
    %p155 = scmp.ne.s32.totalorder %s141, %s142
    %p156 = scmp.eq.s32.totalorder %s19, 1
    %p157 = por %p155, %p156
    %p159 = scmp.ne.s32.totalorder %s142, %s158
    %p160 = scmp.eq.s32.totalorder %s19, 0
    %p161 = por %p159, %p160
    %s162 = ssub.s32 %s13, %s20
    %p163 = scmp.eq.s32.totalorder %s162, 0
    %s165 = sadd.s32 %s164, 1
    %s166 = scalar_select %p163, %s164, %s165
    %p169 = pneg %p163
    %p170 = scmp.eq.s32.totalorder %s13, 1
    %p171 = por %p169, %p170
    %p172 = scmp.ne.s32.totalorder %s164, %s167
    %p173 = scmp.eq.s32.totalorder %s13, 0
    %p174 = por %p172, %p173
    %p175 = scmp.ne.s32.totalorder %s164, %s167
    %p176 = scmp.eq.s32.totalorder %s18, 1
    %p177 = por %p175, %p176
    %p178 = scmp.ne.s32.totalorder %s167, %s168
    %p179 = scmp.eq.s32.totalorder %s18, 0
    %p180 = por %p178, %p179
    %p181 = scmp.ne.s32.totalorder %s167, %s168
    %p182 = scmp.eq.s32.totalorder %s19, 1
    %p183 = por %p181, %p182
    %p185 = scmp.ne.s32.totalorder %s168, %s184
    %p186 = scmp.eq.s32.totalorder %s19, 0
    %p187 = por %p185, %p186
    %p188 = scmp.le.s32.totalorder 1, %s13
    %p189 = scmp.lt.s32.totalorder %s13, 3
    %p190 = pnand %p188, %p189
    %p191 = pneg %p190
    // Predicated region
    $region9: #{basic_block_forward.4} parent=5 // pred_check
      _
    $region10: #{basic_block_forward.4} parent=5 // pred_check_branch
      %193 = sbr.rel (%p190) target = $region12
    $region11: #{basic_block_forward.4} parent=5 // pred_region
      %s194 = ssub.s32 %s13, 1
      // Predicated region
      $region13: #{basic_block_forward.4} parent=11 // pred_check
        %p195 = pneg %p60
      $region14: #{basic_block_forward.4} parent=11 // pred_check_branch
        %197 = sbr.rel (%p195) target = $region16
      $region15: #{basic_block_forward.4} parent=11 // pred_region
        _
      $region16: #{basic_block_forward.4} parent=11 // pred_fallthru
        _
      // Predicated region
      $region17: #{basic_block_forward.4} parent=11 // pred_check
        %p198 = pneg %p81
      $region18: #{basic_block_forward.4} parent=11 // pred_check_branch
        %200 = sbr.rel (%p198) target = $region20
      $region19: #{basic_block_forward.4} parent=11 // pred_region
        _
      $region20: #{basic_block_forward.4} parent=11 // pred_fallthru
        _
      // Predicated region
      $region21: #{basic_block_forward.4} parent=11 // pred_check
        %p201 = pneg %p102
      $region22: #{basic_block_forward.4} parent=11 // pred_check_branch
        %203 = sbr.rel (%p201) target = $region24
      $region23: #{basic_block_forward.4} parent=11 // pred_region
        _
      $region24: #{basic_block_forward.4} parent=11 // pred_fallthru
        _
    $region12: #{basic_block_forward.4} parent=5 // pred_fallthru
      _
    %p204 = scmp.lt.s32.totalorder %s13, 2
    // Predicated region
    $region25: #{basic_block_forward.4} parent=5 // pred_check
      %p205 = pneg %p204
    $region26: #{basic_block_forward.4} parent=5 // pred_check_branch
      %207 = sbr.rel (%p205) target = $region28
    $region27: #{basic_block_forward.4} parent=5 // pred_region
      // Predicated region
      $region29: #{basic_block_forward.4} parent=27 // pred_check
        %p208 = pneg %p33
      $region30: #{basic_block_forward.4} parent=27 // pred_check_branch
        %210 = sbr.rel (%p208) target = $region32
      $region31: #{basic_block_forward.4} parent=27 // pred_region
        %p211 = scmp.lt.s32.totalorder %s13, 1
        %s212 = scalar_select %p211, %s13, 1
        %s213 = smul.addr %s212, 32
        %s214 = smul.addr %s213, 8
        %s215 = scalar_lea.vmem %s0, %s214
      $region32: #{basic_block_forward.4} parent=27 // pred_fallthru
        _
    $region28: #{basic_block_forward.4} parent=5 // pred_fallthru
      _
    %p216 = scmp.le.s32.totalorder 1, %s13
    %p217 = scmp.lt.s32.totalorder %s13, 3
    %p218 = pnand %p216, %p217
    %p219 = pneg %p218
    // Predicated region
    $region33: #{basic_block_forward.4} parent=5 // pred_check
      _
    $region34: #{basic_block_forward.4} parent=5 // pred_check_branch
      %221 = sbr.rel (%p218) target = $region36
    $region35: #{basic_block_forward.4} parent=5 // pred_region
      %s222 = ssub.s32 %s13, 1
      %p223 = scmp.lt.s32.totalorder %s18, 1
      %s224 = scalar_select %p223, %s18, 1
      %s225 = smul.addr %s224, 32
      %s226 = smul.addr %s225, 8
      %s227 = scalar_lea.vmem %s0, %s226
      %p228 = pneg %p39
      %p229 = pneg %p36
      %p230 = pneg %p60
      %p231 = pneg %p57
      %p232 = pneg %p81
      %p233 = pneg %p78
      %p234 = pneg %p102
      %p235 = pneg %p99
      %p236 = pneg %p128
      %p237 = pneg %p125
      %p238 = scmp.lt.s32.totalorder %s18, 1
      %s239 = scalar_select %p238, %s18, 1
      %s240 = smul.addr %s239, 32
      %s241 = smul.addr %s240, 8
      %s242 = scalar_lea.vmem %s4, %s241
      %p243 = pneg %p154
      %p244 = pneg %p151
      %p245 = scmp.lt.s32.totalorder %s18, 1
      %s246 = scalar_select %p245, %s18, 1
      %s247 = scalar_lea.vmem %s5, %s246
      %p248 = pneg %p180
      %p249 = pneg %p177
      %p250 = scmp.lt.s32.totalorder %s18, 1
      %s251 = scalar_select %p250, %s18, 1
      %s252 = scalar_lea.vmem %s6, %s251
      %p253 = scmp.lt.s32.totalorder %s18, 1
      %s254 = scalar_select %p253, %s18, 1
      %s255 = smul.addr %s254, 32
      %s256 = smul.addr %s255, 8
      %s257 = scalar_lea.vmem %s0, %s256
      %p258 = scmp.lt.s32.totalorder %s18, 1
      %s259 = scalar_select %p258, %s18, 1
      %s260 = smul.addr %s259, 32
      %s261 = smul.addr %s260, 8
      %s262 = scalar_lea.vmem %s4, %s261
      %p263 = scmp.lt.s32.totalorder %s18, 1
      %s264 = scalar_select %p263, %s18, 1
      %s265 = scalar_lea.vmem %s5, %s264
      %p266 = scmp.lt.s32.totalorder %s18, 1
      %s267 = scalar_select %p266, %s18, 1
      %s268 = scalar_lea.vmem %s6, %s267
      %v269 = vld [vmem:[%s257] sm:$0xff]
      %v270 = vld [vmem:[%s257 + $0x8] sm:$0xff]
      %v271 = vld [vmem:[%s257 + $0x10] sm:$0xff]
      %v272 = vld [vmem:[%s257 + $0x18] sm:$0xff]
      %v273 = vld [vmem:[%s257 + $0x20] sm:$0xff]
      %v274 = vld [vmem:[%s257 + $0x28] sm:$0xff]
      %v275 = vld [vmem:[%s257 + $0x30] sm:$0xff]
      %v276 = vld [vmem:[%s257 + $0x38] sm:$0xff]
      %v277 = vld [vmem:[%s257 + $0x40] sm:$0xff]
      %v278 = vld [vmem:[%s257 + $0x48] sm:$0xff]
      %v279 = vld [vmem:[%s257 + $0x50] sm:$0xff]
      %v280 = vld [vmem:[%s257 + $0x58] sm:$0xff]
      %v281 = vld [vmem:[%s257 + $0x60] sm:$0xff]
      %v282 = vld [vmem:[%s257 + $0x68] sm:$0xff]
      %v283 = vld [vmem:[%s257 + $0x70] sm:$0xff]
      %v284 = vld [vmem:[%s257 + $0x78] sm:$0xff]
      %v285 = vld [vmem:[%s257 + $0x80] sm:$0xff]
      %v286 = vld [vmem:[%s257 + $0x88] sm:$0xff]
      %v287 = vld [vmem:[%s257 + $0x90] sm:$0xff]
      %v288 = vld [vmem:[%s257 + $0x98] sm:$0xff]
      %v289 = vld [vmem:[%s257 + $0xa0] sm:$0xff]
      %v290 = vld [vmem:[%s257 + $0xa8] sm:$0xff]
      %v291 = vld [vmem:[%s257 + $0xb0] sm:$0xff]
      %v292 = vld [vmem:[%s257 + $0xb8] sm:$0xff]
      %v293 = vld [vmem:[%s257 + $0xc0] sm:$0xff]
      %v294 = vld [vmem:[%s257 + $0xc8] sm:$0xff]
      %v295 = vld [vmem:[%s257 + $0xd0] sm:$0xff]
      %v296 = vld [vmem:[%s257 + $0xd8] sm:$0xff]
      %v297 = vld [vmem:[%s257 + $0xe0] sm:$0xff]
      %v298 = vld [vmem:[%s257 + $0xe8] sm:$0xff]
      %v299 = vld [vmem:[%s257 + $0xf0] sm:$0xff]
      %v300 = vld [vmem:[%s257 + $0xf8] sm:$0xff]
      %v301 = vld [vmem:[%s1] sm:$0x1]
      %v303 = vperm.slane %v301, 0
      %v305 = vmul.f32 %v269, %v303
      %v306 = vmul.f32 %v270, %v303
      %v307 = vmul.f32 %v271, %v303
      %v308 = vmul.f32 %v272, %v303
      %v309 = vmul.f32 %v273, %v303
      %v310 = vmul.f32 %v274, %v303
      %v311 = vmul.f32 %v275, %v303
      %v312 = vmul.f32 %v276, %v303
      %v313 = vmul.f32 %v277, %v303
      %v314 = vmul.f32 %v278, %v303
      %v315 = vmul.f32 %v279, %v303
      %v316 = vmul.f32 %v280, %v303
      %v317 = vmul.f32 %v281, %v303
      %v318 = vmul.f32 %v282, %v303
      %v319 = vmul.f32 %v283, %v303
      %v320 = vmul.f32 %v284, %v303
      %v321 = vmul.f32 %v285, %v303
      %v322 = vmul.f32 %v286, %v303
      %v323 = vmul.f32 %v287, %v303
      %v324 = vmul.f32 %v288, %v303
      %v325 = vmul.f32 %v289, %v303
      %v326 = vmul.f32 %v290, %v303
      %v327 = vmul.f32 %v291, %v303
      %v328 = vmul.f32 %v292, %v303
      %v329 = vmul.f32 %v293, %v303
      %v330 = vmul.f32 %v294, %v303
      %v331 = vmul.f32 %v295, %v303
      %v332 = vmul.f32 %v296, %v303
      %v333 = vmul.f32 %v297, %v303
      %v334 = vmul.f32 %v298, %v303
      %v335 = vmul.f32 %v299, %v303
      %v336 = vmul.f32 %v300, %v303
      %v337 = vld [vmem:[%s2] sm:$0x1]
      %v339 = vperm.slane %v337, 0
      %v341 = vadd.f32 %v305, %v339
      %v342 = vadd.f32 %v306, %v339
      %v343 = vadd.f32 %v307, %v339
      %v344 = vadd.f32 %v308, %v339
      %v345 = vadd.f32 %v309, %v339
      %v346 = vadd.f32 %v310, %v339
      %v347 = vadd.f32 %v311, %v339
      %v348 = vadd.f32 %v312, %v339
      %v349 = vadd.f32 %v313, %v339
      %v350 = vadd.f32 %v314, %v339
      %v351 = vadd.f32 %v315, %v339
      %v352 = vadd.f32 %v316, %v339
      %v353 = vadd.f32 %v317, %v339
      %v354 = vadd.f32 %v318, %v339
      %v355 = vadd.f32 %v319, %v339
      %v356 = vadd.f32 %v320, %v339
      %v357 = vadd.f32 %v321, %v339
      %v358 = vadd.f32 %v322, %v339
      %v359 = vadd.f32 %v323, %v339
      %v360 = vadd.f32 %v324, %v339
      %v361 = vadd.f32 %v325, %v339
      %v362 = vadd.f32 %v326, %v339
      %v363 = vadd.f32 %v327, %v339
      %v364 = vadd.f32 %v328, %v339
      %v365 = vadd.f32 %v329, %v339
      %v366 = vadd.f32 %v330, %v339
      %v367 = vadd.f32 %v331, %v339
      %v368 = vadd.f32 %v332, %v339
      %v369 = vadd.f32 %v333, %v339
      %v370 = vadd.f32 %v334, %v339
      %v371 = vadd.f32 %v335, %v339
      %v372 = vadd.f32 %v336, %v339
      %v373 = vmax.f32 %v341, 0.0
      %v374 = vmax.f32 %v342, 0.0
      %v375 = vmax.f32 %v343, 0.0
      %v376 = vmax.f32 %v344, 0.0
      %v377 = vmax.f32 %v345, 0.0
      %v378 = vmax.f32 %v346, 0.0
      %v379 = vmax.f32 %v347, 0.0
      %v380 = vmax.f32 %v348, 0.0
      %v381 = vmax.f32 %v349, 0.0
      %v382 = vmax.f32 %v350, 0.0
      %v383 = vmax.f32 %v351, 0.0
      %v384 = vmax.f32 %v352, 0.0
      %v385 = vmax.f32 %v353, 0.0
      %v386 = vmax.f32 %v354, 0.0
      %v387 = vmax.f32 %v355, 0.0
      %v388 = vmax.f32 %v356, 0.0
      %v389 = vmax.f32 %v357, 0.0
      %v390 = vmax.f32 %v358, 0.0
      %v391 = vmax.f32 %v359, 0.0
      %v392 = vmax.f32 %v360, 0.0
      %v393 = vmax.f32 %v361, 0.0
      %v394 = vmax.f32 %v362, 0.0
      %v395 = vmax.f32 %v363, 0.0
      %v396 = vmax.f32 %v364, 0.0
      %v397 = vmax.f32 %v365, 0.0
      %v398 = vmax.f32 %v366, 0.0
      %v399 = vmax.f32 %v367, 0.0
      %v400 = vmax.f32 %v368, 0.0
      %v401 = vmax.f32 %v369, 0.0
      %v402 = vmax.f32 %v370, 0.0
      %v403 = vmax.f32 %v371, 0.0
      %v404 = vmax.f32 %v372, 0.0
      %405 = vst [vmem:[#allocation2] sm:$0xff] 0.0
      %406 = vst [vmem:[#allocation2 + $0x8] sm:$0xff] 0.0
      %407 = vst [vmem:[#allocation2 + $0x10] sm:$0x3] 0.0
      %408 = vst [vmem:[#allocation2 + $0x18] sm:$0xff] 0.0
      %409 = vst [vmem:[#allocation2 + $0x20] sm:$0xff] 0.0
      %410 = vst [vmem:[#allocation2 + $0x28] sm:$0x3] 0.0
      %411 = vst [vmem:[#allocation2 + $0x30] sm:$0xff] 0.0
      %412 = vst [vmem:[#allocation2 + $0x38] sm:$0xff] 0.0
      %413 = vst [vmem:[#allocation2 + $0x40] sm:$0x3] 0.0
      %414 = vst [vmem:[#allocation2 + $0x48] sm:$0xff] 0.0
      %415 = vst [vmem:[#allocation2 + $0x50] sm:$0xff] 0.0
      %416 = vst [vmem:[#allocation2 + $0x58] sm:$0x3] 0.0
      %417 = vst [vmem:[#allocation2 + $0x60] sm:$0xff] 0.0
      %418 = vst [vmem:[#allocation2 + $0x68] sm:$0xff] 0.0
      %419 = vst [vmem:[#allocation2 + $0x70] sm:$0x3] 0.0
      %420 = vst [vmem:[#allocation2 + $0x78] sm:$0xff] 0.0
      %421 = vst [vmem:[#allocation2 + $0x80] sm:$0xff] 0.0
      %422 = vst [vmem:[#allocation2 + $0x88] sm:$0x3] 0.0
      %423 = vst [vmem:[#allocation2 + $0x90] sm:$0xff] 0.0
      %424 = vst [vmem:[#allocation2 + $0x98] sm:$0xff] 0.0
      %425 = vst [vmem:[#allocation2 + $0xa0] sm:$0x3] 0.0
      %426 = vst [vmem:[#allocation2 + $0xa8] sm:$0xff] 0.0
      %427 = vst [vmem:[#allocation2 + $0xb0] sm:$0xff] 0.0
      %428 = vst [vmem:[#allocation2 + $0xb8] sm:$0x3] 0.0
      %429 = vst [vmem:[#allocation2 + $0xc0] sm:$0xff] 0.0
      %430 = vst [vmem:[#allocation2 + $0xc8] sm:$0xff] 0.0
      %431 = vst [vmem:[#allocation2 + $0xd0] sm:$0x3] 0.0
      %432 = vst [vmem:[#allocation2 + $0xd8] sm:$0xff] 0.0
      %433 = vst [vmem:[#allocation2 + $0xe0] sm:$0xff] 0.0
      %434 = vst [vmem:[#allocation2 + $0xe8] sm:$0x3] 0.0
      %435 = vst [vmem:[#allocation2 + $0xf0] sm:$0xff] 0.0
      %436 = vst [vmem:[#allocation2 + $0xf8] sm:$0xff] 0.0
      %437 = vst [vmem:[#allocation2 + $0x100] sm:$0x3] 0.0
      %438 = vst [vmem:[#allocation2 + $0x108] sm:$0xff] 0.0
      %439 = vst [vmem:[#allocation2 + $0x110] sm:$0xff] 0.0
      %440 = vst [vmem:[#allocation2 + $0x118] sm:$0x3] 0.0
      %441 = vst [vmem:[#allocation2 + $0x120] sm:$0xff] 0.0
      %442 = vst [vmem:[#allocation2 + $0x128] sm:$0xff] 0.0
      %443 = vst [vmem:[#allocation2 + $0x130] sm:$0x3] 0.0
      %444 = vst [vmem:[#allocation2 + $0x138] sm:$0xff] 0.0
      %445 = vst [vmem:[#allocation2 + $0x140] sm:$0xff] 0.0
      %446 = vst [vmem:[#allocation2 + $0x148] sm:$0x3] 0.0
      %447 = vst [vmem:[#allocation2 + $0x150] sm:$0xff] 0.0
      %448 = vst [vmem:[#allocation2 + $0x158] sm:$0xff] 0.0
      %449 = vst [vmem:[#allocation2 + $0x160] sm:$0x3] 0.0
      %450 = vst [vmem:[#allocation2 + $0x168] sm:$0xff] 0.0
      %451 = vst [vmem:[#allocation2 + $0x170] sm:$0xff] 0.0
      %452 = vst [vmem:[#allocation2 + $0x178] sm:$0x3] 0.0
      %453 = vst [vmem:[#allocation2 + $0x180] sm:$0xff] 0.0
      %454 = vst [vmem:[#allocation2 + $0x188] sm:$0xff] 0.0
      %455 = vst [vmem:[#allocation2 + $0x190] sm:$0x3] 0.0
      %456 = vst [vmem:[#allocation2 + $0x198] sm:$0xff] 0.0
      %457 = vst [vmem:[#allocation2 + $0x1a0] sm:$0xff] 0.0
      %458 = vst [vmem:[#allocation2 + $0x1a8] sm:$0x3] 0.0
      %s459 = scalar_lea.vmem [#allocation2], 24
      %460 = vst [vmem:[%s459 + $0x1] sm:$0xff] %v373
      %461 = vst [vmem:[%s459 + $0x9] sm:$0xff] %v374
      %462 = vst [vmem:[%s459 + $0x19] sm:$0xff] %v375
      %463 = vst [vmem:[%s459 + $0x21] sm:$0xff] %v376
      %464 = vst [vmem:[%s459 + $0x31] sm:$0xff] %v377
      %465 = vst [vmem:[%s459 + $0x39] sm:$0xff] %v378
      %466 = vst [vmem:[%s459 + $0x49] sm:$0xff] %v379
      %467 = vst [vmem:[%s459 + $0x51] sm:$0xff] %v380
      %468 = vst [vmem:[%s459 + $0x61] sm:$0xff] %v381
      %469 = vst [vmem:[%s459 + $0x69] sm:$0xff] %v382
      %470 = vst [vmem:[%s459 + $0x79] sm:$0xff] %v383
      %471 = vst [vmem:[%s459 + $0x81] sm:$0xff] %v384
      %472 = vst [vmem:[%s459 + $0x91] sm:$0xff] %v385
      %473 = vst [vmem:[%s459 + $0x99] sm:$0xff] %v386
      %474 = vst [vmem:[%s459 + $0xa9] sm:$0xff] %v387
      %475 = vst [vmem:[%s459 + $0xb1] sm:$0xff] %v388
      %476 = vst [vmem:[%s459 + $0xc1] sm:$0xff] %v389
      %477 = vst [vmem:[%s459 + $0xc9] sm:$0xff] %v390
      %478 = vst [vmem:[%s459 + $0xd9] sm:$0xff] %v391
      %479 = vst [vmem:[%s459 + $0xe1] sm:$0xff] %v392
      %480 = vst [vmem:[%s459 + $0xf1] sm:$0xff] %v393
      %481 = vst [vmem:[%s459 + $0xf9] sm:$0xff] %v394
      %482 = vst [vmem:[%s459 + $0x109] sm:$0xff] %v395
      %483 = vst [vmem:[%s459 + $0x111] sm:$0xff] %v396
      %484 = vst [vmem:[%s459 + $0x121] sm:$0xff] %v397
      %485 = vst [vmem:[%s459 + $0x129] sm:$0xff] %v398
      %486 = vst [vmem:[%s459 + $0x139] sm:$0xff] %v399
      %487 = vst [vmem:[%s459 + $0x141] sm:$0xff] %v400
      %488 = vst [vmem:[%s459 + $0x151] sm:$0xff] %v401
      %489 = vst [vmem:[%s459 + $0x159] sm:$0xff] %v402
      %490 = vst [vmem:[%s459 + $0x169] sm:$0xff] %v403
      %491 = vst [vmem:[%s459 + $0x171] sm:$0xff] %v404
      %v492 = vld [vmem:[#allocation2] sm:$0xff]
      %v493 = vld [vmem:[#allocation2 + $0x8] sm:$0xff]
      %v494 = vld [vmem:[#allocation2 + $0x18] sm:$0xff]
      %v495 = vld [vmem:[#allocation2 + $0x20] sm:$0xff]
      %v496 = vld [vmem:[#allocation2 + $0x30] sm:$0xff]
      %v497 = vld [vmem:[#allocation2 + $0x38] sm:$0xff]
      %v498 = vld [vmem:[#allocation2 + $0x48] sm:$0xff]
      %v499 = vld [vmem:[#allocation2 + $0x50] sm:$0xff]
      %v500 = vld [vmem:[#allocation2 + $0x60] sm:$0xff]
      %v501 = vld [vmem:[#allocation2 + $0x68] sm:$0xff]
      %v502 = vld [vmem:[#allocation2 + $0x78] sm:$0xff]
      %v503 = vld [vmem:[#allocation2 + $0x80] sm:$0xff]
      %v504 = vld [vmem:[#allocation2 + $0x90] sm:$0xff]
      %v505 = vld [vmem:[#allocation2 + $0x98] sm:$0xff]
      %v506 = vld [vmem:[#allocation2 + $0xa8] sm:$0xff]
      %v507 = vld [vmem:[#allocation2 + $0xb0] sm:$0xff]
      %v508 = vld [vmem:[#allocation2 + $0xc0] sm:$0xff]
      %v509 = vld [vmem:[#allocation2 + $0xc8] sm:$0xff]
      %v510 = vld [vmem:[#allocation2 + $0xd8] sm:$0xff]
      %v511 = vld [vmem:[#allocation2 + $0xe0] sm:$0xff]
      %v512 = vld [vmem:[#allocation2 + $0xf0] sm:$0xff]
      %v513 = vld [vmem:[#allocation2 + $0xf8] sm:$0xff]
      %v514 = vld [vmem:[#allocation2 + $0x108] sm:$0xff]
      %v515 = vld [vmem:[#allocation2 + $0x110] sm:$0xff]
      %v516 = vld [vmem:[#allocation2 + $0x120] sm:$0xff]
      %v517 = vld [vmem:[#allocation2 + $0x128] sm:$0xff]
      %v518 = vld [vmem:[#allocation2 + $0x138] sm:$0xff]
      %v519 = vld [vmem:[#allocation2 + $0x140] sm:$0xff]
      %v520 = vld [vmem:[#allocation2 + $0x150] sm:$0xff]
      %v521 = vld [vmem:[#allocation2 + $0x158] sm:$0xff]
      %v522 = vld [vmem:[#allocation2 + $0x168] sm:$0xff]
      %v523 = vld [vmem:[#allocation2 + $0x170] sm:$0xff]
      %v524 = vld [vmem:[%s3] sm:$0xff]
      %v525 = vld [vmem:[%s3 + $0x8] sm:$0xff]
      %v526 = vld [vmem:[%s3 + $0x10] sm:$0xff]
      %v527 = vld [vmem:[%s3 + $0x18] sm:$0xff]
      %v528 = vld [vmem:[%s3 + $0x20] sm:$0xff]
      %v529 = vld [vmem:[%s3 + $0x28] sm:$0xff]
      %v530 = vld [vmem:[%s3 + $0x30] sm:$0xff]
      %v531 = vld [vmem:[%s3 + $0x38] sm:$0xff]
      %v532 = vld [vmem:[%s3 + $0x40] sm:$0xff]
      %v533 = vld [vmem:[%s3 + $0x48] sm:$0xff]
      %v534 = vld [vmem:[%s3 + $0x50] sm:$0xff]
      %v535 = vld [vmem:[%s3 + $0x58] sm:$0xff]
      %v536 = vld [vmem:[%s3 + $0x60] sm:$0xff]
      %v537 = vld [vmem:[%s3 + $0x68] sm:$0xff]
      %v538 = vld [vmem:[%s3 + $0x70] sm:$0xff]
      %v539 = vld [vmem:[%s3 + $0x78] sm:$0xff]
      %v540 = vld [vmem:[#allocation2 + $0x1] sm:$0xff]
      %v541 = vld [vmem:[#allocation2 + $0x9] sm:$0xff]
      %v542 = vld [vmem:[#allocation2 + $0x19] sm:$0xff]
      %v543 = vld [vmem:[#allocation2 + $0x21] sm:$0xff]
      %v544 = vld [vmem:[#allocation2 + $0x31] sm:$0xff]
      %v545 = vld [vmem:[#allocation2 + $0x39] sm:$0xff]
      %v546 = vld [vmem:[#allocation2 + $0x49] sm:$0xff]
      %v547 = vld [vmem:[#allocation2 + $0x51] sm:$0xff]
      %v548 = vld [vmem:[#allocation2 + $0x61] sm:$0xff]
      %v549 = vld [vmem:[#allocation2 + $0x69] sm:$0xff]
      %v550 = vld [vmem:[#allocation2 + $0x79] sm:$0xff]
      %v551 = vld [vmem:[#allocation2 + $0x81] sm:$0xff]
      %v552 = vld [vmem:[#allocation2 + $0x91] sm:$0xff]
      %v553 = vld [vmem:[#allocation2 + $0x99] sm:$0xff]
      %v554 = vld [vmem:[#allocation2 + $0xa9] sm:$0xff]
      %v555 = vld [vmem:[#allocation2 + $0xb1] sm:$0xff]
      %v556 = vld [vmem:[#allocation2 + $0xc1] sm:$0xff]
      %v557 = vld [vmem:[#allocation2 + $0xc9] sm:$0xff]
      %v558 = vld [vmem:[#allocation2 + $0xd9] sm:$0xff]
      %v559 = vld [vmem:[#allocation2 + $0xe1] sm:$0xff]
      %v560 = vld [vmem:[#allocation2 + $0xf1] sm:$0xff]
      %v561 = vld [vmem:[#allocation2 + $0xf9] sm:$0xff]
      %v562 = vld [vmem:[#allocation2 + $0x109] sm:$0xff]
      %v563 = vld [vmem:[#allocation2 + $0x111] sm:$0xff]
      %v564 = vld [vmem:[#allocation2 + $0x121] sm:$0xff]
      %v565 = vld [vmem:[#allocation2 + $0x129] sm:$0xff]
      %v566 = vld [vmem:[#allocation2 + $0x139] sm:$0xff]
      %v567 = vld [vmem:[#allocation2 + $0x141] sm:$0xff]
      %v568 = vld [vmem:[#allocation2 + $0x151] sm:$0xff]
      %v569 = vld [vmem:[#allocation2 + $0x159] sm:$0xff]
      %v570 = vld [vmem:[#allocation2 + $0x169] sm:$0xff]
      %v571 = vld [vmem:[#allocation2 + $0x171] sm:$0xff]
      %s572 = scalar_lea.vmem %s3, 128
      %v573 = vld [vmem:[%s572] sm:$0xff]
      %v574 = vld [vmem:[%s572 + $0x8] sm:$0xff]
      %v575 = vld [vmem:[%s572 + $0x10] sm:$0xff]
      %v576 = vld [vmem:[%s572 + $0x18] sm:$0xff]
      %v577 = vld [vmem:[%s572 + $0x20] sm:$0xff]
      %v578 = vld [vmem:[%s572 + $0x28] sm:$0xff]
      %v579 = vld [vmem:[%s572 + $0x30] sm:$0xff]
      %v580 = vld [vmem:[%s572 + $0x38] sm:$0xff]
      %v581 = vld [vmem:[%s572 + $0x40] sm:$0xff]
      %v582 = vld [vmem:[%s572 + $0x48] sm:$0xff]
      %v583 = vld [vmem:[%s572 + $0x50] sm:$0xff]
      %v584 = vld [vmem:[%s572 + $0x58] sm:$0xff]
      %v585 = vld [vmem:[%s572 + $0x60] sm:$0xff]
      %v586 = vld [vmem:[%s572 + $0x68] sm:$0xff]
      %v587 = vld [vmem:[%s572 + $0x70] sm:$0xff]
      %v588 = vld [vmem:[%s572 + $0x78] sm:$0xff]
      %589 = vmatpush.msra.mxu0 %v588
      %590 = vmatpush.msra.mxu0 %v587
      %591 = vmatpush.msra.mxu0 %v586
      %592 = vmatpush.msra.mxu0 %v585
      %593 = vmatpush.msra.mxu0 %v584
      %594 = vmatpush.msra.mxu0 %v583
      %595 = vmatpush.msra.mxu0 %v582
      %596 = vmatpush.msra.mxu0 %v581
      %597 = vmatpush.msra.mxu0 %v580
      %598 = vmatpush.msra.mxu0 %v579
      %599 = vmatpush.msra.mxu0 %v578
      %600 = vmatpush.msra.mxu0 %v577
      %601 = vmatpush.msra.mxu0 %v576
      %602 = vmatpush.msra.mxu0 %v575
      %603 = vmatpush.msra.mxu0 %v574
      %604 = vmatpush.msra.mxu0 %v573
      %605 = vmatmul.f32.gmra.mxu0 %v540
      %v606 = vpop.f32.mrf.mxu0
      %v607 = vadd.f32 0.0, %v606
      %608 = vmatmul.f32.gmra.mxu0 %v541
      %v609 = vpop.f32.mrf.mxu0
      %v610 = vadd.f32 0.0, %v609
      %611 = vmatmul.f32.gmra.mxu0 %v542
      %v612 = vpop.f32.mrf.mxu0
      %v613 = vadd.f32 0.0, %v612
      %614 = vmatmul.f32.gmra.mxu0 %v543
      %v615 = vpop.f32.mrf.mxu0
      %v616 = vadd.f32 0.0, %v615
      %617 = vmatmul.f32.gmra.mxu0 %v544
      %v618 = vpop.f32.mrf.mxu0
      %v619 = vadd.f32 0.0, %v618
      %620 = vmatmul.f32.gmra.mxu0 %v545
      %v621 = vpop.f32.mrf.mxu0
      %v622 = vadd.f32 0.0, %v621
      %623 = vmatmul.f32.gmra.mxu0 %v546
      %v624 = vpop.f32.mrf.mxu0
      %v625 = vadd.f32 0.0, %v624
      %626 = vmatmul.f32.gmra.mxu0 %v547
      %v627 = vpop.f32.mrf.mxu0
      %v628 = vadd.f32 0.0, %v627
      %629 = vmatmul.f32.gmra.mxu0 %v548
      %v630 = vpop.f32.mrf.mxu0
      %v631 = vadd.f32 0.0, %v630
      %632 = vmatmul.f32.gmra.mxu0 %v549
      %v633 = vpop.f32.mrf.mxu0
      %v634 = vadd.f32 0.0, %v633
      %635 = vmatmul.f32.gmra.mxu0 %v550
      %v636 = vpop.f32.mrf.mxu0
      %v637 = vadd.f32 0.0, %v636
      %638 = vmatmul.f32.gmra.mxu0 %v551
      %v639 = vpop.f32.mrf.mxu0
      %v640 = vadd.f32 0.0, %v639
      %641 = vmatmul.f32.gmra.mxu0 %v552
      %v642 = vpop.f32.mrf.mxu0
      %v643 = vadd.f32 0.0, %v642
      %644 = vmatmul.f32.gmra.mxu0 %v553
      %v645 = vpop.f32.mrf.mxu0
      %v646 = vadd.f32 0.0, %v645
      %647 = vmatmul.f32.gmra.mxu0 %v554
      %v648 = vpop.f32.mrf.mxu0
      %v649 = vadd.f32 0.0, %v648
      %650 = vmatmul.f32.gmra.mxu0 %v555
      %v651 = vpop.f32.mrf.mxu0
      %v652 = vadd.f32 0.0, %v651
      %653 = vmatmul.f32.gmra.mxu0 %v556
      %v654 = vpop.f32.mrf.mxu0
      %v655 = vadd.f32 0.0, %v654
      %656 = vmatmul.f32.gmra.mxu0 %v557
      %v657 = vpop.f32.mrf.mxu0
      %v658 = vadd.f32 0.0, %v657
      %659 = vmatmul.f32.gmra.mxu0 %v558
      %v660 = vpop.f32.mrf.mxu0
      %v661 = vadd.f32 0.0, %v660
      %662 = vmatmul.f32.gmra.mxu0 %v559
      %v663 = vpop.f32.mrf.mxu0
      %v664 = vadd.f32 0.0, %v663
      %665 = vmatmul.f32.gmra.mxu0 %v560
      %v666 = vpop.f32.mrf.mxu0
      %v667 = vadd.f32 0.0, %v666
      %668 = vmatmul.f32.gmra.mxu0 %v561
      %v669 = vpop.f32.mrf.mxu0
      %v670 = vadd.f32 0.0, %v669
      %671 = vmatmul.f32.gmra.mxu0 %v562
      %v672 = vpop.f32.mrf.mxu0
      %v673 = vadd.f32 0.0, %v672
      %674 = vmatmul.f32.gmra.mxu0 %v563
      %v675 = vpop.f32.mrf.mxu0
      %v676 = vadd.f32 0.0, %v675
      %677 = vmatmul.f32.gmra.mxu0 %v564
      %v678 = vpop.f32.mrf.mxu0
      %v679 = vadd.f32 0.0, %v678
      %680 = vmatmul.f32.gmra.mxu0 %v565
      %v681 = vpop.f32.mrf.mxu0
      %v682 = vadd.f32 0.0, %v681
      %683 = vmatmul.f32.gmra.mxu0 %v566
      %v684 = vpop.f32.mrf.mxu0
      %v685 = vadd.f32 0.0, %v684
      %686 = vmatmul.f32.gmra.mxu0 %v567
      %v687 = vpop.f32.mrf.mxu0
      %v688 = vadd.f32 0.0, %v687
      %689 = vmatmul.f32.gmra.mxu0 %v568
      %v690 = vpop.f32.mrf.mxu0
      %v691 = vadd.f32 0.0, %v690
      %692 = vmatmul.f32.gmra.mxu0 %v569
      %v693 = vpop.f32.mrf.mxu0
      %v694 = vadd.f32 0.0, %v693
      %695 = vmatmul.f32.gmra.mxu0 %v570
      %v696 = vpop.f32.mrf.mxu0
      %v697 = vadd.f32 0.0, %v696
      %698 = vmatmul.f32.gmra.mxu0 %v571
      %v699 = vpop.f32.mrf.mxu0
      %v700 = vadd.f32 0.0, %v699
      %701 = vdwg.mxu0
      %702 = vmatpush.msra.mxu0 %v539
      %703 = vmatpush.msra.mxu0 %v538
      %704 = vmatpush.msra.mxu0 %v537
      %705 = vmatpush.msra.mxu0 %v536
      %706 = vmatpush.msra.mxu0 %v535
      %707 = vmatpush.msra.mxu0 %v534
      %708 = vmatpush.msra.mxu0 %v533
      %709 = vmatpush.msra.mxu0 %v532
      %710 = vmatpush.msra.mxu0 %v531
      %711 = vmatpush.msra.mxu0 %v530
      %712 = vmatpush.msra.mxu0 %v529
      %713 = vmatpush.msra.mxu0 %v528
      %714 = vmatpush.msra.mxu0 %v527
      %715 = vmatpush.msra.mxu0 %v526
      %716 = vmatpush.msra.mxu0 %v525
      %717 = vmatpush.msra.mxu0 %v524
      %718 = vmatmul.f32.gmra.mxu0 %v492
      %v719 = vpop.f32.mrf.mxu0
      %v720 = vadd.f32 %v607, %v719
      %721 = vmatmul.f32.gmra.mxu0 %v493
      %v722 = vpop.f32.mrf.mxu0
      %v723 = vadd.f32 %v610, %v722
      %724 = vmatmul.f32.gmra.mxu0 %v494
      %v725 = vpop.f32.mrf.mxu0
      %v726 = vadd.f32 %v613, %v725
      %727 = vmatmul.f32.gmra.mxu0 %v495
      %v728 = vpop.f32.mrf.mxu0
      %v729 = vadd.f32 %v616, %v728
      %730 = vmatmul.f32.gmra.mxu0 %v496
      %v731 = vpop.f32.mrf.mxu0
      %v732 = vadd.f32 %v619, %v731
      %733 = vmatmul.f32.gmra.mxu0 %v497
      %v734 = vpop.f32.mrf.mxu0
      %v735 = vadd.f32 %v622, %v734
      %736 = vmatmul.f32.gmra.mxu0 %v498
      %v737 = vpop.f32.mrf.mxu0
      %v738 = vadd.f32 %v625, %v737
      %739 = vmatmul.f32.gmra.mxu0 %v499
      %v740 = vpop.f32.mrf.mxu0
      %v741 = vadd.f32 %v628, %v740
      %742 = vmatmul.f32.gmra.mxu0 %v500
      %v743 = vpop.f32.mrf.mxu0
      %v744 = vadd.f32 %v631, %v743
      %745 = vmatmul.f32.gmra.mxu0 %v501
      %v746 = vpop.f32.mrf.mxu0
      %v747 = vadd.f32 %v634, %v746
      %748 = vmatmul.f32.gmra.mxu0 %v502
      %v749 = vpop.f32.mrf.mxu0
      %v750 = vadd.f32 %v637, %v749
      %751 = vmatmul.f32.gmra.mxu0 %v503
      %v752 = vpop.f32.mrf.mxu0
      %v753 = vadd.f32 %v640, %v752
      %754 = vmatmul.f32.gmra.mxu0 %v504
      %v755 = vpop.f32.mrf.mxu0
      %v756 = vadd.f32 %v643, %v755
      %757 = vmatmul.f32.gmra.mxu0 %v505
      %v758 = vpop.f32.mrf.mxu0
      %v759 = vadd.f32 %v646, %v758
      %760 = vmatmul.f32.gmra.mxu0 %v506
      %v761 = vpop.f32.mrf.mxu0
      %v762 = vadd.f32 %v649, %v761
      %763 = vmatmul.f32.gmra.mxu0 %v507
      %v764 = vpop.f32.mrf.mxu0
      %v765 = vadd.f32 %v652, %v764
      %766 = vmatmul.f32.gmra.mxu0 %v508
      %v767 = vpop.f32.mrf.mxu0
      %v768 = vadd.f32 %v655, %v767
      %769 = vmatmul.f32.gmra.mxu0 %v509
      %v770 = vpop.f32.mrf.mxu0
      %v771 = vadd.f32 %v658, %v770
      %772 = vmatmul.f32.gmra.mxu0 %v510
      %v773 = vpop.f32.mrf.mxu0
      %v774 = vadd.f32 %v661, %v773
      %775 = vmatmul.f32.gmra.mxu0 %v511
      %v776 = vpop.f32.mrf.mxu0
      %v777 = vadd.f32 %v664, %v776
      %778 = vmatmul.f32.gmra.mxu0 %v512
      %v779 = vpop.f32.mrf.mxu0
      %v780 = vadd.f32 %v667, %v779
      %781 = vmatmul.f32.gmra.mxu0 %v513
      %v782 = vpop.f32.mrf.mxu0
      %v783 = vadd.f32 %v670, %v782
      %784 = vmatmul.f32.gmra.mxu0 %v514
      %v785 = vpop.f32.mrf.mxu0
      %v786 = vadd.f32 %v673, %v785
      %787 = vmatmul.f32.gmra.mxu0 %v515
      %v788 = vpop.f32.mrf.mxu0
      %v789 = vadd.f32 %v676, %v788
      %790 = vmatmul.f32.gmra.mxu0 %v516
      %v791 = vpop.f32.mrf.mxu0
      %v792 = vadd.f32 %v679, %v791
      %793 = vmatmul.f32.gmra.mxu0 %v517
      %v794 = vpop.f32.mrf.mxu0
      %v795 = vadd.f32 %v682, %v794
      %796 = vmatmul.f32.gmra.mxu0 %v518
      %v797 = vpop.f32.mrf.mxu0
      %v798 = vadd.f32 %v685, %v797
      %799 = vmatmul.f32.gmra.mxu0 %v519
      %v800 = vpop.f32.mrf.mxu0
      %v801 = vadd.f32 %v688, %v800
      %802 = vmatmul.f32.gmra.mxu0 %v520
      %v803 = vpop.f32.mrf.mxu0
      %v804 = vadd.f32 %v691, %v803
      %805 = vmatmul.f32.gmra.mxu0 %v521
      %v806 = vpop.f32.mrf.mxu0
      %v807 = vadd.f32 %v694, %v806
      %808 = vmatmul.f32.gmra.mxu0 %v522
      %v809 = vpop.f32.mrf.mxu0
      %v810 = vadd.f32 %v697, %v809
      %811 = vmatmul.f32.gmra.mxu0 %v523
      %v812 = vpop.f32.mrf.mxu0
      %v813 = vadd.f32 %v700, %v812
      %814 = vdwg.mxu0
      %v815 = vld [vmem:[#allocation2 + $0x2] sm:$0xff]
      %v816 = vld [vmem:[#allocation2 + $0xa] sm:$0xff]
      %v817 = vld [vmem:[#allocation2 + $0x1a] sm:$0xff]
      %v818 = vld [vmem:[#allocation2 + $0x22] sm:$0xff]
      %v819 = vld [vmem:[#allocation2 + $0x32] sm:$0xff]
      %v820 = vld [vmem:[#allocation2 + $0x3a] sm:$0xff]
      %v821 = vld [vmem:[#allocation2 + $0x4a] sm:$0xff]
      %v822 = vld [vmem:[#allocation2 + $0x52] sm:$0xff]
      %v823 = vld [vmem:[#allocation2 + $0x62] sm:$0xff]
      %v824 = vld [vmem:[#allocation2 + $0x6a] sm:$0xff]
      %v825 = vld [vmem:[#allocation2 + $0x7a] sm:$0xff]
      %v826 = vld [vmem:[#allocation2 + $0x82] sm:$0xff]
      %v827 = vld [vmem:[#allocation2 + $0x92] sm:$0xff]
      %v828 = vld [vmem:[#allocation2 + $0x9a] sm:$0xff]
      %v829 = vld [vmem:[#allocation2 + $0xaa] sm:$0xff]
      %v830 = vld [vmem:[#allocation2 + $0xb2] sm:$0xff]
      %v831 = vld [vmem:[#allocation2 + $0xc2] sm:$0xff]
      %v832 = vld [vmem:[#allocation2 + $0xca] sm:$0xff]
      %v833 = vld [vmem:[#allocation2 + $0xda] sm:$0xff]
      %v834 = vld [vmem:[#allocation2 + $0xe2] sm:$0xff]
      %v835 = vld [vmem:[#allocation2 + $0xf2] sm:$0xff]
      %v836 = vld [vmem:[#allocation2 + $0xfa] sm:$0xff]
      %v837 = vld [vmem:[#allocation2 + $0x10a] sm:$0xff]
      %v838 = vld [vmem:[#allocation2 + $0x112] sm:$0xff]
      %v839 = vld [vmem:[#allocation2 + $0x122] sm:$0xff]
      %v840 = vld [vmem:[#allocation2 + $0x12a] sm:$0xff]
      %v841 = vld [vmem:[#allocation2 + $0x13a] sm:$0xff]
      %v842 = vld [vmem:[#allocation2 + $0x142] sm:$0xff]
      %v843 = vld [vmem:[#allocation2 + $0x152] sm:$0xff]
      %v844 = vld [vmem:[#allocation2 + $0x15a] sm:$0xff]
      %v845 = vld [vmem:[#allocation2 + $0x16a] sm:$0xff]
      %v846 = vld [vmem:[#allocation2 + $0x172] sm:$0xff]
      %s847 = scalar_lea.vmem %s3, 256
      %v848 = vld [vmem:[%s847] sm:$0xff]
      %v849 = vld [vmem:[%s847 + $0x8] sm:$0xff]
      %v850 = vld [vmem:[%s847 + $0x10] sm:$0xff]
      %v851 = vld [vmem:[%s847 + $0x18] sm:$0xff]
      %v852 = vld [vmem:[%s847 + $0x20] sm:$0xff]
      %v853 = vld [vmem:[%s847 + $0x28] sm:$0xff]
      %v854 = vld [vmem:[%s847 + $0x30] sm:$0xff]
      %v855 = vld [vmem:[%s847 + $0x38] sm:$0xff]
      %v856 = vld [vmem:[%s847 + $0x40] sm:$0xff]
      %v857 = vld [vmem:[%s847 + $0x48] sm:$0xff]
      %v858 = vld [vmem:[%s847 + $0x50] sm:$0xff]
      %v859 = vld [vmem:[%s847 + $0x58] sm:$0xff]
      %v860 = vld [vmem:[%s847 + $0x60] sm:$0xff]
      %v861 = vld [vmem:[%s847 + $0x68] sm:$0xff]
      %v862 = vld [vmem:[%s847 + $0x70] sm:$0xff]
      %v863 = vld [vmem:[%s847 + $0x78] sm:$0xff]
      %864 = vmatpush.msra.mxu0 %v863
      %865 = vmatpush.msra.mxu0 %v862
      %866 = vmatpush.msra.mxu0 %v861
      %867 = vmatpush.msra.mxu0 %v860
      %868 = vmatpush.msra.mxu0 %v859
      %869 = vmatpush.msra.mxu0 %v858
      %870 = vmatpush.msra.mxu0 %v857
      %871 = vmatpush.msra.mxu0 %v856
      %872 = vmatpush.msra.mxu0 %v855
      %873 = vmatpush.msra.mxu0 %v854
      %874 = vmatpush.msra.mxu0 %v853
      %875 = vmatpush.msra.mxu0 %v852
      %876 = vmatpush.msra.mxu0 %v851
      %877 = vmatpush.msra.mxu0 %v850
      %878 = vmatpush.msra.mxu0 %v849
      %879 = vmatpush.msra.mxu0 %v848
      %880 = vmatmul.f32.gmra.mxu0 %v815
      %v881 = vpop.f32.mrf.mxu0
      %v882 = vadd.f32 0.0, %v881
      %883 = vmatmul.f32.gmra.mxu0 %v816
      %v884 = vpop.f32.mrf.mxu0
      %v885 = vadd.f32 0.0, %v884
      %886 = vmatmul.f32.gmra.mxu0 %v817
      %v887 = vpop.f32.mrf.mxu0
      %v888 = vadd.f32 0.0, %v887
      %889 = vmatmul.f32.gmra.mxu0 %v818
      %v890 = vpop.f32.mrf.mxu0
      %v891 = vadd.f32 0.0, %v890
      %892 = vmatmul.f32.gmra.mxu0 %v819
      %v893 = vpop.f32.mrf.mxu0
      %v894 = vadd.f32 0.0, %v893
      %895 = vmatmul.f32.gmra.mxu0 %v820
      %v896 = vpop.f32.mrf.mxu0
      %v897 = vadd.f32 0.0, %v896
      %898 = vmatmul.f32.gmra.mxu0 %v821
      %v899 = vpop.f32.mrf.mxu0
      %v900 = vadd.f32 0.0, %v899
      %901 = vmatmul.f32.gmra.mxu0 %v822
      %v902 = vpop.f32.mrf.mxu0
      %v903 = vadd.f32 0.0, %v902
      %904 = vmatmul.f32.gmra.mxu0 %v823
      %v905 = vpop.f32.mrf.mxu0
      %v906 = vadd.f32 0.0, %v905
      %907 = vmatmul.f32.gmra.mxu0 %v824
      %v908 = vpop.f32.mrf.mxu0
      %v909 = vadd.f32 0.0, %v908
      %910 = vmatmul.f32.gmra.mxu0 %v825
      %v911 = vpop.f32.mrf.mxu0
      %v912 = vadd.f32 0.0, %v911
      %913 = vmatmul.f32.gmra.mxu0 %v826
      %v914 = vpop.f32.mrf.mxu0
      %v915 = vadd.f32 0.0, %v914
      %916 = vmatmul.f32.gmra.mxu0 %v827
      %v917 = vpop.f32.mrf.mxu0
      %v918 = vadd.f32 0.0, %v917
      %919 = vmatmul.f32.gmra.mxu0 %v828
      %v920 = vpop.f32.mrf.mxu0
      %v921 = vadd.f32 0.0, %v920
      %922 = vmatmul.f32.gmra.mxu0 %v829
      %v923 = vpop.f32.mrf.mxu0
      %v924 = vadd.f32 0.0, %v923
      %925 = vmatmul.f32.gmra.mxu0 %v830
      %v926 = vpop.f32.mrf.mxu0
      %v927 = vadd.f32 0.0, %v926
      %928 = vmatmul.f32.gmra.mxu0 %v831
      %v929 = vpop.f32.mrf.mxu0
      %v930 = vadd.f32 0.0, %v929
      %931 = vmatmul.f32.gmra.mxu0 %v832
      %v932 = vpop.f32.mrf.mxu0
      %v933 = vadd.f32 0.0, %v932
      %934 = vmatmul.f32.gmra.mxu0 %v833
      %v935 = vpop.f32.mrf.mxu0
      %v936 = vadd.f32 0.0, %v935
      %937 = vmatmul.f32.gmra.mxu0 %v834
      %v938 = vpop.f32.mrf.mxu0
      %v939 = vadd.f32 0.0, %v938
      %940 = vmatmul.f32.gmra.mxu0 %v835
      %v941 = vpop.f32.mrf.mxu0
      %v942 = vadd.f32 0.0, %v941
      %943 = vmatmul.f32.gmra.mxu0 %v836
      %v944 = vpop.f32.mrf.mxu0
      %v945 = vadd.f32 0.0, %v944
      %946 = vmatmul.f32.gmra.mxu0 %v837
      %v947 = vpop.f32.mrf.mxu0
      %v948 = vadd.f32 0.0, %v947
      %949 = vmatmul.f32.gmra.mxu0 %v838
      %v950 = vpop.f32.mrf.mxu0
      %v951 = vadd.f32 0.0, %v950
      %952 = vmatmul.f32.gmra.mxu0 %v839
      %v953 = vpop.f32.mrf.mxu0
      %v954 = vadd.f32 0.0, %v953
      %955 = vmatmul.f32.gmra.mxu0 %v840
      %v956 = vpop.f32.mrf.mxu0
      %v957 = vadd.f32 0.0, %v956
      %958 = vmatmul.f32.gmra.mxu0 %v841
      %v959 = vpop.f32.mrf.mxu0
      %v960 = vadd.f32 0.0, %v959
      %961 = vmatmul.f32.gmra.mxu0 %v842
      %v962 = vpop.f32.mrf.mxu0
      %v963 = vadd.f32 0.0, %v962
      %964 = vmatmul.f32.gmra.mxu0 %v843
      %v965 = vpop.f32.mrf.mxu0
      %v966 = vadd.f32 0.0, %v965
      %967 = vmatmul.f32.gmra.mxu0 %v844
      %v968 = vpop.f32.mrf.mxu0
      %v969 = vadd.f32 0.0, %v968
      %970 = vmatmul.f32.gmra.mxu0 %v845
      %v971 = vpop.f32.mrf.mxu0
      %v972 = vadd.f32 0.0, %v971
      %973 = vmatmul.f32.gmra.mxu0 %v846
      %v974 = vpop.f32.mrf.mxu0
      %v975 = vadd.f32 0.0, %v974
      %976 = vdwg.mxu0
      %v977 = vadd.f32 %v720, %v882
      %v978 = vadd.f32 %v723, %v885
      %v979 = vadd.f32 %v726, %v888
      %v980 = vadd.f32 %v729, %v891
      %v981 = vadd.f32 %v732, %v894
      %v982 = vadd.f32 %v735, %v897
      %v983 = vadd.f32 %v738, %v900
      %v984 = vadd.f32 %v741, %v903
      %v985 = vadd.f32 %v744, %v906
      %v986 = vadd.f32 %v747, %v909
      %v987 = vadd.f32 %v750, %v912
      %v988 = vadd.f32 %v753, %v915
      %v989 = vadd.f32 %v756, %v918
      %v990 = vadd.f32 %v759, %v921
      %v991 = vadd.f32 %v762, %v924
      %v992 = vadd.f32 %v765, %v927
      %v993 = vadd.f32 %v768, %v930
      %v994 = vadd.f32 %v771, %v933
      %v995 = vadd.f32 %v774, %v936
      %v996 = vadd.f32 %v777, %v939
      %v997 = vadd.f32 %v780, %v942
      %v998 = vadd.f32 %v783, %v945
      %v999 = vadd.f32 %v786, %v948
      %v1000 = vadd.f32 %v789, %v951
      %v1001 = vadd.f32 %v792, %v954
      %v1002 = vadd.f32 %v795, %v957
      %v1003 = vadd.f32 %v798, %v960
      %v1004 = vadd.f32 %v801, %v963
      %v1005 = vadd.f32 %v804, %v966
      %v1006 = vadd.f32 %v807, %v969
      %v1007 = vadd.f32 %v810, %v972
      %v1008 = vadd.f32 %v813, %v975
      %v1009 = vld [vmem:[%s459] sm:$0xff]
      %v1010 = vld [vmem:[%s459 + $0x8] sm:$0xff]
      %v1011 = vld [vmem:[%s459 + $0x18] sm:$0xff]
      %v1012 = vld [vmem:[%s459 + $0x20] sm:$0xff]
      %v1013 = vld [vmem:[%s459 + $0x30] sm:$0xff]
      %v1014 = vld [vmem:[%s459 + $0x38] sm:$0xff]
      %v1015 = vld [vmem:[%s459 + $0x48] sm:$0xff]
      %v1016 = vld [vmem:[%s459 + $0x50] sm:$0xff]
      %v1017 = vld [vmem:[%s459 + $0x60] sm:$0xff]
      %v1018 = vld [vmem:[%s459 + $0x68] sm:$0xff]
      %v1019 = vld [vmem:[%s459 + $0x78] sm:$0xff]
      %v1020 = vld [vmem:[%s459 + $0x80] sm:$0xff]
      %v1021 = vld [vmem:[%s459 + $0x90] sm:$0xff]
      %v1022 = vld [vmem:[%s459 + $0x98] sm:$0xff]
      %v1023 = vld [vmem:[%s459 + $0xa8] sm:$0xff]
      %v1024 = vld [vmem:[%s459 + $0xb0] sm:$0xff]
      %v1025 = vld [vmem:[%s459 + $0xc0] sm:$0xff]
      %v1026 = vld [vmem:[%s459 + $0xc8] sm:$0xff]
      %v1027 = vld [vmem:[%s459 + $0xd8] sm:$0xff]
      %v1028 = vld [vmem:[%s459 + $0xe0] sm:$0xff]
      %v1029 = vld [vmem:[%s459 + $0xf0] sm:$0xff]
      %v1030 = vld [vmem:[%s459 + $0xf8] sm:$0xff]
      %v1031 = vld [vmem:[%s459 + $0x108] sm:$0xff]
      %v1032 = vld [vmem:[%s459 + $0x110] sm:$0xff]
      %v1033 = vld [vmem:[%s459 + $0x120] sm:$0xff]
      %v1034 = vld [vmem:[%s459 + $0x128] sm:$0xff]
      %v1035 = vld [vmem:[%s459 + $0x138] sm:$0xff]
      %v1036 = vld [vmem:[%s459 + $0x140] sm:$0xff]
      %v1037 = vld [vmem:[%s459 + $0x150] sm:$0xff]
      %v1038 = vld [vmem:[%s459 + $0x158] sm:$0xff]
      %v1039 = vld [vmem:[%s459 + $0x168] sm:$0xff]
      %v1040 = vld [vmem:[%s459 + $0x170] sm:$0xff]
      %s1041 = scalar_lea.vmem %s3, 384
      %v1042 = vld [vmem:[%s1041] sm:$0xff]
      %v1043 = vld [vmem:[%s1041 + $0x8] sm:$0xff]
      %v1044 = vld [vmem:[%s1041 + $0x10] sm:$0xff]
      %v1045 = vld [vmem:[%s1041 + $0x18] sm:$0xff]
      %v1046 = vld [vmem:[%s1041 + $0x20] sm:$0xff]
      %v1047 = vld [vmem:[%s1041 + $0x28] sm:$0xff]
      %v1048 = vld [vmem:[%s1041 + $0x30] sm:$0xff]
      %v1049 = vld [vmem:[%s1041 + $0x38] sm:$0xff]
      %v1050 = vld [vmem:[%s1041 + $0x40] sm:$0xff]
      %v1051 = vld [vmem:[%s1041 + $0x48] sm:$0xff]
      %v1052 = vld [vmem:[%s1041 + $0x50] sm:$0xff]
      %v1053 = vld [vmem:[%s1041 + $0x58] sm:$0xff]
      %v1054 = vld [vmem:[%s1041 + $0x60] sm:$0xff]
      %v1055 = vld [vmem:[%s1041 + $0x68] sm:$0xff]
      %v1056 = vld [vmem:[%s1041 + $0x70] sm:$0xff]
      %v1057 = vld [vmem:[%s1041 + $0x78] sm:$0xff]
      %1058 = vmatpush.msra.mxu0 %v1057
      %1059 = vmatpush.msra.mxu0 %v1056
      %1060 = vmatpush.msra.mxu0 %v1055
      %1061 = vmatpush.msra.mxu0 %v1054
      %1062 = vmatpush.msra.mxu0 %v1053
      %1063 = vmatpush.msra.mxu0 %v1052
      %1064 = vmatpush.msra.mxu0 %v1051
      %1065 = vmatpush.msra.mxu0 %v1050
      %1066 = vmatpush.msra.mxu0 %v1049
      %1067 = vmatpush.msra.mxu0 %v1048
      %1068 = vmatpush.msra.mxu0 %v1047
      %1069 = vmatpush.msra.mxu0 %v1046
      %1070 = vmatpush.msra.mxu0 %v1045
      %1071 = vmatpush.msra.mxu0 %v1044
      %1072 = vmatpush.msra.mxu0 %v1043
      %1073 = vmatpush.msra.mxu0 %v1042
      %1074 = vmatmul.f32.gmra.mxu0 %v1009
      %v1075 = vpop.f32.mrf.mxu0
      %v1076 = vadd.f32 0.0, %v1075
      %1077 = vmatmul.f32.gmra.mxu0 %v1010
      %v1078 = vpop.f32.mrf.mxu0
      %v1079 = vadd.f32 0.0, %v1078
      %1080 = vmatmul.f32.gmra.mxu0 %v1011
      %v1081 = vpop.f32.mrf.mxu0
      %v1082 = vadd.f32 0.0, %v1081
      %1083 = vmatmul.f32.gmra.mxu0 %v1012
      %v1084 = vpop.f32.mrf.mxu0
      %v1085 = vadd.f32 0.0, %v1084
      %1086 = vmatmul.f32.gmra.mxu0 %v1013
      %v1087 = vpop.f32.mrf.mxu0
      %v1088 = vadd.f32 0.0, %v1087
      %1089 = vmatmul.f32.gmra.mxu0 %v1014
      %v1090 = vpop.f32.mrf.mxu0
      %v1091 = vadd.f32 0.0, %v1090
      %1092 = vmatmul.f32.gmra.mxu0 %v1015
      %v1093 = vpop.f32.mrf.mxu0
      %v1094 = vadd.f32 0.0, %v1093
      %1095 = vmatmul.f32.gmra.mxu0 %v1016
      %v1096 = vpop.f32.mrf.mxu0
      %v1097 = vadd.f32 0.0, %v1096
      %1098 = vmatmul.f32.gmra.mxu0 %v1017
      %v1099 = vpop.f32.mrf.mxu0
      %v1100 = vadd.f32 0.0, %v1099
      %1101 = vmatmul.f32.gmra.mxu0 %v1018
      %v1102 = vpop.f32.mrf.mxu0
      %v1103 = vadd.f32 0.0, %v1102
      %1104 = vmatmul.f32.gmra.mxu0 %v1019
      %v1105 = vpop.f32.mrf.mxu0
      %v1106 = vadd.f32 0.0, %v1105
      %1107 = vmatmul.f32.gmra.mxu0 %v1020
      %v1108 = vpop.f32.mrf.mxu0
      %v1109 = vadd.f32 0.0, %v1108
      %1110 = vmatmul.f32.gmra.mxu0 %v1021
      %v1111 = vpop.f32.mrf.mxu0
      %v1112 = vadd.f32 0.0, %v1111
      %1113 = vmatmul.f32.gmra.mxu0 %v1022
      %v1114 = vpop.f32.mrf.mxu0
      %v1115 = vadd.f32 0.0, %v1114
      %1116 = vmatmul.f32.gmra.mxu0 %v1023
      %v1117 = vpop.f32.mrf.mxu0
      %v1118 = vadd.f32 0.0, %v1117
      %1119 = vmatmul.f32.gmra.mxu0 %v1024
      %v1120 = vpop.f32.mrf.mxu0
      %v1121 = vadd.f32 0.0, %v1120
      %1122 = vmatmul.f32.gmra.mxu0 %v1025
      %v1123 = vpop.f32.mrf.mxu0
      %v1124 = vadd.f32 0.0, %v1123
      %1125 = vmatmul.f32.gmra.mxu0 %v1026
      %v1126 = vpop.f32.mrf.mxu0
      %v1127 = vadd.f32 0.0, %v1126
      %1128 = vmatmul.f32.gmra.mxu0 %v1027
      %v1129 = vpop.f32.mrf.mxu0
      %v1130 = vadd.f32 0.0, %v1129
      %1131 = vmatmul.f32.gmra.mxu0 %v1028
      %v1132 = vpop.f32.mrf.mxu0
      %v1133 = vadd.f32 0.0, %v1132
      %1134 = vmatmul.f32.gmra.mxu0 %v1029
      %v1135 = vpop.f32.mrf.mxu0
      %v1136 = vadd.f32 0.0, %v1135
      %1137 = vmatmul.f32.gmra.mxu0 %v1030
      %v1138 = vpop.f32.mrf.mxu0
      %v1139 = vadd.f32 0.0, %v1138
      %1140 = vmatmul.f32.gmra.mxu0 %v1031
      %v1141 = vpop.f32.mrf.mxu0
      %v1142 = vadd.f32 0.0, %v1141
      %1143 = vmatmul.f32.gmra.mxu0 %v1032
      %v1144 = vpop.f32.mrf.mxu0
      %v1145 = vadd.f32 0.0, %v1144
      %1146 = vmatmul.f32.gmra.mxu0 %v1033
      %v1147 = vpop.f32.mrf.mxu0
      %v1148 = vadd.f32 0.0, %v1147
      %1149 = vmatmul.f32.gmra.mxu0 %v1034
      %v1150 = vpop.f32.mrf.mxu0
      %v1151 = vadd.f32 0.0, %v1150
      %1152 = vmatmul.f32.gmra.mxu0 %v1035
      %v1153 = vpop.f32.mrf.mxu0
      %v1154 = vadd.f32 0.0, %v1153
      %1155 = vmatmul.f32.gmra.mxu0 %v1036
      %v1156 = vpop.f32.mrf.mxu0
      %v1157 = vadd.f32 0.0, %v1156
      %1158 = vmatmul.f32.gmra.mxu0 %v1037
      %v1159 = vpop.f32.mrf.mxu0
      %v1160 = vadd.f32 0.0, %v1159
      %1161 = vmatmul.f32.gmra.mxu0 %v1038
      %v1162 = vpop.f32.mrf.mxu0
      %v1163 = vadd.f32 0.0, %v1162
      %1164 = vmatmul.f32.gmra.mxu0 %v1039
      %v1165 = vpop.f32.mrf.mxu0
      %v1166 = vadd.f32 0.0, %v1165
      %1167 = vmatmul.f32.gmra.mxu0 %v1040
      %v1168 = vpop.f32.mrf.mxu0
      %v1169 = vadd.f32 0.0, %v1168
      %1170 = vdwg.mxu0
      %v1171 = vadd.f32 %v977, %v1076
      %v1172 = vadd.f32 %v978, %v1079
      %v1173 = vadd.f32 %v979, %v1082
      %v1174 = vadd.f32 %v980, %v1085
      %v1175 = vadd.f32 %v981, %v1088
      %v1176 = vadd.f32 %v982, %v1091
      %v1177 = vadd.f32 %v983, %v1094
      %v1178 = vadd.f32 %v984, %v1097
      %v1179 = vadd.f32 %v985, %v1100
      %v1180 = vadd.f32 %v986, %v1103
      %v1181 = vadd.f32 %v987, %v1106
      %v1182 = vadd.f32 %v988, %v1109
      %v1183 = vadd.f32 %v989, %v1112
      %v1184 = vadd.f32 %v990, %v1115
      %v1185 = vadd.f32 %v991, %v1118
      %v1186 = vadd.f32 %v992, %v1121
      %v1187 = vadd.f32 %v993, %v1124
      %v1188 = vadd.f32 %v994, %v1127
      %v1189 = vadd.f32 %v995, %v1130
      %v1190 = vadd.f32 %v996, %v1133
      %v1191 = vadd.f32 %v997, %v1136
      %v1192 = vadd.f32 %v998, %v1139
      %v1193 = vadd.f32 %v999, %v1142
      %v1194 = vadd.f32 %v1000, %v1145
      %v1195 = vadd.f32 %v1001, %v1148
      %v1196 = vadd.f32 %v1002, %v1151
      %v1197 = vadd.f32 %v1003, %v1154
      %v1198 = vadd.f32 %v1004, %v1157
      %v1199 = vadd.f32 %v1005, %v1160
      %v1200 = vadd.f32 %v1006, %v1163
      %v1201 = vadd.f32 %v1007, %v1166
      %v1202 = vadd.f32 %v1008, %v1169
      %v1203 = vld [vmem:[%s459 + $0x1] sm:$0xff]
      %v1204 = vld [vmem:[%s459 + $0x9] sm:$0xff]
      %v1205 = vld [vmem:[%s459 + $0x19] sm:$0xff]
      %v1206 = vld [vmem:[%s459 + $0x21] sm:$0xff]
      %v1207 = vld [vmem:[%s459 + $0x31] sm:$0xff]
      %v1208 = vld [vmem:[%s459 + $0x39] sm:$0xff]
      %v1209 = vld [vmem:[%s459 + $0x49] sm:$0xff]
      %v1210 = vld [vmem:[%s459 + $0x51] sm:$0xff]
      %v1211 = vld [vmem:[%s459 + $0x61] sm:$0xff]
      %v1212 = vld [vmem:[%s459 + $0x69] sm:$0xff]
      %v1213 = vld [vmem:[%s459 + $0x79] sm:$0xff]
      %v1214 = vld [vmem:[%s459 + $0x81] sm:$0xff]
      %v1215 = vld [vmem:[%s459 + $0x91] sm:$0xff]
      %v1216 = vld [vmem:[%s459 + $0x99] sm:$0xff]
      %v1217 = vld [vmem:[%s459 + $0xa9] sm:$0xff]
      %v1218 = vld [vmem:[%s459 + $0xb1] sm:$0xff]
      %v1219 = vld [vmem:[%s459 + $0xc1] sm:$0xff]
      %v1220 = vld [vmem:[%s459 + $0xc9] sm:$0xff]
      %v1221 = vld [vmem:[%s459 + $0xd9] sm:$0xff]
      %v1222 = vld [vmem:[%s459 + $0xe1] sm:$0xff]
      %v1223 = vld [vmem:[%s459 + $0xf1] sm:$0xff]
      %v1224 = vld [vmem:[%s459 + $0xf9] sm:$0xff]
      %v1225 = vld [vmem:[%s459 + $0x109] sm:$0xff]
      %v1226 = vld [vmem:[%s459 + $0x111] sm:$0xff]
      %v1227 = vld [vmem:[%s459 + $0x121] sm:$0xff]
      %v1228 = vld [vmem:[%s459 + $0x129] sm:$0xff]
      %v1229 = vld [vmem:[%s459 + $0x139] sm:$0xff]
      %v1230 = vld [vmem:[%s459 + $0x141] sm:$0xff]
      %v1231 = vld [vmem:[%s459 + $0x151] sm:$0xff]
      %v1232 = vld [vmem:[%s459 + $0x159] sm:$0xff]
      %v1233 = vld [vmem:[%s459 + $0x169] sm:$0xff]
      %v1234 = vld [vmem:[%s459 + $0x171] sm:$0xff]
      %s1235 = scalar_lea.vmem %s3, 512
      %v1236 = vld [vmem:[%s1235] sm:$0xff]
      %v1237 = vld [vmem:[%s1235 + $0x8] sm:$0xff]
      %v1238 = vld [vmem:[%s1235 + $0x10] sm:$0xff]
      %v1239 = vld [vmem:[%s1235 + $0x18] sm:$0xff]
      %v1240 = vld [vmem:[%s1235 + $0x20] sm:$0xff]
      %v1241 = vld [vmem:[%s1235 + $0x28] sm:$0xff]
      %v1242 = vld [vmem:[%s1235 + $0x30] sm:$0xff]
      %v1243 = vld [vmem:[%s1235 + $0x38] sm:$0xff]
      %v1244 = vld [vmem:[%s1235 + $0x40] sm:$0xff]
      %v1245 = vld [vmem:[%s1235 + $0x48] sm:$0xff]
      %v1246 = vld [vmem:[%s1235 + $0x50] sm:$0xff]
      %v1247 = vld [vmem:[%s1235 + $0x58] sm:$0xff]
      %v1248 = vld [vmem:[%s1235 + $0x60] sm:$0xff]
      %v1249 = vld [vmem:[%s1235 + $0x68] sm:$0xff]
      %v1250 = vld [vmem:[%s1235 + $0x70] sm:$0xff]
      %v1251 = vld [vmem:[%s1235 + $0x78] sm:$0xff]
      %1252 = vmatpush.msra.mxu0 %v1251
      %1253 = vmatpush.msra.mxu0 %v1250
      %1254 = vmatpush.msra.mxu0 %v1249
      %1255 = vmatpush.msra.mxu0 %v1248
      %1256 = vmatpush.msra.mxu0 %v1247
      %1257 = vmatpush.msra.mxu0 %v1246
      %1258 = vmatpush.msra.mxu0 %v1245
      %1259 = vmatpush.msra.mxu0 %v1244
      %1260 = vmatpush.msra.mxu0 %v1243
      %1261 = vmatpush.msra.mxu0 %v1242
      %1262 = vmatpush.msra.mxu0 %v1241
      %1263 = vmatpush.msra.mxu0 %v1240
      %1264 = vmatpush.msra.mxu0 %v1239
      %1265 = vmatpush.msra.mxu0 %v1238
      %1266 = vmatpush.msra.mxu0 %v1237
      %1267 = vmatpush.msra.mxu0 %v1236
      %1268 = vmatmul.f32.gmra.mxu0 %v1203
      %v1269 = vpop.f32.mrf.mxu0
      %v1270 = vadd.f32 0.0, %v1269
      %1271 = vmatmul.f32.gmra.mxu0 %v1204
      %v1272 = vpop.f32.mrf.mxu0
      %v1273 = vadd.f32 0.0, %v1272
      %1274 = vmatmul.f32.gmra.mxu0 %v1205
      %v1275 = vpop.f32.mrf.mxu0
      %v1276 = vadd.f32 0.0, %v1275
      %1277 = vmatmul.f32.gmra.mxu0 %v1206
      %v1278 = vpop.f32.mrf.mxu0
      %v1279 = vadd.f32 0.0, %v1278
      %1280 = vmatmul.f32.gmra.mxu0 %v1207
      %v1281 = vpop.f32.mrf.mxu0
      %v1282 = vadd.f32 0.0, %v1281
      %1283 = vmatmul.f32.gmra.mxu0 %v1208
      %v1284 = vpop.f32.mrf.mxu0
      %v1285 = vadd.f32 0.0, %v1284
      %1286 = vmatmul.f32.gmra.mxu0 %v1209
      %v1287 = vpop.f32.mrf.mxu0
      %v1288 = vadd.f32 0.0, %v1287
      %1289 = vmatmul.f32.gmra.mxu0 %v1210
      %v1290 = vpop.f32.mrf.mxu0
      %v1291 = vadd.f32 0.0, %v1290
      %1292 = vmatmul.f32.gmra.mxu0 %v1211
      %v1293 = vpop.f32.mrf.mxu0
      %v1294 = vadd.f32 0.0, %v1293
      %1295 = vmatmul.f32.gmra.mxu0 %v1212
      %v1296 = vpop.f32.mrf.mxu0
      %v1297 = vadd.f32 0.0, %v1296
      %1298 = vmatmul.f32.gmra.mxu0 %v1213
      %v1299 = vpop.f32.mrf.mxu0
      %v1300 = vadd.f32 0.0, %v1299
      %1301 = vmatmul.f32.gmra.mxu0 %v1214
      %v1302 = vpop.f32.mrf.mxu0
      %v1303 = vadd.f32 0.0, %v1302
      %1304 = vmatmul.f32.gmra.mxu0 %v1215
      %v1305 = vpop.f32.mrf.mxu0
      %v1306 = vadd.f32 0.0, %v1305
      %1307 = vmatmul.f32.gmra.mxu0 %v1216
      %v1308 = vpop.f32.mrf.mxu0
      %v1309 = vadd.f32 0.0, %v1308
      %1310 = vmatmul.f32.gmra.mxu0 %v1217
      %v1311 = vpop.f32.mrf.mxu0
      %v1312 = vadd.f32 0.0, %v1311
      %1313 = vmatmul.f32.gmra.mxu0 %v1218
      %v1314 = vpop.f32.mrf.mxu0
      %v1315 = vadd.f32 0.0, %v1314
      %1316 = vmatmul.f32.gmra.mxu0 %v1219
      %v1317 = vpop.f32.mrf.mxu0
      %v1318 = vadd.f32 0.0, %v1317
      %1319 = vmatmul.f32.gmra.mxu0 %v1220
      %v1320 = vpop.f32.mrf.mxu0
      %v1321 = vadd.f32 0.0, %v1320
      %1322 = vmatmul.f32.gmra.mxu0 %v1221
      %v1323 = vpop.f32.mrf.mxu0
      %v1324 = vadd.f32 0.0, %v1323
      %1325 = vmatmul.f32.gmra.mxu0 %v1222
      %v1326 = vpop.f32.mrf.mxu0
      %v1327 = vadd.f32 0.0, %v1326
      %1328 = vmatmul.f32.gmra.mxu0 %v1223
      %v1329 = vpop.f32.mrf.mxu0
      %v1330 = vadd.f32 0.0, %v1329
      %1331 = vmatmul.f32.gmra.mxu0 %v1224
      %v1332 = vpop.f32.mrf.mxu0
      %v1333 = vadd.f32 0.0, %v1332
      %1334 = vmatmul.f32.gmra.mxu0 %v1225
      %v1335 = vpop.f32.mrf.mxu0
      %v1336 = vadd.f32 0.0, %v1335
      %1337 = vmatmul.f32.gmra.mxu0 %v1226
      %v1338 = vpop.f32.mrf.mxu0
      %v1339 = vadd.f32 0.0, %v1338
      %1340 = vmatmul.f32.gmra.mxu0 %v1227
      %v1341 = vpop.f32.mrf.mxu0
      %v1342 = vadd.f32 0.0, %v1341
      %1343 = vmatmul.f32.gmra.mxu0 %v1228
      %v1344 = vpop.f32.mrf.mxu0
      %v1345 = vadd.f32 0.0, %v1344
      %1346 = vmatmul.f32.gmra.mxu0 %v1229
      %v1347 = vpop.f32.mrf.mxu0
      %v1348 = vadd.f32 0.0, %v1347
      %1349 = vmatmul.f32.gmra.mxu0 %v1230
      %v1350 = vpop.f32.mrf.mxu0
      %v1351 = vadd.f32 0.0, %v1350
      %1352 = vmatmul.f32.gmra.mxu0 %v1231
      %v1353 = vpop.f32.mrf.mxu0
      %v1354 = vadd.f32 0.0, %v1353
      %1355 = vmatmul.f32.gmra.mxu0 %v1232
      %v1356 = vpop.f32.mrf.mxu0
      %v1357 = vadd.f32 0.0, %v1356
      %1358 = vmatmul.f32.gmra.mxu0 %v1233
      %v1359 = vpop.f32.mrf.mxu0
      %v1360 = vadd.f32 0.0, %v1359
      %1361 = vmatmul.f32.gmra.mxu0 %v1234
      %v1362 = vpop.f32.mrf.mxu0
      %v1363 = vadd.f32 0.0, %v1362
      %1364 = vdwg.mxu0
      %v1365 = vadd.f32 %v1171, %v1270
      %v1366 = vadd.f32 %v1172, %v1273
      %v1367 = vadd.f32 %v1173, %v1276
      %v1368 = vadd.f32 %v1174, %v1279
      %v1369 = vadd.f32 %v1175, %v1282
      %v1370 = vadd.f32 %v1176, %v1285
      %v1371 = vadd.f32 %v1177, %v1288
      %v1372 = vadd.f32 %v1178, %v1291
      %v1373 = vadd.f32 %v1179, %v1294
      %v1374 = vadd.f32 %v1180, %v1297
      %v1375 = vadd.f32 %v1181, %v1300
      %v1376 = vadd.f32 %v1182, %v1303
      %v1377 = vadd.f32 %v1183, %v1306
      %v1378 = vadd.f32 %v1184, %v1309
      %v1379 = vadd.f32 %v1185, %v1312
      %v1380 = vadd.f32 %v1186, %v1315
      %v1381 = vadd.f32 %v1187, %v1318
      %v1382 = vadd.f32 %v1188, %v1321
      %v1383 = vadd.f32 %v1189, %v1324
      %v1384 = vadd.f32 %v1190, %v1327
      %v1385 = vadd.f32 %v1191, %v1330
      %v1386 = vadd.f32 %v1192, %v1333
      %v1387 = vadd.f32 %v1193, %v1336
      %v1388 = vadd.f32 %v1194, %v1339
      %v1389 = vadd.f32 %v1195, %v1342
      %v1390 = vadd.f32 %v1196, %v1345
      %v1391 = vadd.f32 %v1197, %v1348
      %v1392 = vadd.f32 %v1198, %v1351
      %v1393 = vadd.f32 %v1199, %v1354
      %v1394 = vadd.f32 %v1200, %v1357
      %v1395 = vadd.f32 %v1201, %v1360
      %v1396 = vadd.f32 %v1202, %v1363
      %v1397 = vld [vmem:[%s459 + $0x2] sm:$0xff]
      %v1398 = vld [vmem:[%s459 + $0xa] sm:$0xff]
      %v1399 = vld [vmem:[%s459 + $0x1a] sm:$0xff]
      %v1400 = vld [vmem:[%s459 + $0x22] sm:$0xff]
      %v1401 = vld [vmem:[%s459 + $0x32] sm:$0xff]
      %v1402 = vld [vmem:[%s459 + $0x3a] sm:$0xff]
      %v1403 = vld [vmem:[%s459 + $0x4a] sm:$0xff]
      %v1404 = vld [vmem:[%s459 + $0x52] sm:$0xff]
      %v1405 = vld [vmem:[%s459 + $0x62] sm:$0xff]
      %v1406 = vld [vmem:[%s459 + $0x6a] sm:$0xff]
      %v1407 = vld [vmem:[%s459 + $0x7a] sm:$0xff]
      %v1408 = vld [vmem:[%s459 + $0x82] sm:$0xff]
      %v1409 = vld [vmem:[%s459 + $0x92] sm:$0xff]
      %v1410 = vld [vmem:[%s459 + $0x9a] sm:$0xff]
      %v1411 = vld [vmem:[%s459 + $0xaa] sm:$0xff]
      %v1412 = vld [vmem:[%s459 + $0xb2] sm:$0xff]
      %v1413 = vld [vmem:[%s459 + $0xc2] sm:$0xff]
      %v1414 = vld [vmem:[%s459 + $0xca] sm:$0xff]
      %v1415 = vld [vmem:[%s459 + $0xda] sm:$0xff]
      %v1416 = vld [vmem:[%s459 + $0xe2] sm:$0xff]
      %v1417 = vld [vmem:[%s459 + $0xf2] sm:$0xff]
      %v1418 = vld [vmem:[%s459 + $0xfa] sm:$0xff]
      %v1419 = vld [vmem:[%s459 + $0x10a] sm:$0xff]
      %v1420 = vld [vmem:[%s459 + $0x112] sm:$0xff]
      %v1421 = vld [vmem:[%s459 + $0x122] sm:$0xff]
      %v1422 = vld [vmem:[%s459 + $0x12a] sm:$0xff]
      %v1423 = vld [vmem:[%s459 + $0x13a] sm:$0xff]
      %v1424 = vld [vmem:[%s459 + $0x142] sm:$0xff]
      %v1425 = vld [vmem:[%s459 + $0x152] sm:$0xff]
      %v1426 = vld [vmem:[%s459 + $0x15a] sm:$0xff]
      %v1427 = vld [vmem:[%s459 + $0x16a] sm:$0xff]
      %v1428 = vld [vmem:[%s459 + $0x172] sm:$0xff]
      %s1429 = scalar_lea.vmem %s3, 640
      %v1430 = vld [vmem:[%s1429] sm:$0xff]
      %v1431 = vld [vmem:[%s1429 + $0x8] sm:$0xff]
      %v1432 = vld [vmem:[%s1429 + $0x10] sm:$0xff]
      %v1433 = vld [vmem:[%s1429 + $0x18] sm:$0xff]
      %v1434 = vld [vmem:[%s1429 + $0x20] sm:$0xff]
      %v1435 = vld [vmem:[%s1429 + $0x28] sm:$0xff]
      %v1436 = vld [vmem:[%s1429 + $0x30] sm:$0xff]
      %v1437 = vld [vmem:[%s1429 + $0x38] sm:$0xff]
      %v1438 = vld [vmem:[%s1429 + $0x40] sm:$0xff]
      %v1439 = vld [vmem:[%s1429 + $0x48] sm:$0xff]
      %v1440 = vld [vmem:[%s1429 + $0x50] sm:$0xff]
      %v1441 = vld [vmem:[%s1429 + $0x58] sm:$0xff]
      %v1442 = vld [vmem:[%s1429 + $0x60] sm:$0xff]
      %v1443 = vld [vmem:[%s1429 + $0x68] sm:$0xff]
      %v1444 = vld [vmem:[%s1429 + $0x70] sm:$0xff]
      %v1445 = vld [vmem:[%s1429 + $0x78] sm:$0xff]
      %1446 = vmatpush.msra.mxu0 %v1445
      %1447 = vmatpush.msra.mxu0 %v1444
      %1448 = vmatpush.msra.mxu0 %v1443
      %1449 = vmatpush.msra.mxu0 %v1442
      %1450 = vmatpush.msra.mxu0 %v1441
      %1451 = vmatpush.msra.mxu0 %v1440
      %1452 = vmatpush.msra.mxu0 %v1439
      %1453 = vmatpush.msra.mxu0 %v1438
      %1454 = vmatpush.msra.mxu0 %v1437
      %1455 = vmatpush.msra.mxu0 %v1436
      %1456 = vmatpush.msra.mxu0 %v1435
      %1457 = vmatpush.msra.mxu0 %v1434
      %1458 = vmatpush.msra.mxu0 %v1433
      %1459 = vmatpush.msra.mxu0 %v1432
      %1460 = vmatpush.msra.mxu0 %v1431
      %1461 = vmatpush.msra.mxu0 %v1430
      %1462 = vmatmul.f32.gmra.mxu0 %v1397
      %v1463 = vpop.f32.mrf.mxu0
      %v1464 = vadd.f32 0.0, %v1463
      %1465 = vmatmul.f32.gmra.mxu0 %v1398
      %v1466 = vpop.f32.mrf.mxu0
      %v1467 = vadd.f32 0.0, %v1466
      %1468 = vmatmul.f32.gmra.mxu0 %v1399
      %v1469 = vpop.f32.mrf.mxu0
      %v1470 = vadd.f32 0.0, %v1469
      %1471 = vmatmul.f32.gmra.mxu0 %v1400
      %v1472 = vpop.f32.mrf.mxu0
      %v1473 = vadd.f32 0.0, %v1472
      %1474 = vmatmul.f32.gmra.mxu0 %v1401
      %v1475 = vpop.f32.mrf.mxu0
      %v1476 = vadd.f32 0.0, %v1475
      %1477 = vmatmul.f32.gmra.mxu0 %v1402
      %v1478 = vpop.f32.mrf.mxu0
      %v1479 = vadd.f32 0.0, %v1478
      %1480 = vmatmul.f32.gmra.mxu0 %v1403
      %v1481 = vpop.f32.mrf.mxu0
      %v1482 = vadd.f32 0.0, %v1481
      %1483 = vmatmul.f32.gmra.mxu0 %v1404
      %v1484 = vpop.f32.mrf.mxu0
      %v1485 = vadd.f32 0.0, %v1484
      %1486 = vmatmul.f32.gmra.mxu0 %v1405
      %v1487 = vpop.f32.mrf.mxu0
      %v1488 = vadd.f32 0.0, %v1487
      %1489 = vmatmul.f32.gmra.mxu0 %v1406
      %v1490 = vpop.f32.mrf.mxu0
      %v1491 = vadd.f32 0.0, %v1490
      %1492 = vmatmul.f32.gmra.mxu0 %v1407
      %v1493 = vpop.f32.mrf.mxu0
      %v1494 = vadd.f32 0.0, %v1493
      %1495 = vmatmul.f32.gmra.mxu0 %v1408
      %v1496 = vpop.f32.mrf.mxu0
      %v1497 = vadd.f32 0.0, %v1496
      %1498 = vmatmul.f32.gmra.mxu0 %v1409
      %v1499 = vpop.f32.mrf.mxu0
      %v1500 = vadd.f32 0.0, %v1499
      %1501 = vmatmul.f32.gmra.mxu0 %v1410
      %v1502 = vpop.f32.mrf.mxu0
      %v1503 = vadd.f32 0.0, %v1502
      %1504 = vmatmul.f32.gmra.mxu0 %v1411
      %v1505 = vpop.f32.mrf.mxu0
      %v1506 = vadd.f32 0.0, %v1505
      %1507 = vmatmul.f32.gmra.mxu0 %v1412
      %v1508 = vpop.f32.mrf.mxu0
      %v1509 = vadd.f32 0.0, %v1508
      %1510 = vmatmul.f32.gmra.mxu0 %v1413
      %v1511 = vpop.f32.mrf.mxu0
      %v1512 = vadd.f32 0.0, %v1511
      %1513 = vmatmul.f32.gmra.mxu0 %v1414
      %v1514 = vpop.f32.mrf.mxu0
      %v1515 = vadd.f32 0.0, %v1514
      %1516 = vmatmul.f32.gmra.mxu0 %v1415
      %v1517 = vpop.f32.mrf.mxu0
      %v1518 = vadd.f32 0.0, %v1517
      %1519 = vmatmul.f32.gmra.mxu0 %v1416
      %v1520 = vpop.f32.mrf.mxu0
      %v1521 = vadd.f32 0.0, %v1520
      %1522 = vmatmul.f32.gmra.mxu0 %v1417
      %v1523 = vpop.f32.mrf.mxu0
      %v1524 = vadd.f32 0.0, %v1523
      %1525 = vmatmul.f32.gmra.mxu0 %v1418
      %v1526 = vpop.f32.mrf.mxu0
      %v1527 = vadd.f32 0.0, %v1526
      %1528 = vmatmul.f32.gmra.mxu0 %v1419
      %v1529 = vpop.f32.mrf.mxu0
      %v1530 = vadd.f32 0.0, %v1529
      %1531 = vmatmul.f32.gmra.mxu0 %v1420
      %v1532 = vpop.f32.mrf.mxu0
      %v1533 = vadd.f32 0.0, %v1532
      %1534 = vmatmul.f32.gmra.mxu0 %v1421
      %v1535 = vpop.f32.mrf.mxu0
      %v1536 = vadd.f32 0.0, %v1535
      %1537 = vmatmul.f32.gmra.mxu0 %v1422
      %v1538 = vpop.f32.mrf.mxu0
      %v1539 = vadd.f32 0.0, %v1538
      %1540 = vmatmul.f32.gmra.mxu0 %v1423
      %v1541 = vpop.f32.mrf.mxu0
      %v1542 = vadd.f32 0.0, %v1541
      %1543 = vmatmul.f32.gmra.mxu0 %v1424
      %v1544 = vpop.f32.mrf.mxu0
      %v1545 = vadd.f32 0.0, %v1544
      %1546 = vmatmul.f32.gmra.mxu0 %v1425
      %v1547 = vpop.f32.mrf.mxu0
      %v1548 = vadd.f32 0.0, %v1547
      %1549 = vmatmul.f32.gmra.mxu0 %v1426
      %v1550 = vpop.f32.mrf.mxu0
      %v1551 = vadd.f32 0.0, %v1550
      %1552 = vmatmul.f32.gmra.mxu0 %v1427
      %v1553 = vpop.f32.mrf.mxu0
      %v1554 = vadd.f32 0.0, %v1553
      %1555 = vmatmul.f32.gmra.mxu0 %v1428
      %v1556 = vpop.f32.mrf.mxu0
      %v1557 = vadd.f32 0.0, %v1556
      %1558 = vdwg.mxu0
      %v1559 = vadd.f32 %v1365, %v1464
      %v1560 = vadd.f32 %v1366, %v1467
      %v1561 = vadd.f32 %v1367, %v1470
      %v1562 = vadd.f32 %v1368, %v1473
      %v1563 = vadd.f32 %v1369, %v1476
      %v1564 = vadd.f32 %v1370, %v1479
      %v1565 = vadd.f32 %v1371, %v1482
      %v1566 = vadd.f32 %v1372, %v1485
      %v1567 = vadd.f32 %v1373, %v1488
      %v1568 = vadd.f32 %v1374, %v1491
      %v1569 = vadd.f32 %v1375, %v1494
      %v1570 = vadd.f32 %v1376, %v1497
      %v1571 = vadd.f32 %v1377, %v1500
      %v1572 = vadd.f32 %v1378, %v1503
      %v1573 = vadd.f32 %v1379, %v1506
      %v1574 = vadd.f32 %v1380, %v1509
      %v1575 = vadd.f32 %v1381, %v1512
      %v1576 = vadd.f32 %v1382, %v1515
      %v1577 = vadd.f32 %v1383, %v1518
      %v1578 = vadd.f32 %v1384, %v1521
      %v1579 = vadd.f32 %v1385, %v1524
      %v1580 = vadd.f32 %v1386, %v1527
      %v1581 = vadd.f32 %v1387, %v1530
      %v1582 = vadd.f32 %v1388, %v1533
      %v1583 = vadd.f32 %v1389, %v1536
      %v1584 = vadd.f32 %v1390, %v1539
      %v1585 = vadd.f32 %v1391, %v1542
      %v1586 = vadd.f32 %v1392, %v1545
      %v1587 = vadd.f32 %v1393, %v1548
      %v1588 = vadd.f32 %v1394, %v1551
      %v1589 = vadd.f32 %v1395, %v1554
      %v1590 = vadd.f32 %v1396, %v1557
      %s1591 = scalar_lea.vmem [#allocation2], 48
      %v1592 = vld [vmem:[%s1591] sm:$0xff]
      %v1593 = vld [vmem:[%s1591 + $0x8] sm:$0xff]
      %v1594 = vld [vmem:[%s1591 + $0x18] sm:$0xff]
      %v1595 = vld [vmem:[%s1591 + $0x20] sm:$0xff]
      %v1596 = vld [vmem:[%s1591 + $0x30] sm:$0xff]
      %v1597 = vld [vmem:[%s1591 + $0x38] sm:$0xff]
      %v1598 = vld [vmem:[%s1591 + $0x48] sm:$0xff]
      %v1599 = vld [vmem:[%s1591 + $0x50] sm:$0xff]
      %v1600 = vld [vmem:[%s1591 + $0x60] sm:$0xff]
      %v1601 = vld [vmem:[%s1591 + $0x68] sm:$0xff]
      %v1602 = vld [vmem:[%s1591 + $0x78] sm:$0xff]
      %v1603 = vld [vmem:[%s1591 + $0x80] sm:$0xff]
      %v1604 = vld [vmem:[%s1591 + $0x90] sm:$0xff]
      %v1605 = vld [vmem:[%s1591 + $0x98] sm:$0xff]
      %v1606 = vld [vmem:[%s1591 + $0xa8] sm:$0xff]
      %v1607 = vld [vmem:[%s1591 + $0xb0] sm:$0xff]
      %v1608 = vld [vmem:[%s1591 + $0xc0] sm:$0xff]
      %v1609 = vld [vmem:[%s1591 + $0xc8] sm:$0xff]
      %v1610 = vld [vmem:[%s1591 + $0xd8] sm:$0xff]
      %v1611 = vld [vmem:[%s1591 + $0xe0] sm:$0xff]
      %v1612 = vld [vmem:[%s1591 + $0xf0] sm:$0xff]
      %v1613 = vld [vmem:[%s1591 + $0xf8] sm:$0xff]
      %v1614 = vld [vmem:[%s1591 + $0x108] sm:$0xff]
      %v1615 = vld [vmem:[%s1591 + $0x110] sm:$0xff]
      %v1616 = vld [vmem:[%s1591 + $0x120] sm:$0xff]
      %v1617 = vld [vmem:[%s1591 + $0x128] sm:$0xff]
      %v1618 = vld [vmem:[%s1591 + $0x138] sm:$0xff]
      %v1619 = vld [vmem:[%s1591 + $0x140] sm:$0xff]
      %v1620 = vld [vmem:[%s1591 + $0x150] sm:$0xff]
      %v1621 = vld [vmem:[%s1591 + $0x158] sm:$0xff]
      %v1622 = vld [vmem:[%s1591 + $0x168] sm:$0xff]
      %v1623 = vld [vmem:[%s1591 + $0x170] sm:$0xff]
      %s1624 = scalar_lea.vmem %s3, 768
      %v1625 = vld [vmem:[%s1624] sm:$0xff]
      %v1626 = vld [vmem:[%s1624 + $0x8] sm:$0xff]
      %v1627 = vld [vmem:[%s1624 + $0x10] sm:$0xff]
      %v1628 = vld [vmem:[%s1624 + $0x18] sm:$0xff]
      %v1629 = vld [vmem:[%s1624 + $0x20] sm:$0xff]
      %v1630 = vld [vmem:[%s1624 + $0x28] sm:$0xff]
      %v1631 = vld [vmem:[%s1624 + $0x30] sm:$0xff]
      %v1632 = vld [vmem:[%s1624 + $0x38] sm:$0xff]
      %v1633 = vld [vmem:[%s1624 + $0x40] sm:$0xff]
      %v1634 = vld [vmem:[%s1624 + $0x48] sm:$0xff]
      %v1635 = vld [vmem:[%s1624 + $0x50] sm:$0xff]
      %v1636 = vld [vmem:[%s1624 + $0x58] sm:$0xff]
      %v1637 = vld [vmem:[%s1624 + $0x60] sm:$0xff]
      %v1638 = vld [vmem:[%s1624 + $0x68] sm:$0xff]
      %v1639 = vld [vmem:[%s1624 + $0x70] sm:$0xff]
      %v1640 = vld [vmem:[%s1624 + $0x78] sm:$0xff]
      %1641 = vmatpush.msra.mxu0 %v1640
      %1642 = vmatpush.msra.mxu0 %v1639
      %1643 = vmatpush.msra.mxu0 %v1638
      %1644 = vmatpush.msra.mxu0 %v1637
      %1645 = vmatpush.msra.mxu0 %v1636
      %1646 = vmatpush.msra.mxu0 %v1635
      %1647 = vmatpush.msra.mxu0 %v1634
      %1648 = vmatpush.msra.mxu0 %v1633
      %1649 = vmatpush.msra.mxu0 %v1632
      %1650 = vmatpush.msra.mxu0 %v1631
      %1651 = vmatpush.msra.mxu0 %v1630
      %1652 = vmatpush.msra.mxu0 %v1629
      %1653 = vmatpush.msra.mxu0 %v1628
      %1654 = vmatpush.msra.mxu0 %v1627
      %1655 = vmatpush.msra.mxu0 %v1626
      %1656 = vmatpush.msra.mxu0 %v1625
      %1657 = vmatmul.f32.gmra.mxu0 %v1592
      %v1658 = vpop.f32.mrf.mxu0
      %v1659 = vadd.f32 0.0, %v1658
      %1660 = vmatmul.f32.gmra.mxu0 %v1593
      %v1661 = vpop.f32.mrf.mxu0
      %v1662 = vadd.f32 0.0, %v1661
      %1663 = vmatmul.f32.gmra.mxu0 %v1594
      %v1664 = vpop.f32.mrf.mxu0
      %v1665 = vadd.f32 0.0, %v1664
      %1666 = vmatmul.f32.gmra.mxu0 %v1595
      %v1667 = vpop.f32.mrf.mxu0
      %v1668 = vadd.f32 0.0, %v1667
      %1669 = vmatmul.f32.gmra.mxu0 %v1596
      %v1670 = vpop.f32.mrf.mxu0
      %v1671 = vadd.f32 0.0, %v1670
      %1672 = vmatmul.f32.gmra.mxu0 %v1597
      %v1673 = vpop.f32.mrf.mxu0
      %v1674 = vadd.f32 0.0, %v1673
      %1675 = vmatmul.f32.gmra.mxu0 %v1598
      %v1676 = vpop.f32.mrf.mxu0
      %v1677 = vadd.f32 0.0, %v1676
      %1678 = vmatmul.f32.gmra.mxu0 %v1599
      %v1679 = vpop.f32.mrf.mxu0
      %v1680 = vadd.f32 0.0, %v1679
      %1681 = vmatmul.f32.gmra.mxu0 %v1600
      %v1682 = vpop.f32.mrf.mxu0
      %v1683 = vadd.f32 0.0, %v1682
      %1684 = vmatmul.f32.gmra.mxu0 %v1601
      %v1685 = vpop.f32.mrf.mxu0
      %v1686 = vadd.f32 0.0, %v1685
      %1687 = vmatmul.f32.gmra.mxu0 %v1602
      %v1688 = vpop.f32.mrf.mxu0
      %v1689 = vadd.f32 0.0, %v1688
      %1690 = vmatmul.f32.gmra.mxu0 %v1603
      %v1691 = vpop.f32.mrf.mxu0
      %v1692 = vadd.f32 0.0, %v1691
      %1693 = vmatmul.f32.gmra.mxu0 %v1604
      %v1694 = vpop.f32.mrf.mxu0
      %v1695 = vadd.f32 0.0, %v1694
      %1696 = vmatmul.f32.gmra.mxu0 %v1605
      %v1697 = vpop.f32.mrf.mxu0
      %v1698 = vadd.f32 0.0, %v1697
      %1699 = vmatmul.f32.gmra.mxu0 %v1606
      %v1700 = vpop.f32.mrf.mxu0
      %v1701 = vadd.f32 0.0, %v1700
      %1702 = vmatmul.f32.gmra.mxu0 %v1607
      %v1703 = vpop.f32.mrf.mxu0
      %v1704 = vadd.f32 0.0, %v1703
      %1705 = vmatmul.f32.gmra.mxu0 %v1608
      %v1706 = vpop.f32.mrf.mxu0
      %v1707 = vadd.f32 0.0, %v1706
      %1708 = vmatmul.f32.gmra.mxu0 %v1609
      %v1709 = vpop.f32.mrf.mxu0
      %v1710 = vadd.f32 0.0, %v1709
      %1711 = vmatmul.f32.gmra.mxu0 %v1610
      %v1712 = vpop.f32.mrf.mxu0
      %v1713 = vadd.f32 0.0, %v1712
      %1714 = vmatmul.f32.gmra.mxu0 %v1611
      %v1715 = vpop.f32.mrf.mxu0
      %v1716 = vadd.f32 0.0, %v1715
      %1717 = vmatmul.f32.gmra.mxu0 %v1612
      %v1718 = vpop.f32.mrf.mxu0
      %v1719 = vadd.f32 0.0, %v1718
      %1720 = vmatmul.f32.gmra.mxu0 %v1613
      %v1721 = vpop.f32.mrf.mxu0
      %v1722 = vadd.f32 0.0, %v1721
      %1723 = vmatmul.f32.gmra.mxu0 %v1614
      %v1724 = vpop.f32.mrf.mxu0
      %v1725 = vadd.f32 0.0, %v1724
      %1726 = vmatmul.f32.gmra.mxu0 %v1615
      %v1727 = vpop.f32.mrf.mxu0
      %v1728 = vadd.f32 0.0, %v1727
      %1729 = vmatmul.f32.gmra.mxu0 %v1616
      %v1730 = vpop.f32.mrf.mxu0
      %v1731 = vadd.f32 0.0, %v1730
      %1732 = vmatmul.f32.gmra.mxu0 %v1617
      %v1733 = vpop.f32.mrf.mxu0
      %v1734 = vadd.f32 0.0, %v1733
      %1735 = vmatmul.f32.gmra.mxu0 %v1618
      %v1736 = vpop.f32.mrf.mxu0
      %v1737 = vadd.f32 0.0, %v1736
      %1738 = vmatmul.f32.gmra.mxu0 %v1619
      %v1739 = vpop.f32.mrf.mxu0
      %v1740 = vadd.f32 0.0, %v1739
      %1741 = vmatmul.f32.gmra.mxu0 %v1620
      %v1742 = vpop.f32.mrf.mxu0
      %v1743 = vadd.f32 0.0, %v1742
      %1744 = vmatmul.f32.gmra.mxu0 %v1621
      %v1745 = vpop.f32.mrf.mxu0
      %v1746 = vadd.f32 0.0, %v1745
      %1747 = vmatmul.f32.gmra.mxu0 %v1622
      %v1748 = vpop.f32.mrf.mxu0
      %v1749 = vadd.f32 0.0, %v1748
      %1750 = vmatmul.f32.gmra.mxu0 %v1623
      %v1751 = vpop.f32.mrf.mxu0
      %v1752 = vadd.f32 0.0, %v1751
      %1753 = vdwg.mxu0
      %v1754 = vadd.f32 %v1559, %v1659
      %v1755 = vadd.f32 %v1560, %v1662
      %v1756 = vadd.f32 %v1561, %v1665
      %v1757 = vadd.f32 %v1562, %v1668
      %v1758 = vadd.f32 %v1563, %v1671
      %v1759 = vadd.f32 %v1564, %v1674
      %v1760 = vadd.f32 %v1565, %v1677
      %v1761 = vadd.f32 %v1566, %v1680
      %v1762 = vadd.f32 %v1567, %v1683
      %v1763 = vadd.f32 %v1568, %v1686
      %v1764 = vadd.f32 %v1569, %v1689
      %v1765 = vadd.f32 %v1570, %v1692
      %v1766 = vadd.f32 %v1571, %v1695
      %v1767 = vadd.f32 %v1572, %v1698
      %v1768 = vadd.f32 %v1573, %v1701
      %v1769 = vadd.f32 %v1574, %v1704
      %v1770 = vadd.f32 %v1575, %v1707
      %v1771 = vadd.f32 %v1576, %v1710
      %v1772 = vadd.f32 %v1577, %v1713
      %v1773 = vadd.f32 %v1578, %v1716
      %v1774 = vadd.f32 %v1579, %v1719
      %v1775 = vadd.f32 %v1580, %v1722
      %v1776 = vadd.f32 %v1581, %v1725
      %v1777 = vadd.f32 %v1582, %v1728
      %v1778 = vadd.f32 %v1583, %v1731
      %v1779 = vadd.f32 %v1584, %v1734
      %v1780 = vadd.f32 %v1585, %v1737
      %v1781 = vadd.f32 %v1586, %v1740
      %v1782 = vadd.f32 %v1587, %v1743
      %v1783 = vadd.f32 %v1588, %v1746
      %v1784 = vadd.f32 %v1589, %v1749
      %v1785 = vadd.f32 %v1590, %v1752
      %v1786 = vld [vmem:[%s1591 + $0x1] sm:$0xff]
      %v1787 = vld [vmem:[%s1591 + $0x9] sm:$0xff]
      %v1788 = vld [vmem:[%s1591 + $0x19] sm:$0xff]
      %v1789 = vld [vmem:[%s1591 + $0x21] sm:$0xff]
      %v1790 = vld [vmem:[%s1591 + $0x31] sm:$0xff]
      %v1791 = vld [vmem:[%s1591 + $0x39] sm:$0xff]
      %v1792 = vld [vmem:[%s1591 + $0x49] sm:$0xff]
      %v1793 = vld [vmem:[%s1591 + $0x51] sm:$0xff]
      %v1794 = vld [vmem:[%s1591 + $0x61] sm:$0xff]
      %v1795 = vld [vmem:[%s1591 + $0x69] sm:$0xff]
      %v1796 = vld [vmem:[%s1591 + $0x79] sm:$0xff]
      %v1797 = vld [vmem:[%s1591 + $0x81] sm:$0xff]
      %v1798 = vld [vmem:[%s1591 + $0x91] sm:$0xff]
      %v1799 = vld [vmem:[%s1591 + $0x99] sm:$0xff]
      %v1800 = vld [vmem:[%s1591 + $0xa9] sm:$0xff]
      %v1801 = vld [vmem:[%s1591 + $0xb1] sm:$0xff]
      %v1802 = vld [vmem:[%s1591 + $0xc1] sm:$0xff]
      %v1803 = vld [vmem:[%s1591 + $0xc9] sm:$0xff]
      %v1804 = vld [vmem:[%s1591 + $0xd9] sm:$0xff]
      %v1805 = vld [vmem:[%s1591 + $0xe1] sm:$0xff]
      %v1806 = vld [vmem:[%s1591 + $0xf1] sm:$0xff]
      %v1807 = vld [vmem:[%s1591 + $0xf9] sm:$0xff]
      %v1808 = vld [vmem:[%s1591 + $0x109] sm:$0xff]
      %v1809 = vld [vmem:[%s1591 + $0x111] sm:$0xff]
      %v1810 = vld [vmem:[%s1591 + $0x121] sm:$0xff]
      %v1811 = vld [vmem:[%s1591 + $0x129] sm:$0xff]
      %v1812 = vld [vmem:[%s1591 + $0x139] sm:$0xff]
      %v1813 = vld [vmem:[%s1591 + $0x141] sm:$0xff]
      %v1814 = vld [vmem:[%s1591 + $0x151] sm:$0xff]
      %v1815 = vld [vmem:[%s1591 + $0x159] sm:$0xff]
      %v1816 = vld [vmem:[%s1591 + $0x169] sm:$0xff]
      %v1817 = vld [vmem:[%s1591 + $0x171] sm:$0xff]
      %s1818 = scalar_lea.vmem %s3, 896
      %v1819 = vld [vmem:[%s1818] sm:$0xff]
      %v1820 = vld [vmem:[%s1818 + $0x8] sm:$0xff]
      %v1821 = vld [vmem:[%s1818 + $0x10] sm:$0xff]
      %v1822 = vld [vmem:[%s1818 + $0x18] sm:$0xff]
      %v1823 = vld [vmem:[%s1818 + $0x20] sm:$0xff]
      %v1824 = vld [vmem:[%s1818 + $0x28] sm:$0xff]
      %v1825 = vld [vmem:[%s1818 + $0x30] sm:$0xff]
      %v1826 = vld [vmem:[%s1818 + $0x38] sm:$0xff]
      %v1827 = vld [vmem:[%s1818 + $0x40] sm:$0xff]
      %v1828 = vld [vmem:[%s1818 + $0x48] sm:$0xff]
      %v1829 = vld [vmem:[%s1818 + $0x50] sm:$0xff]
      %v1830 = vld [vmem:[%s1818 + $0x58] sm:$0xff]
      %v1831 = vld [vmem:[%s1818 + $0x60] sm:$0xff]
      %v1832 = vld [vmem:[%s1818 + $0x68] sm:$0xff]
      %v1833 = vld [vmem:[%s1818 + $0x70] sm:$0xff]
      %v1834 = vld [vmem:[%s1818 + $0x78] sm:$0xff]
      %1835 = vmatpush.msra.mxu0 %v1834
      %1836 = vmatpush.msra.mxu0 %v1833
      %1837 = vmatpush.msra.mxu0 %v1832
      %1838 = vmatpush.msra.mxu0 %v1831
      %1839 = vmatpush.msra.mxu0 %v1830
      %1840 = vmatpush.msra.mxu0 %v1829
      %1841 = vmatpush.msra.mxu0 %v1828
      %1842 = vmatpush.msra.mxu0 %v1827
      %1843 = vmatpush.msra.mxu0 %v1826
      %1844 = vmatpush.msra.mxu0 %v1825
      %1845 = vmatpush.msra.mxu0 %v1824
      %1846 = vmatpush.msra.mxu0 %v1823
      %1847 = vmatpush.msra.mxu0 %v1822
      %1848 = vmatpush.msra.mxu0 %v1821
      %1849 = vmatpush.msra.mxu0 %v1820
      %1850 = vmatpush.msra.mxu0 %v1819
      %1851 = vmatmul.f32.gmra.mxu0 %v1786
      %v1852 = vpop.f32.mrf.mxu0
      %v1853 = vadd.f32 0.0, %v1852
      %1854 = vmatmul.f32.gmra.mxu0 %v1787
      %v1855 = vpop.f32.mrf.mxu0
      %v1856 = vadd.f32 0.0, %v1855
      %1857 = vmatmul.f32.gmra.mxu0 %v1788
      %v1858 = vpop.f32.mrf.mxu0
      %v1859 = vadd.f32 0.0, %v1858
      %1860 = vmatmul.f32.gmra.mxu0 %v1789
      %v1861 = vpop.f32.mrf.mxu0
      %v1862 = vadd.f32 0.0, %v1861
      %1863 = vmatmul.f32.gmra.mxu0 %v1790
      %v1864 = vpop.f32.mrf.mxu0
      %v1865 = vadd.f32 0.0, %v1864
      %1866 = vmatmul.f32.gmra.mxu0 %v1791
      %v1867 = vpop.f32.mrf.mxu0
      %v1868 = vadd.f32 0.0, %v1867
      %1869 = vmatmul.f32.gmra.mxu0 %v1792
      %v1870 = vpop.f32.mrf.mxu0
      %v1871 = vadd.f32 0.0, %v1870
      %1872 = vmatmul.f32.gmra.mxu0 %v1793
      %v1873 = vpop.f32.mrf.mxu0
      %v1874 = vadd.f32 0.0, %v1873
      %1875 = vmatmul.f32.gmra.mxu0 %v1794
      %v1876 = vpop.f32.mrf.mxu0
      %v1877 = vadd.f32 0.0, %v1876
      %1878 = vmatmul.f32.gmra.mxu0 %v1795
      %v1879 = vpop.f32.mrf.mxu0
      %v1880 = vadd.f32 0.0, %v1879
      %1881 = vmatmul.f32.gmra.mxu0 %v1796
      %v1882 = vpop.f32.mrf.mxu0
      %v1883 = vadd.f32 0.0, %v1882
      %1884 = vmatmul.f32.gmra.mxu0 %v1797
      %v1885 = vpop.f32.mrf.mxu0
      %v1886 = vadd.f32 0.0, %v1885
      %1887 = vmatmul.f32.gmra.mxu0 %v1798
      %v1888 = vpop.f32.mrf.mxu0
      %v1889 = vadd.f32 0.0, %v1888
      %1890 = vmatmul.f32.gmra.mxu0 %v1799
      %v1891 = vpop.f32.mrf.mxu0
      %v1892 = vadd.f32 0.0, %v1891
      %1893 = vmatmul.f32.gmra.mxu0 %v1800
      %v1894 = vpop.f32.mrf.mxu0
      %v1895 = vadd.f32 0.0, %v1894
      %1896 = vmatmul.f32.gmra.mxu0 %v1801
      %v1897 = vpop.f32.mrf.mxu0
      %v1898 = vadd.f32 0.0, %v1897
      %1899 = vmatmul.f32.gmra.mxu0 %v1802
      %v1900 = vpop.f32.mrf.mxu0
      %v1901 = vadd.f32 0.0, %v1900
      %1902 = vmatmul.f32.gmra.mxu0 %v1803
      %v1903 = vpop.f32.mrf.mxu0
      %v1904 = vadd.f32 0.0, %v1903
      %1905 = vmatmul.f32.gmra.mxu0 %v1804
      %v1906 = vpop.f32.mrf.mxu0
      %v1907 = vadd.f32 0.0, %v1906
      %1908 = vmatmul.f32.gmra.mxu0 %v1805
      %v1909 = vpop.f32.mrf.mxu0
      %v1910 = vadd.f32 0.0, %v1909
      %1911 = vmatmul.f32.gmra.mxu0 %v1806
      %v1912 = vpop.f32.mrf.mxu0
      %v1913 = vadd.f32 0.0, %v1912
      %1914 = vmatmul.f32.gmra.mxu0 %v1807
      %v1915 = vpop.f32.mrf.mxu0
      %v1916 = vadd.f32 0.0, %v1915
      %1917 = vmatmul.f32.gmra.mxu0 %v1808
      %v1918 = vpop.f32.mrf.mxu0
      %v1919 = vadd.f32 0.0, %v1918
      %1920 = vmatmul.f32.gmra.mxu0 %v1809
      %v1921 = vpop.f32.mrf.mxu0
      %v1922 = vadd.f32 0.0, %v1921
      %1923 = vmatmul.f32.gmra.mxu0 %v1810
      %v1924 = vpop.f32.mrf.mxu0
      %v1925 = vadd.f32 0.0, %v1924
      %1926 = vmatmul.f32.gmra.mxu0 %v1811
      %v1927 = vpop.f32.mrf.mxu0
      %v1928 = vadd.f32 0.0, %v1927
      %1929 = vmatmul.f32.gmra.mxu0 %v1812
      %v1930 = vpop.f32.mrf.mxu0
      %v1931 = vadd.f32 0.0, %v1930
      %1932 = vmatmul.f32.gmra.mxu0 %v1813
      %v1933 = vpop.f32.mrf.mxu0
      %v1934 = vadd.f32 0.0, %v1933
      %1935 = vmatmul.f32.gmra.mxu0 %v1814
      %v1936 = vpop.f32.mrf.mxu0
      %v1937 = vadd.f32 0.0, %v1936
      %1938 = vmatmul.f32.gmra.mxu0 %v1815
      %v1939 = vpop.f32.mrf.mxu0
      %v1940 = vadd.f32 0.0, %v1939
      %1941 = vmatmul.f32.gmra.mxu0 %v1816
      %v1942 = vpop.f32.mrf.mxu0
      %v1943 = vadd.f32 0.0, %v1942
      %1944 = vmatmul.f32.gmra.mxu0 %v1817
      %v1945 = vpop.f32.mrf.mxu0
      %v1946 = vadd.f32 0.0, %v1945
      %1947 = vdwg.mxu0
      %v1948 = vadd.f32 %v1754, %v1853
      %v1949 = vadd.f32 %v1755, %v1856
      %v1950 = vadd.f32 %v1756, %v1859
      %v1951 = vadd.f32 %v1757, %v1862
      %v1952 = vadd.f32 %v1758, %v1865
      %v1953 = vadd.f32 %v1759, %v1868
      %v1954 = vadd.f32 %v1760, %v1871
      %v1955 = vadd.f32 %v1761, %v1874
      %v1956 = vadd.f32 %v1762, %v1877
      %v1957 = vadd.f32 %v1763, %v1880
      %v1958 = vadd.f32 %v1764, %v1883
      %v1959 = vadd.f32 %v1765, %v1886
      %v1960 = vadd.f32 %v1766, %v1889
      %v1961 = vadd.f32 %v1767, %v1892
      %v1962 = vadd.f32 %v1768, %v1895
      %v1963 = vadd.f32 %v1769, %v1898
      %v1964 = vadd.f32 %v1770, %v1901
      %v1965 = vadd.f32 %v1771, %v1904
      %v1966 = vadd.f32 %v1772, %v1907
      %v1967 = vadd.f32 %v1773, %v1910
      %v1968 = vadd.f32 %v1774, %v1913
      %v1969 = vadd.f32 %v1775, %v1916
      %v1970 = vadd.f32 %v1776, %v1919
      %v1971 = vadd.f32 %v1777, %v1922
      %v1972 = vadd.f32 %v1778, %v1925
      %v1973 = vadd.f32 %v1779, %v1928
      %v1974 = vadd.f32 %v1780, %v1931
      %v1975 = vadd.f32 %v1781, %v1934
      %v1976 = vadd.f32 %v1782, %v1937
      %v1977 = vadd.f32 %v1783, %v1940
      %v1978 = vadd.f32 %v1784, %v1943
      %v1979 = vadd.f32 %v1785, %v1946
      %v1980 = vld [vmem:[%s1591 + $0x2] sm:$0xff]
      %v1981 = vld [vmem:[%s1591 + $0xa] sm:$0xff]
      %v1982 = vld [vmem:[%s1591 + $0x1a] sm:$0xff]
      %v1983 = vld [vmem:[%s1591 + $0x22] sm:$0xff]
      %v1984 = vld [vmem:[%s1591 + $0x32] sm:$0xff]
      %v1985 = vld [vmem:[%s1591 + $0x3a] sm:$0xff]
      %v1986 = vld [vmem:[%s1591 + $0x4a] sm:$0xff]
      %v1987 = vld [vmem:[%s1591 + $0x52] sm:$0xff]
      %v1988 = vld [vmem:[%s1591 + $0x62] sm:$0xff]
      %v1989 = vld [vmem:[%s1591 + $0x6a] sm:$0xff]
      %v1990 = vld [vmem:[%s1591 + $0x7a] sm:$0xff]
      %v1991 = vld [vmem:[%s1591 + $0x82] sm:$0xff]
      %v1992 = vld [vmem:[%s1591 + $0x92] sm:$0xff]
      %v1993 = vld [vmem:[%s1591 + $0x9a] sm:$0xff]
      %v1994 = vld [vmem:[%s1591 + $0xaa] sm:$0xff]
      %v1995 = vld [vmem:[%s1591 + $0xb2] sm:$0xff]
      %v1996 = vld [vmem:[%s1591 + $0xc2] sm:$0xff]
      %v1997 = vld [vmem:[%s1591 + $0xca] sm:$0xff]
      %v1998 = vld [vmem:[%s1591 + $0xda] sm:$0xff]
      %v1999 = vld [vmem:[%s1591 + $0xe2] sm:$0xff]
      %v2000 = vld [vmem:[%s1591 + $0xf2] sm:$0xff]
      %v2001 = vld [vmem:[%s1591 + $0xfa] sm:$0xff]
      %v2002 = vld [vmem:[%s1591 + $0x10a] sm:$0xff]
      %v2003 = vld [vmem:[%s1591 + $0x112] sm:$0xff]
      %v2004 = vld [vmem:[%s1591 + $0x122] sm:$0xff]
      %v2005 = vld [vmem:[%s1591 + $0x12a] sm:$0xff]
      %v2006 = vld [vmem:[%s1591 + $0x13a] sm:$0xff]
      %v2007 = vld [vmem:[%s1591 + $0x142] sm:$0xff]
      %v2008 = vld [vmem:[%s1591 + $0x152] sm:$0xff]
      %v2009 = vld [vmem:[%s1591 + $0x15a] sm:$0xff]
      %v2010 = vld [vmem:[%s1591 + $0x16a] sm:$0xff]
      %v2011 = vld [vmem:[%s1591 + $0x172] sm:$0xff]
      %s2012 = scalar_lea.vmem %s3, 1024
      %v2013 = vld [vmem:[%s2012] sm:$0xff]
      %v2014 = vld [vmem:[%s2012 + $0x8] sm:$0xff]
      %v2015 = vld [vmem:[%s2012 + $0x10] sm:$0xff]
      %v2016 = vld [vmem:[%s2012 + $0x18] sm:$0xff]
      %v2017 = vld [vmem:[%s2012 + $0x20] sm:$0xff]
      %v2018 = vld [vmem:[%s2012 + $0x28] sm:$0xff]
      %v2019 = vld [vmem:[%s2012 + $0x30] sm:$0xff]
      %v2020 = vld [vmem:[%s2012 + $0x38] sm:$0xff]
      %v2021 = vld [vmem:[%s2012 + $0x40] sm:$0xff]
      %v2022 = vld [vmem:[%s2012 + $0x48] sm:$0xff]
      %v2023 = vld [vmem:[%s2012 + $0x50] sm:$0xff]
      %v2024 = vld [vmem:[%s2012 + $0x58] sm:$0xff]
      %v2025 = vld [vmem:[%s2012 + $0x60] sm:$0xff]
      %v2026 = vld [vmem:[%s2012 + $0x68] sm:$0xff]
      %v2027 = vld [vmem:[%s2012 + $0x70] sm:$0xff]
      %v2028 = vld [vmem:[%s2012 + $0x78] sm:$0xff]
      %2029 = vmatpush.msra.mxu0 %v2028
      %2030 = vmatpush.msra.mxu0 %v2027
      %2031 = vmatpush.msra.mxu0 %v2026
      %2032 = vmatpush.msra.mxu0 %v2025
      %2033 = vmatpush.msra.mxu0 %v2024
      %2034 = vmatpush.msra.mxu0 %v2023
      %2035 = vmatpush.msra.mxu0 %v2022
      %2036 = vmatpush.msra.mxu0 %v2021
      %2037 = vmatpush.msra.mxu0 %v2020
      %2038 = vmatpush.msra.mxu0 %v2019
      %2039 = vmatpush.msra.mxu0 %v2018
      %2040 = vmatpush.msra.mxu0 %v2017
      %2041 = vmatpush.msra.mxu0 %v2016
      %2042 = vmatpush.msra.mxu0 %v2015
      %2043 = vmatpush.msra.mxu0 %v2014
      %2044 = vmatpush.msra.mxu0 %v2013
      %2045 = vmatmul.f32.gmra.mxu0 %v1980
      %v2046 = vpop.f32.mrf.mxu0
      %v2047 = vadd.f32 0.0, %v2046
      %2048 = vmatmul.f32.gmra.mxu0 %v1981
      %v2049 = vpop.f32.mrf.mxu0
      %v2050 = vadd.f32 0.0, %v2049
      %2051 = vmatmul.f32.gmra.mxu0 %v1982
      %v2052 = vpop.f32.mrf.mxu0
      %v2053 = vadd.f32 0.0, %v2052
      %2054 = vmatmul.f32.gmra.mxu0 %v1983
      %v2055 = vpop.f32.mrf.mxu0
      %v2056 = vadd.f32 0.0, %v2055
      %2057 = vmatmul.f32.gmra.mxu0 %v1984
      %v2058 = vpop.f32.mrf.mxu0
      %v2059 = vadd.f32 0.0, %v2058
      %2060 = vmatmul.f32.gmra.mxu0 %v1985
      %v2061 = vpop.f32.mrf.mxu0
      %v2062 = vadd.f32 0.0, %v2061
      %2063 = vmatmul.f32.gmra.mxu0 %v1986
      %v2064 = vpop.f32.mrf.mxu0
      %v2065 = vadd.f32 0.0, %v2064
      %2066 = vmatmul.f32.gmra.mxu0 %v1987
      %v2067 = vpop.f32.mrf.mxu0
      %v2068 = vadd.f32 0.0, %v2067
      %2069 = vmatmul.f32.gmra.mxu0 %v1988
      %v2070 = vpop.f32.mrf.mxu0
      %v2071 = vadd.f32 0.0, %v2070
      %2072 = vmatmul.f32.gmra.mxu0 %v1989
      %v2073 = vpop.f32.mrf.mxu0
      %v2074 = vadd.f32 0.0, %v2073
      %2075 = vmatmul.f32.gmra.mxu0 %v1990
      %v2076 = vpop.f32.mrf.mxu0
      %v2077 = vadd.f32 0.0, %v2076
      %2078 = vmatmul.f32.gmra.mxu0 %v1991
      %v2079 = vpop.f32.mrf.mxu0
      %v2080 = vadd.f32 0.0, %v2079
      %2081 = vmatmul.f32.gmra.mxu0 %v1992
      %v2082 = vpop.f32.mrf.mxu0
      %v2083 = vadd.f32 0.0, %v2082
      %2084 = vmatmul.f32.gmra.mxu0 %v1993
      %v2085 = vpop.f32.mrf.mxu0
      %v2086 = vadd.f32 0.0, %v2085
      %2087 = vmatmul.f32.gmra.mxu0 %v1994
      %v2088 = vpop.f32.mrf.mxu0
      %v2089 = vadd.f32 0.0, %v2088
      %2090 = vmatmul.f32.gmra.mxu0 %v1995
      %v2091 = vpop.f32.mrf.mxu0
      %v2092 = vadd.f32 0.0, %v2091
      %2093 = vmatmul.f32.gmra.mxu0 %v1996
      %v2094 = vpop.f32.mrf.mxu0
      %v2095 = vadd.f32 0.0, %v2094
      %2096 = vmatmul.f32.gmra.mxu0 %v1997
      %v2097 = vpop.f32.mrf.mxu0
      %v2098 = vadd.f32 0.0, %v2097
      %2099 = vmatmul.f32.gmra.mxu0 %v1998
      %v2100 = vpop.f32.mrf.mxu0
      %v2101 = vadd.f32 0.0, %v2100
      %2102 = vmatmul.f32.gmra.mxu0 %v1999
      %v2103 = vpop.f32.mrf.mxu0
      %v2104 = vadd.f32 0.0, %v2103
      %2105 = vmatmul.f32.gmra.mxu0 %v2000
      %v2106 = vpop.f32.mrf.mxu0
      %v2107 = vadd.f32 0.0, %v2106
      %2108 = vmatmul.f32.gmra.mxu0 %v2001
      %v2109 = vpop.f32.mrf.mxu0
      %v2110 = vadd.f32 0.0, %v2109
      %2111 = vmatmul.f32.gmra.mxu0 %v2002
      %v2112 = vpop.f32.mrf.mxu0
      %v2113 = vadd.f32 0.0, %v2112
      %2114 = vmatmul.f32.gmra.mxu0 %v2003
      %v2115 = vpop.f32.mrf.mxu0
      %v2116 = vadd.f32 0.0, %v2115
      %2117 = vmatmul.f32.gmra.mxu0 %v2004
      %v2118 = vpop.f32.mrf.mxu0
      %v2119 = vadd.f32 0.0, %v2118
      %2120 = vmatmul.f32.gmra.mxu0 %v2005
      %v2121 = vpop.f32.mrf.mxu0
      %v2122 = vadd.f32 0.0, %v2121
      %2123 = vmatmul.f32.gmra.mxu0 %v2006
      %v2124 = vpop.f32.mrf.mxu0
      %v2125 = vadd.f32 0.0, %v2124
      %2126 = vmatmul.f32.gmra.mxu0 %v2007
      %v2127 = vpop.f32.mrf.mxu0
      %v2128 = vadd.f32 0.0, %v2127
      %2129 = vmatmul.f32.gmra.mxu0 %v2008
      %v2130 = vpop.f32.mrf.mxu0
      %v2131 = vadd.f32 0.0, %v2130
      %2132 = vmatmul.f32.gmra.mxu0 %v2009
      %v2133 = vpop.f32.mrf.mxu0
      %v2134 = vadd.f32 0.0, %v2133
      %2135 = vmatmul.f32.gmra.mxu0 %v2010
      %v2136 = vpop.f32.mrf.mxu0
      %v2137 = vadd.f32 0.0, %v2136
      %2138 = vmatmul.f32.gmra.mxu0 %v2011
      %v2139 = vpop.f32.mrf.mxu0
      %v2140 = vadd.f32 0.0, %v2139
      %2141 = vdwg.mxu0
      %v2142 = vadd.f32 %v1948, %v2047
      %v2143 = vadd.f32 %v1949, %v2050
      %v2144 = vadd.f32 %v1950, %v2053
      %v2145 = vadd.f32 %v1951, %v2056
      %v2146 = vadd.f32 %v1952, %v2059
      %v2147 = vadd.f32 %v1953, %v2062
      %v2148 = vadd.f32 %v1954, %v2065
      %v2149 = vadd.f32 %v1955, %v2068
      %v2150 = vadd.f32 %v1956, %v2071
      %v2151 = vadd.f32 %v1957, %v2074
      %v2152 = vadd.f32 %v1958, %v2077
      %v2153 = vadd.f32 %v1959, %v2080
      %v2154 = vadd.f32 %v1960, %v2083
      %v2155 = vadd.f32 %v1961, %v2086
      %v2156 = vadd.f32 %v1962, %v2089
      %v2157 = vadd.f32 %v1963, %v2092
      %v2158 = vadd.f32 %v1964, %v2095
      %v2159 = vadd.f32 %v1965, %v2098
      %v2160 = vadd.f32 %v1966, %v2101
      %v2161 = vadd.f32 %v1967, %v2104
      %v2162 = vadd.f32 %v1968, %v2107
      %v2163 = vadd.f32 %v1969, %v2110
      %v2164 = vadd.f32 %v1970, %v2113
      %v2165 = vadd.f32 %v1971, %v2116
      %v2166 = vadd.f32 %v1972, %v2119
      %v2167 = vadd.f32 %v1973, %v2122
      %v2168 = vadd.f32 %v1974, %v2125
      %v2169 = vadd.f32 %v1975, %v2128
      %v2170 = vadd.f32 %v1976, %v2131
      %v2171 = vadd.f32 %v1977, %v2134
      %v2172 = vadd.f32 %v1978, %v2137
      %v2173 = vadd.f32 %v1979, %v2140
      %2174 = vst [vmem:[%s262] sm:$0xff] %v2142
      %2175 = vst [vmem:[%s262 + $0x8] sm:$0xff] %v2143
      %2176 = vst [vmem:[%s262 + $0x10] sm:$0xff] %v2144
      %2177 = vst [vmem:[%s262 + $0x18] sm:$0xff] %v2145
      %2178 = vst [vmem:[%s262 + $0x20] sm:$0xff] %v2146
      %2179 = vst [vmem:[%s262 + $0x28] sm:$0xff] %v2147
      %2180 = vst [vmem:[%s262 + $0x30] sm:$0xff] %v2148
      %2181 = vst [vmem:[%s262 + $0x38] sm:$0xff] %v2149
      %2182 = vst [vmem:[%s262 + $0x40] sm:$0xff] %v2150
      %2183 = vst [vmem:[%s262 + $0x48] sm:$0xff] %v2151
      %2184 = vst [vmem:[%s262 + $0x50] sm:$0xff] %v2152
      %2185 = vst [vmem:[%s262 + $0x58] sm:$0xff] %v2153
      %2186 = vst [vmem:[%s262 + $0x60] sm:$0xff] %v2154
      %2187 = vst [vmem:[%s262 + $0x68] sm:$0xff] %v2155
      %2188 = vst [vmem:[%s262 + $0x70] sm:$0xff] %v2156
      %2189 = vst [vmem:[%s262 + $0x78] sm:$0xff] %v2157
      %2190 = vst [vmem:[%s262 + $0x80] sm:$0xff] %v2158
      %2191 = vst [vmem:[%s262 + $0x88] sm:$0xff] %v2159
      %2192 = vst [vmem:[%s262 + $0x90] sm:$0xff] %v2160
      %2193 = vst [vmem:[%s262 + $0x98] sm:$0xff] %v2161
      %2194 = vst [vmem:[%s262 + $0xa0] sm:$0xff] %v2162
      %2195 = vst [vmem:[%s262 + $0xa8] sm:$0xff] %v2163
      %2196 = vst [vmem:[%s262 + $0xb0] sm:$0xff] %v2164
      %2197 = vst [vmem:[%s262 + $0xb8] sm:$0xff] %v2165
      %2198 = vst [vmem:[%s262 + $0xc0] sm:$0xff] %v2166
      %2199 = vst [vmem:[%s262 + $0xc8] sm:$0xff] %v2167
      %2200 = vst [vmem:[%s262 + $0xd0] sm:$0xff] %v2168
      %2201 = vst [vmem:[%s262 + $0xd8] sm:$0xff] %v2169
      %2202 = vst [vmem:[%s262 + $0xe0] sm:$0xff] %v2170
      %2203 = vst [vmem:[%s262 + $0xe8] sm:$0xff] %v2171
      %2204 = vst [vmem:[%s262 + $0xf0] sm:$0xff] %v2172
      %2205 = vst [vmem:[%s262 + $0xf8] sm:$0xff] %v2173
      %v2206 = vadd.f32 %v2142, %v2143
      %v2207 = vadd.f32 %v2206, %v2144
      %v2208 = vadd.f32 %v2207, %v2145
      %v2209 = vadd.f32 %v2208, %v2146
      %v2210 = vadd.f32 %v2209, %v2147
      %v2211 = vadd.f32 %v2210, %v2148
      %v2212 = vadd.f32 %v2211, %v2149
      %v2213 = vadd.f32 %v2212, %v2150
      %v2214 = vadd.f32 %v2213, %v2151
      %v2215 = vadd.f32 %v2214, %v2152
      %v2216 = vadd.f32 %v2215, %v2153
      %v2217 = vadd.f32 %v2216, %v2154
      %v2218 = vadd.f32 %v2217, %v2155
      %v2219 = vadd.f32 %v2218, %v2156
      %v2220 = vadd.f32 %v2219, %v2157
      %v2221 = vadd.f32 %v2220, %v2158
      %v2222 = vadd.f32 %v2221, %v2159
      %v2223 = vadd.f32 %v2222, %v2160
      %v2224 = vadd.f32 %v2223, %v2161
      %v2225 = vadd.f32 %v2224, %v2162
      %v2226 = vadd.f32 %v2225, %v2163
      %v2227 = vadd.f32 %v2226, %v2164
      %v2228 = vadd.f32 %v2227, %v2165
      %v2229 = vadd.f32 %v2228, %v2166
      %v2230 = vadd.f32 %v2229, %v2167
      %v2231 = vadd.f32 %v2230, %v2168
      %v2232 = vadd.f32 %v2231, %v2169
      %v2233 = vadd.f32 %v2232, %v2170
      %v2234 = vadd.f32 %v2233, %v2171
      %v2235 = vadd.f32 %v2234, %v2172
      %v2236 = vadd.f32 %v2235, %v2173
      %v2237 = vrot.slane %v2236, 4
      %v2238 = vadd.f32 %v2236, %v2237
      %v2239 = vrot.slane %v2238, 2
      %v2240 = vadd.f32 %v2238, %v2239
      %v2241 = vrot.slane %v2240, 1
      %v2242 = vadd.f32 %v2240, %v2241
      %2243 = vst [vmem:[%s265] sm:$0x1] %v2242
      %v2244 = vmul.f32 %v2142, %v2142
      %v2245 = vmul.f32 %v2143, %v2143
      %v2246 = vmul.f32 %v2144, %v2144
      %v2247 = vmul.f32 %v2145, %v2145
      %v2248 = vmul.f32 %v2146, %v2146
      %v2249 = vmul.f32 %v2147, %v2147
      %v2250 = vmul.f32 %v2148, %v2148
      %v2251 = vmul.f32 %v2149, %v2149
      %v2252 = vmul.f32 %v2150, %v2150
      %v2253 = vmul.f32 %v2151, %v2151
      %v2254 = vmul.f32 %v2152, %v2152
      %v2255 = vmul.f32 %v2153, %v2153
      %v2256 = vmul.f32 %v2154, %v2154
      %v2257 = vmul.f32 %v2155, %v2155
      %v2258 = vmul.f32 %v2156, %v2156
      %v2259 = vmul.f32 %v2157, %v2157
      %v2260 = vmul.f32 %v2158, %v2158
      %v2261 = vmul.f32 %v2159, %v2159
      %v2262 = vmul.f32 %v2160, %v2160
      %v2263 = vmul.f32 %v2161, %v2161
      %v2264 = vmul.f32 %v2162, %v2162
      %v2265 = vmul.f32 %v2163, %v2163
      %v2266 = vmul.f32 %v2164, %v2164
      %v2267 = vmul.f32 %v2165, %v2165
      %v2268 = vmul.f32 %v2166, %v2166
      %v2269 = vmul.f32 %v2167, %v2167
      %v2270 = vmul.f32 %v2168, %v2168
      %v2271 = vmul.f32 %v2169, %v2169
      %v2272 = vmul.f32 %v2170, %v2170
      %v2273 = vmul.f32 %v2171, %v2171
      %v2274 = vmul.f32 %v2172, %v2172
      %v2275 = vmul.f32 %v2173, %v2173
      %v2276 = vadd.f32 %v2244, %v2245
      %v2277 = vadd.f32 %v2276, %v2246
      %v2278 = vadd.f32 %v2277, %v2247
      %v2279 = vadd.f32 %v2278, %v2248
      %v2280 = vadd.f32 %v2279, %v2249
      %v2281 = vadd.f32 %v2280, %v2250
      %v2282 = vadd.f32 %v2281, %v2251
      %v2283 = vadd.f32 %v2282, %v2252
      %v2284 = vadd.f32 %v2283, %v2253
      %v2285 = vadd.f32 %v2284, %v2254
      %v2286 = vadd.f32 %v2285, %v2255
      %v2287 = vadd.f32 %v2286, %v2256
      %v2288 = vadd.f32 %v2287, %v2257
      %v2289 = vadd.f32 %v2288, %v2258
      %v2290 = vadd.f32 %v2289, %v2259
      %v2291 = vadd.f32 %v2290, %v2260
      %v2292 = vadd.f32 %v2291, %v2261
      %v2293 = vadd.f32 %v2292, %v2262
      %v2294 = vadd.f32 %v2293, %v2263
      %v2295 = vadd.f32 %v2294, %v2264
      %v2296 = vadd.f32 %v2295, %v2265
      %v2297 = vadd.f32 %v2296, %v2266
      %v2298 = vadd.f32 %v2297, %v2267
      %v2299 = vadd.f32 %v2298, %v2268
      %v2300 = vadd.f32 %v2299, %v2269
      %v2301 = vadd.f32 %v2300, %v2270
      %v2302 = vadd.f32 %v2301, %v2271
      %v2303 = vadd.f32 %v2302, %v2272
      %v2304 = vadd.f32 %v2303, %v2273
      %v2305 = vadd.f32 %v2304, %v2274
      %v2306 = vadd.f32 %v2305, %v2275
      %v2307 = vrot.slane %v2306, 4
      %v2308 = vadd.f32 %v2306, %v2307
      %v2309 = vrot.slane %v2308, 2
      %v2310 = vadd.f32 %v2308, %v2309
      %v2311 = vrot.slane %v2310, 1
      %v2312 = vadd.f32 %v2310, %v2311
      %2313 = vst [vmem:[%s268] sm:$0x1] %v2312
      %p2314 = scmp.lt.s32.totalorder %s18, 1
      %s2315 = scalar_select %p2314, %s18, 1
      %s2316 = smul.addr %s2315, 32
      %s2317 = smul.addr %s2316, 8
      %s2318 = scalar_lea.vmem %s4, %s2317
      %p2319 = scmp.lt.s32.totalorder %s18, 1
      %s2320 = scalar_select %p2319, %s18, 1
      %s2321 = scalar_lea.vmem %s5, %s2320
      %p2322 = scmp.lt.s32.totalorder %s18, 1
      %s2323 = scalar_select %p2322, %s18, 1
      %s2324 = scalar_lea.vmem %s6, %s2323
      // Predicated region
      $region37: #{basic_block_forward.4} parent=35 // pred_check
        %p2325 = pneg %p125
      $region38: #{basic_block_forward.4} parent=35 // pred_check_branch
        %2327 = sbr.rel (%p2325) target = $region40
      $region39: #{basic_block_forward.4} parent=35 // pred_region
        _
      $region40: #{basic_block_forward.4} parent=35 // pred_fallthru
        _
      // Predicated region
      $region41: #{basic_block_forward.4} parent=35 // pred_check
        %p2328 = pneg %p151
      $region42: #{basic_block_forward.4} parent=35 // pred_check_branch
        %2330 = sbr.rel (%p2328) target = $region44
      $region43: #{basic_block_forward.4} parent=35 // pred_region
        _
      $region44: #{basic_block_forward.4} parent=35 // pred_fallthru
        _
      // Predicated region
      $region45: #{basic_block_forward.4} parent=35 // pred_check
        %p2331 = pneg %p177
      $region46: #{basic_block_forward.4} parent=35 // pred_check_branch
        %2333 = sbr.rel (%p2331) target = $region48
      $region47: #{basic_block_forward.4} parent=35 // pred_region
        _
      $region48: #{basic_block_forward.4} parent=35 // pred_fallthru
        _
    $region36: #{basic_block_forward.4} parent=5 // pred_fallthru
      _
    %p2334 = scmp.le.s32.totalorder 2, %s13
    // Predicated region
    $region49: #{basic_block_forward.4} parent=5 // pred_check
      %p2335 = pneg %p2334
    $region50: #{basic_block_forward.4} parent=5 // pred_check_branch
      %2337 = sbr.rel (%p2335) target = $region52
    $region51: #{basic_block_forward.4} parent=5 // pred_region
      %s2338 = ssub.s32 %s13, 2
      // Predicated region
      $region53: #{basic_block_forward.4} parent=51 // pred_check
        %p2339 = pneg %p131
      $region54: #{basic_block_forward.4} parent=51 // pred_check_branch
        %2341 = sbr.rel (%p2339) target = $region56
      $region55: #{basic_block_forward.4} parent=51 // pred_region
        %p2342 = scmp.lt.s32.totalorder %s19, 1
        %s2343 = scalar_select %p2342, %s19, 1
        %s2344 = smul.addr %s2343, 32
        %s2345 = smul.addr %s2344, 8
        %s2346 = scalar_lea.vmem %s4, %s2345
      $region56: #{basic_block_forward.4} parent=51 // pred_fallthru
        _
      // Predicated region
      $region57: #{basic_block_forward.4} parent=51 // pred_check
        %p2347 = pneg %p157
      $region58: #{basic_block_forward.4} parent=51 // pred_check_branch
        %2349 = sbr.rel (%p2347) target = $region60
      $region59: #{basic_block_forward.4} parent=51 // pred_region
        %p2350 = scmp.lt.s32.totalorder %s19, 1
        %s2351 = scalar_select %p2350, %s19, 1
        %s2352 = scalar_lea.vmem %s5, %s2351
      $region60: #{basic_block_forward.4} parent=51 // pred_fallthru
        _
      // Predicated region
      $region61: #{basic_block_forward.4} parent=51 // pred_check
        %p2353 = pneg %p183
      $region62: #{basic_block_forward.4} parent=51 // pred_check_branch
        %2355 = sbr.rel (%p2353) target = $region64
      $region63: #{basic_block_forward.4} parent=51 // pred_region
        %p2356 = scmp.lt.s32.totalorder %s19, 1
        %s2357 = scalar_select %p2356, %s19, 1
        %s2358 = scalar_lea.vmem %s6, %s2357
      $region64: #{basic_block_forward.4} parent=51 // pred_fallthru
        _
    $region52: #{basic_block_forward.4} parent=5 // pred_fallthru
      _
  $region6: #{basic_block_forward.4} parent=0 // loop_footer
    %s17 = sadd.s32 1, %s13
  $region7: #{basic_block_forward.4} parent=0 // loop_footer_branch
    %12 = sbr.rel target = $region3
  $region8: #{basic_block_forward.4} parent=0 // loop_exit
    _

// kernel: basic_block_forward.3
$region0: #{basic_block_forward.3}
  #allocation0 [shape = 'u32[]', space=smem, size = 0x4, offset = 0x4, fixed_abs, tag = 'smem constant byte address 0x4 - core index']
  #allocation1 [shape = 'u32[72,128]{1,0:T(1,128)}', space=vmem, size = 0x9000, scoped, tag = 'internal scratch']
  %s0 = inlined_call_operand.vmem [shape: f32[2,18,18,128], index: 0, kind: input, shape index: {}]
  %s1 = inlined_call_operand.vmem [shape: f32[9,128,128], index: 1, kind: input, shape index: {}]
  %s2 = inlined_call_operand.vmem [shape: f32[2,16,16,128], index: 2, kind: output, shape index: {0}]
  %s3 = inlined_call_operand.vmem [shape: f32[2,1,128], index: 3, kind: output, shape index: {1}]
  %s4 = inlined_call_operand.vmem [shape: f32[2,1,128], index: 4, kind: output, shape index: {2}]
  %5 = xla_tuple %s2, %s3, %s4
  %s6 = sld [smem:[#allocation0]]
  $region57: #{basic_block_forward.3} parent=0
    _
  %s8 = ssub.s32 1, %s6
  %s9 = scalar_select 0, %s8, %s6
  loop: start=0, step=1, limit=4
  $region2: #{basic_block_forward.3} parent=0 // loop_pre_header
    _
  $region3: #{basic_block_forward.3} parent=0 // loop_header
    %s11 = sphi 0, %s15
    %p12 = scmp.ge.s32.totalorder %s11, 4
    %s21 = sphi 0, %s23
    %s24 = sphi 0, %s21
    %s25 = sphi 0, %s24
    %s41 = sphi 0, %s25
    %s45 = sphi 0, %s45
    %s47 = sphi 0, %s45
    %s48 = sphi 0, %s47
    %s62 = sphi 0, %s48
    %s68 = sphi 0, %s70
    %s71 = sphi 0, %s68
    %s72 = sphi 0, %s71
    %s88 = sphi 0, %s72
    %s94 = sphi 0, %s96
    %s97 = sphi 0, %s94
    %s98 = sphi 0, %s97
    %s114 = sphi 0, %s98
    %s120 = sphi 0, %s122
    %s123 = sphi 0, %s120
    %s124 = sphi 0, %s123
    %s140 = sphi 0, %s124
  $region4: #{basic_block_forward.3} parent=0 // loop_header_branch
    %14 = sbr.rel (%p12) target = $region8
  $region5: #{basic_block_forward.3} parent=0 // loop_body
    %s16 = ssub.s32 %s11, 1
    %s17 = ssub.s32 %s11, 2
    %s18 = sadd.s32 %s11, 1
    %s19 = ssub.s32 %s11, %s18
    %p20 = scmp.eq.s32.totalorder %s19, 0
    %s22 = sadd.s32 %s21, 1
    %s23 = scalar_select %p20, %s21, %s22
    %p26 = pneg %p20
    %p27 = scmp.eq.s32.totalorder %s11, 1
    %p28 = por %p26, %p27
    %p29 = scmp.ne.s32.totalorder %s21, %s24
    %p30 = scmp.eq.s32.totalorder %s11, 0
    %p31 = por %p29, %p30
    %p32 = scmp.ne.s32.totalorder %s21, %s24
    %p33 = scmp.eq.s32.totalorder %s16, 1
    %p34 = por %p32, %p33
    %p35 = scmp.ne.s32.totalorder %s24, %s25
    %p36 = scmp.eq.s32.totalorder %s16, 0
    %p37 = por %p35, %p36
    %p38 = scmp.ne.s32.totalorder %s24, %s25
    %p39 = scmp.eq.s32.totalorder %s17, 1
    %p40 = por %p38, %p39
    %p42 = scmp.ne.s32.totalorder %s25, %s41
    %p43 = scmp.eq.s32.totalorder %s17, 0
    %p44 = por %p42, %p43
    %s46 = sadd.s32 %s45, 1
    %p49 = scmp.eq.s32.totalorder %s11, 1
    %p50 = scmp.ne.s32.totalorder %s45, %s47
    %p51 = scmp.eq.s32.totalorder %s11, 0
    %p52 = por %p50, %p51
    %p53 = scmp.ne.s32.totalorder %s45, %s47
    %p54 = scmp.eq.s32.totalorder %s16, 1
    %p55 = por %p53, %p54
    %p56 = scmp.ne.s32.totalorder %s47, %s48
    %p57 = scmp.eq.s32.totalorder %s16, 0
    %p58 = por %p56, %p57
    %p59 = scmp.ne.s32.totalorder %s47, %s48
    %p60 = scmp.eq.s32.totalorder %s17, 1
    %p61 = por %p59, %p60
    %p63 = scmp.ne.s32.totalorder %s48, %s62
    %p64 = scmp.eq.s32.totalorder %s17, 0
    %p65 = por %p63, %p64
    %s66 = ssub.s32 %s11, %s18
    %p67 = scmp.eq.s32.totalorder %s66, 0
    %s69 = sadd.s32 %s68, 1
    %s70 = scalar_select %p67, %s68, %s69
    %p73 = pneg %p67
    %p74 = scmp.eq.s32.totalorder %s11, 1
    %p75 = por %p73, %p74
    %p76 = scmp.ne.s32.totalorder %s68, %s71
    %p77 = scmp.eq.s32.totalorder %s11, 0
    %p78 = por %p76, %p77
    %p79 = scmp.ne.s32.totalorder %s68, %s71
    %p80 = scmp.eq.s32.totalorder %s16, 1
    %p81 = por %p79, %p80
    %p82 = scmp.ne.s32.totalorder %s71, %s72
    %p83 = scmp.eq.s32.totalorder %s16, 0
    %p84 = por %p82, %p83
    %p85 = scmp.ne.s32.totalorder %s71, %s72
    %p86 = scmp.eq.s32.totalorder %s17, 1
    %p87 = por %p85, %p86
    %p89 = scmp.ne.s32.totalorder %s72, %s88
    %p90 = scmp.eq.s32.totalorder %s17, 0
    %p91 = por %p89, %p90
    %s92 = ssub.s32 %s11, %s18
    %p93 = scmp.eq.s32.totalorder %s92, 0
    %s95 = sadd.s32 %s94, 1
    %s96 = scalar_select %p93, %s94, %s95
    %p99 = pneg %p93
    %p100 = scmp.eq.s32.totalorder %s11, 1
    %p101 = por %p99, %p100
    %p102 = scmp.ne.s32.totalorder %s94, %s97
    %p103 = scmp.eq.s32.totalorder %s11, 0
    %p104 = por %p102, %p103
    %p105 = scmp.ne.s32.totalorder %s94, %s97
    %p106 = scmp.eq.s32.totalorder %s16, 1
    %p107 = por %p105, %p106
    %p108 = scmp.ne.s32.totalorder %s97, %s98
    %p109 = scmp.eq.s32.totalorder %s16, 0
    %p110 = por %p108, %p109
    %p111 = scmp.ne.s32.totalorder %s97, %s98
    %p112 = scmp.eq.s32.totalorder %s17, 1
    %p113 = por %p111, %p112
    %p115 = scmp.ne.s32.totalorder %s98, %s114
    %p116 = scmp.eq.s32.totalorder %s17, 0
    %p117 = por %p115, %p116
    %s118 = ssub.s32 %s11, %s18
    %p119 = scmp.eq.s32.totalorder %s118, 0
    %s121 = sadd.s32 %s120, 1
    %s122 = scalar_select %p119, %s120, %s121
    %p125 = pneg %p119
    %p126 = scmp.eq.s32.totalorder %s11, 1
    %p127 = por %p125, %p126
    %p128 = scmp.ne.s32.totalorder %s120, %s123
    %p129 = scmp.eq.s32.totalorder %s11, 0
    %p130 = por %p128, %p129
    %p131 = scmp.ne.s32.totalorder %s120, %s123
    %p132 = scmp.eq.s32.totalorder %s16, 1
    %p133 = por %p131, %p132
    %p134 = scmp.ne.s32.totalorder %s123, %s124
    %p135 = scmp.eq.s32.totalorder %s16, 0
    %p136 = por %p134, %p135
    %p137 = scmp.ne.s32.totalorder %s123, %s124
    %p138 = scmp.eq.s32.totalorder %s17, 1
    %p139 = por %p137, %p138
    %p141 = scmp.ne.s32.totalorder %s124, %s140
    %p142 = scmp.eq.s32.totalorder %s17, 0
    %p143 = por %p141, %p142
    %p144 = scmp.le.s32.totalorder 1, %s11
    %p145 = scmp.lt.s32.totalorder %s11, 3
    %p146 = pnand %p144, %p145
    %p147 = pneg %p146
    // Predicated region
    $region9: #{basic_block_forward.3} parent=5 // pred_check
      _
    $region10: #{basic_block_forward.3} parent=5 // pred_check_branch
      %149 = sbr.rel (%p146) target = $region12
    $region11: #{basic_block_forward.3} parent=5 // pred_region
      %s150 = ssub.s32 %s11, 1
      // Predicated region
      $region13: #{basic_block_forward.3} parent=11 // pred_check
        %p151 = pneg %p58
      $region14: #{basic_block_forward.3} parent=11 // pred_check_branch
        %153 = sbr.rel (%p151) target = $region16
      $region15: #{basic_block_forward.3} parent=11 // pred_region
        _
      $region16: #{basic_block_forward.3} parent=11 // pred_fallthru
        _
    $region12: #{basic_block_forward.3} parent=5 // pred_fallthru
      _
    %p154 = scmp.lt.s32.totalorder %s11, 2
    // Predicated region
    $region17: #{basic_block_forward.3} parent=5 // pred_check
      %p155 = pneg %p154
    $region18: #{basic_block_forward.3} parent=5 // pred_check_branch
      %157 = sbr.rel (%p155) target = $region20
    $region19: #{basic_block_forward.3} parent=5 // pred_region
      // Predicated region
      $region21: #{basic_block_forward.3} parent=19 // pred_check
        %p158 = pneg %p31
      $region22: #{basic_block_forward.3} parent=19 // pred_check_branch
        %160 = sbr.rel (%p158) target = $region24
      $region23: #{basic_block_forward.3} parent=19 // pred_region
        %p161 = scmp.lt.s32.totalorder %s11, 1
        %s162 = scalar_select %p161, %s11, 1
        %s163 = smul.addr %s162, 54
        %s164 = smul.addr %s163, 8
        %s165 = scalar_lea.vmem %s0, %s164
      $region24: #{basic_block_forward.3} parent=19 // pred_fallthru
        _
    $region20: #{basic_block_forward.3} parent=5 // pred_fallthru
      _
    %p166 = scmp.le.s32.totalorder 1, %s11
    %p167 = scmp.lt.s32.totalorder %s11, 3
    %p168 = pnand %p166, %p167
    %p169 = pneg %p168
    // Predicated region
    $region25: #{basic_block_forward.3} parent=5 // pred_check
      _
    $region26: #{basic_block_forward.3} parent=5 // pred_check_branch
      %171 = sbr.rel (%p168) target = $region28
    $region27: #{basic_block_forward.3} parent=5 // pred_region
      %s172 = ssub.s32 %s11, 1
      %p173 = scmp.lt.s32.totalorder %s16, 1
      %s174 = scalar_select %p173, %s16, 1
      %s175 = smul.addr %s174, 54
      %s176 = smul.addr %s175, 8
      %s177 = scalar_lea.vmem %s0, %s176
      %p178 = pneg %p37
      %p179 = pneg %p34
      %p180 = pneg %p58
      %p181 = pneg %p55
      %p182 = pneg %p84
      %p183 = pneg %p81
      %p184 = scmp.lt.s32.totalorder %s16, 1
      %s185 = scalar_select %p184, %s16, 1
      %s186 = smul.addr %s185, 32
      %s187 = smul.addr %s186, 8
      %s188 = scalar_lea.vmem %s2, %s187
      %p189 = pneg %p110
      %p190 = pneg %p107
      %p191 = scmp.lt.s32.totalorder %s16, 1
      %s192 = scalar_select %p191, %s16, 1
      %s193 = scalar_lea.vmem %s3, %s192
      %p194 = pneg %p136
      %p195 = pneg %p133
      %p196 = scmp.lt.s32.totalorder %s16, 1
      %s197 = scalar_select %p196, %s16, 1
      %s198 = scalar_lea.vmem %s4, %s197
      %p199 = scmp.lt.s32.totalorder %s16, 1
      %s200 = scalar_select %p199, %s16, 1
      %s201 = smul.addr %s200, 54
      %s202 = smul.addr %s201, 8
      %s203 = scalar_lea.vmem %s0, %s202
      %p204 = scmp.lt.s32.totalorder %s16, 1
      %s205 = scalar_select %p204, %s16, 1
      %s206 = smul.addr %s205, 32
      %s207 = smul.addr %s206, 8
      %s208 = scalar_lea.vmem %s2, %s207
      %p209 = scmp.lt.s32.totalorder %s16, 1
      %s210 = scalar_select %p209, %s16, 1
      %s211 = scalar_lea.vmem %s3, %s210
      %p212 = scmp.lt.s32.totalorder %s16, 1
      %s213 = scalar_select %p212, %s16, 1
      %s214 = scalar_lea.vmem %s4, %s213
      %v215 = vld [vmem:[%s203] sm:$0xff]
      %v216 = vld [vmem:[%s203 + $0x8] sm:$0xff]
      %v217 = vld [vmem:[%s203 + $0x18] sm:$0xff]
      %v218 = vld [vmem:[%s203 + $0x20] sm:$0xff]
      %v219 = vld [vmem:[%s203 + $0x30] sm:$0xff]
      %v220 = vld [vmem:[%s203 + $0x38] sm:$0xff]
      %v221 = vld [vmem:[%s203 + $0x48] sm:$0xff]
      %v222 = vld [vmem:[%s203 + $0x50] sm:$0xff]
      %v223 = vld [vmem:[%s203 + $0x60] sm:$0xff]
      %v224 = vld [vmem:[%s203 + $0x68] sm:$0xff]
      %v225 = vld [vmem:[%s203 + $0x78] sm:$0xff]
      %v226 = vld [vmem:[%s203 + $0x80] sm:$0xff]
      %v227 = vld [vmem:[%s203 + $0x90] sm:$0xff]
      %v228 = vld [vmem:[%s203 + $0x98] sm:$0xff]
      %v229 = vld [vmem:[%s203 + $0xa8] sm:$0xff]
      %v230 = vld [vmem:[%s203 + $0xb0] sm:$0xff]
      %v231 = vld [vmem:[%s203 + $0xc0] sm:$0xff]
      %v232 = vld [vmem:[%s203 + $0xc8] sm:$0xff]
      %v233 = vld [vmem:[%s203 + $0xd8] sm:$0xff]
      %v234 = vld [vmem:[%s203 + $0xe0] sm:$0xff]
      %v235 = vld [vmem:[%s203 + $0xf0] sm:$0xff]
      %v236 = vld [vmem:[%s203 + $0xf8] sm:$0xff]
      %v237 = vld [vmem:[%s203 + $0x108] sm:$0xff]
      %v238 = vld [vmem:[%s203 + $0x110] sm:$0xff]
      %v239 = vld [vmem:[%s203 + $0x120] sm:$0xff]
      %v240 = vld [vmem:[%s203 + $0x128] sm:$0xff]
      %v241 = vld [vmem:[%s203 + $0x138] sm:$0xff]
      %v242 = vld [vmem:[%s203 + $0x140] sm:$0xff]
      %v243 = vld [vmem:[%s203 + $0x150] sm:$0xff]
      %v244 = vld [vmem:[%s203 + $0x158] sm:$0xff]
      %v245 = vld [vmem:[%s203 + $0x168] sm:$0xff]
      %v246 = vld [vmem:[%s203 + $0x170] sm:$0xff]
      %v247 = vld [vmem:[%s1] sm:$0xff]
      %v248 = vld [vmem:[%s1 + $0x8] sm:$0xff]
      %v249 = vld [vmem:[%s1 + $0x10] sm:$0xff]
      %v250 = vld [vmem:[%s1 + $0x18] sm:$0xff]
      %v251 = vld [vmem:[%s1 + $0x20] sm:$0xff]
      %v252 = vld [vmem:[%s1 + $0x28] sm:$0xff]
      %v253 = vld [vmem:[%s1 + $0x30] sm:$0xff]
      %v254 = vld [vmem:[%s1 + $0x38] sm:$0xff]
      %v255 = vld [vmem:[%s1 + $0x40] sm:$0xff]
      %v256 = vld [vmem:[%s1 + $0x48] sm:$0xff]
      %v257 = vld [vmem:[%s1 + $0x50] sm:$0xff]
      %v258 = vld [vmem:[%s1 + $0x58] sm:$0xff]
      %v259 = vld [vmem:[%s1 + $0x60] sm:$0xff]
      %v260 = vld [vmem:[%s1 + $0x68] sm:$0xff]
      %v261 = vld [vmem:[%s1 + $0x70] sm:$0xff]
      %v262 = vld [vmem:[%s1 + $0x78] sm:$0xff]
      %v263 = vld [vmem:[%s203 + $0x1] sm:$0xff]
      %v264 = vld [vmem:[%s203 + $0x9] sm:$0xff]
      %v265 = vld [vmem:[%s203 + $0x19] sm:$0xff]
      %v266 = vld [vmem:[%s203 + $0x21] sm:$0xff]
      %v267 = vld [vmem:[%s203 + $0x31] sm:$0xff]
      %v268 = vld [vmem:[%s203 + $0x39] sm:$0xff]
      %v269 = vld [vmem:[%s203 + $0x49] sm:$0xff]
      %v270 = vld [vmem:[%s203 + $0x51] sm:$0xff]
      %v271 = vld [vmem:[%s203 + $0x61] sm:$0xff]
      %v272 = vld [vmem:[%s203 + $0x69] sm:$0xff]
      %v273 = vld [vmem:[%s203 + $0x79] sm:$0xff]
      %v274 = vld [vmem:[%s203 + $0x81] sm:$0xff]
      %v275 = vld [vmem:[%s203 + $0x91] sm:$0xff]
      %v276 = vld [vmem:[%s203 + $0x99] sm:$0xff]
      %v277 = vld [vmem:[%s203 + $0xa9] sm:$0xff]
      %v278 = vld [vmem:[%s203 + $0xb1] sm:$0xff]
      %v279 = vld [vmem:[%s203 + $0xc1] sm:$0xff]
      %v280 = vld [vmem:[%s203 + $0xc9] sm:$0xff]
      %v281 = vld [vmem:[%s203 + $0xd9] sm:$0xff]
      %v282 = vld [vmem:[%s203 + $0xe1] sm:$0xff]
      %v283 = vld [vmem:[%s203 + $0xf1] sm:$0xff]
      %v284 = vld [vmem:[%s203 + $0xf9] sm:$0xff]
      %v285 = vld [vmem:[%s203 + $0x109] sm:$0xff]
      %v286 = vld [vmem:[%s203 + $0x111] sm:$0xff]
      %v287 = vld [vmem:[%s203 + $0x121] sm:$0xff]
      %v288 = vld [vmem:[%s203 + $0x129] sm:$0xff]
      %v289 = vld [vmem:[%s203 + $0x139] sm:$0xff]
      %v290 = vld [vmem:[%s203 + $0x141] sm:$0xff]
      %v291 = vld [vmem:[%s203 + $0x151] sm:$0xff]
      %v292 = vld [vmem:[%s203 + $0x159] sm:$0xff]
      %v293 = vld [vmem:[%s203 + $0x169] sm:$0xff]
      %v294 = vld [vmem:[%s203 + $0x171] sm:$0xff]
      %s295 = scalar_lea.vmem %s1, 128
      %v296 = vld [vmem:[%s295] sm:$0xff]
      %v297 = vld [vmem:[%s295 + $0x8] sm:$0xff]
      %v298 = vld [vmem:[%s295 + $0x10] sm:$0xff]
      %v299 = vld [vmem:[%s295 + $0x18] sm:$0xff]
      %v300 = vld [vmem:[%s295 + $0x20] sm:$0xff]
      %v301 = vld [vmem:[%s295 + $0x28] sm:$0xff]
      %v302 = vld [vmem:[%s295 + $0x30] sm:$0xff]
      %v303 = vld [vmem:[%s295 + $0x38] sm:$0xff]
      %v304 = vld [vmem:[%s295 + $0x40] sm:$0xff]
      %v305 = vld [vmem:[%s295 + $0x48] sm:$0xff]
      %v306 = vld [vmem:[%s295 + $0x50] sm:$0xff]
      %v307 = vld [vmem:[%s295 + $0x58] sm:$0xff]
      %v308 = vld [vmem:[%s295 + $0x60] sm:$0xff]
      %v309 = vld [vmem:[%s295 + $0x68] sm:$0xff]
      %v310 = vld [vmem:[%s295 + $0x70] sm:$0xff]
      %v311 = vld [vmem:[%s295 + $0x78] sm:$0xff]
      %312 = vmatpush.msra.mxu0 %v311
      %313 = vmatpush.msra.mxu0 %v310
      %314 = vmatpush.msra.mxu0 %v309
      %315 = vmatpush.msra.mxu0 %v308
      %316 = vmatpush.msra.mxu0 %v307
      %317 = vmatpush.msra.mxu0 %v306
      %318 = vmatpush.msra.mxu0 %v305
      %319 = vmatpush.msra.mxu0 %v304
      %320 = vmatpush.msra.mxu0 %v303
      %321 = vmatpush.msra.mxu0 %v302
      %322 = vmatpush.msra.mxu0 %v301
      %323 = vmatpush.msra.mxu0 %v300
      %324 = vmatpush.msra.mxu0 %v299
      %325 = vmatpush.msra.mxu0 %v298
      %326 = vmatpush.msra.mxu0 %v297
      %327 = vmatpush.msra.mxu0 %v296
      %328 = vmatmul.f32.gmra.mxu0 %v263
      %v329 = vpop.f32.mrf.mxu0
      %v330 = vadd.f32 0.0, %v329
      %331 = vmatmul.f32.gmra.mxu0 %v264
      %v332 = vpop.f32.mrf.mxu0
      %v333 = vadd.f32 0.0, %v332
      %334 = vmatmul.f32.gmra.mxu0 %v265
      %v335 = vpop.f32.mrf.mxu0
      %v336 = vadd.f32 0.0, %v335
      %337 = vmatmul.f32.gmra.mxu0 %v266
      %v338 = vpop.f32.mrf.mxu0
      %v339 = vadd.f32 0.0, %v338
      %340 = vmatmul.f32.gmra.mxu0 %v267
      %v341 = vpop.f32.mrf.mxu0
      %v342 = vadd.f32 0.0, %v341
      %343 = vmatmul.f32.gmra.mxu0 %v268
      %v344 = vpop.f32.mrf.mxu0
      %v345 = vadd.f32 0.0, %v344
      %346 = vmatmul.f32.gmra.mxu0 %v269
      %v347 = vpop.f32.mrf.mxu0
      %v348 = vadd.f32 0.0, %v347
      %349 = vmatmul.f32.gmra.mxu0 %v270
      %v350 = vpop.f32.mrf.mxu0
      %v351 = vadd.f32 0.0, %v350
      %352 = vmatmul.f32.gmra.mxu0 %v271
      %v353 = vpop.f32.mrf.mxu0
      %v354 = vadd.f32 0.0, %v353
      %355 = vmatmul.f32.gmra.mxu0 %v272
      %v356 = vpop.f32.mrf.mxu0
      %v357 = vadd.f32 0.0, %v356
      %358 = vmatmul.f32.gmra.mxu0 %v273
      %v359 = vpop.f32.mrf.mxu0
      %v360 = vadd.f32 0.0, %v359
      %361 = vmatmul.f32.gmra.mxu0 %v274
      %v362 = vpop.f32.mrf.mxu0
      %v363 = vadd.f32 0.0, %v362
      %364 = vmatmul.f32.gmra.mxu0 %v275
      %v365 = vpop.f32.mrf.mxu0
      %v366 = vadd.f32 0.0, %v365
      %367 = vmatmul.f32.gmra.mxu0 %v276
      %v368 = vpop.f32.mrf.mxu0
      %v369 = vadd.f32 0.0, %v368
      %370 = vmatmul.f32.gmra.mxu0 %v277
      %v371 = vpop.f32.mrf.mxu0
      %v372 = vadd.f32 0.0, %v371
      %373 = vmatmul.f32.gmra.mxu0 %v278
      %v374 = vpop.f32.mrf.mxu0
      %v375 = vadd.f32 0.0, %v374
      %376 = vmatmul.f32.gmra.mxu0 %v279
      %v377 = vpop.f32.mrf.mxu0
      %v378 = vadd.f32 0.0, %v377
      %379 = vmatmul.f32.gmra.mxu0 %v280
      %v380 = vpop.f32.mrf.mxu0
      %v381 = vadd.f32 0.0, %v380
      %382 = vmatmul.f32.gmra.mxu0 %v281
      %v383 = vpop.f32.mrf.mxu0
      %v384 = vadd.f32 0.0, %v383
      %385 = vmatmul.f32.gmra.mxu0 %v282
      %v386 = vpop.f32.mrf.mxu0
      %v387 = vadd.f32 0.0, %v386
      %388 = vmatmul.f32.gmra.mxu0 %v283
      %v389 = vpop.f32.mrf.mxu0
      %v390 = vadd.f32 0.0, %v389
      %391 = vmatmul.f32.gmra.mxu0 %v284
      %v392 = vpop.f32.mrf.mxu0
      %v393 = vadd.f32 0.0, %v392
      %394 = vmatmul.f32.gmra.mxu0 %v285
      %v395 = vpop.f32.mrf.mxu0
      %v396 = vadd.f32 0.0, %v395
      %397 = vmatmul.f32.gmra.mxu0 %v286
      %v398 = vpop.f32.mrf.mxu0
      %v399 = vadd.f32 0.0, %v398
      %400 = vmatmul.f32.gmra.mxu0 %v287
      %v401 = vpop.f32.mrf.mxu0
      %v402 = vadd.f32 0.0, %v401
      %403 = vmatmul.f32.gmra.mxu0 %v288
      %v404 = vpop.f32.mrf.mxu0
      %v405 = vadd.f32 0.0, %v404
      %406 = vmatmul.f32.gmra.mxu0 %v289
      %v407 = vpop.f32.mrf.mxu0
      %v408 = vadd.f32 0.0, %v407
      %409 = vmatmul.f32.gmra.mxu0 %v290
      %v410 = vpop.f32.mrf.mxu0
      %v411 = vadd.f32 0.0, %v410
      %412 = vmatmul.f32.gmra.mxu0 %v291
      %v413 = vpop.f32.mrf.mxu0
      %v414 = vadd.f32 0.0, %v413
      %415 = vmatmul.f32.gmra.mxu0 %v292
      %v416 = vpop.f32.mrf.mxu0
      %v417 = vadd.f32 0.0, %v416
      %418 = vmatmul.f32.gmra.mxu0 %v293
      %v419 = vpop.f32.mrf.mxu0
      %v420 = vadd.f32 0.0, %v419
      %421 = vmatmul.f32.gmra.mxu0 %v294
      %v422 = vpop.f32.mrf.mxu0
      %v423 = vadd.f32 0.0, %v422
      %424 = vdwg.mxu0
      %425 = vmatpush.msra.mxu0 %v262
      %426 = vmatpush.msra.mxu0 %v261
      %427 = vmatpush.msra.mxu0 %v260
      %428 = vmatpush.msra.mxu0 %v259
      %429 = vmatpush.msra.mxu0 %v258
      %430 = vmatpush.msra.mxu0 %v257
      %431 = vmatpush.msra.mxu0 %v256
      %432 = vmatpush.msra.mxu0 %v255
      %433 = vmatpush.msra.mxu0 %v254
      %434 = vmatpush.msra.mxu0 %v253
      %435 = vmatpush.msra.mxu0 %v252
      %436 = vmatpush.msra.mxu0 %v251
      %437 = vmatpush.msra.mxu0 %v250
      %438 = vmatpush.msra.mxu0 %v249
      %439 = vmatpush.msra.mxu0 %v248
      %440 = vmatpush.msra.mxu0 %v247
      %441 = vmatmul.f32.gmra.mxu0 %v215
      %v442 = vpop.f32.mrf.mxu0
      %v443 = vadd.f32 %v330, %v442
      %444 = vmatmul.f32.gmra.mxu0 %v216
      %v445 = vpop.f32.mrf.mxu0
      %v446 = vadd.f32 %v333, %v445
      %447 = vmatmul.f32.gmra.mxu0 %v217
      %v448 = vpop.f32.mrf.mxu0
      %v449 = vadd.f32 %v336, %v448
      %450 = vmatmul.f32.gmra.mxu0 %v218
      %v451 = vpop.f32.mrf.mxu0
      %v452 = vadd.f32 %v339, %v451
      %453 = vmatmul.f32.gmra.mxu0 %v219
      %v454 = vpop.f32.mrf.mxu0
      %v455 = vadd.f32 %v342, %v454
      %456 = vmatmul.f32.gmra.mxu0 %v220
      %v457 = vpop.f32.mrf.mxu0
      %v458 = vadd.f32 %v345, %v457
      %459 = vmatmul.f32.gmra.mxu0 %v221
      %v460 = vpop.f32.mrf.mxu0
      %v461 = vadd.f32 %v348, %v460
      %462 = vmatmul.f32.gmra.mxu0 %v222
      %v463 = vpop.f32.mrf.mxu0
      %v464 = vadd.f32 %v351, %v463
      %465 = vmatmul.f32.gmra.mxu0 %v223
      %v466 = vpop.f32.mrf.mxu0
      %v467 = vadd.f32 %v354, %v466
      %468 = vmatmul.f32.gmra.mxu0 %v224
      %v469 = vpop.f32.mrf.mxu0
      %v470 = vadd.f32 %v357, %v469
      %471 = vmatmul.f32.gmra.mxu0 %v225
      %v472 = vpop.f32.mrf.mxu0
      %v473 = vadd.f32 %v360, %v472
      %474 = vmatmul.f32.gmra.mxu0 %v226
      %v475 = vpop.f32.mrf.mxu0
      %v476 = vadd.f32 %v363, %v475
      %477 = vmatmul.f32.gmra.mxu0 %v227
      %v478 = vpop.f32.mrf.mxu0
      %v479 = vadd.f32 %v366, %v478
      %480 = vmatmul.f32.gmra.mxu0 %v228
      %v481 = vpop.f32.mrf.mxu0
      %v482 = vadd.f32 %v369, %v481
      %483 = vmatmul.f32.gmra.mxu0 %v229
      %v484 = vpop.f32.mrf.mxu0
      %v485 = vadd.f32 %v372, %v484
      %486 = vmatmul.f32.gmra.mxu0 %v230
      %v487 = vpop.f32.mrf.mxu0
      %v488 = vadd.f32 %v375, %v487
      %489 = vmatmul.f32.gmra.mxu0 %v231
      %v490 = vpop.f32.mrf.mxu0
      %v491 = vadd.f32 %v378, %v490
      %492 = vmatmul.f32.gmra.mxu0 %v232
      %v493 = vpop.f32.mrf.mxu0
      %v494 = vadd.f32 %v381, %v493
      %495 = vmatmul.f32.gmra.mxu0 %v233
      %v496 = vpop.f32.mrf.mxu0
      %v497 = vadd.f32 %v384, %v496
      %498 = vmatmul.f32.gmra.mxu0 %v234
      %v499 = vpop.f32.mrf.mxu0
      %v500 = vadd.f32 %v387, %v499
      %501 = vmatmul.f32.gmra.mxu0 %v235
      %v502 = vpop.f32.mrf.mxu0
      %v503 = vadd.f32 %v390, %v502
      %504 = vmatmul.f32.gmra.mxu0 %v236
      %v505 = vpop.f32.mrf.mxu0
      %v506 = vadd.f32 %v393, %v505
      %507 = vmatmul.f32.gmra.mxu0 %v237
      %v508 = vpop.f32.mrf.mxu0
      %v509 = vadd.f32 %v396, %v508
      %510 = vmatmul.f32.gmra.mxu0 %v238
      %v511 = vpop.f32.mrf.mxu0
      %v512 = vadd.f32 %v399, %v511
      %513 = vmatmul.f32.gmra.mxu0 %v239
      %v514 = vpop.f32.mrf.mxu0
      %v515 = vadd.f32 %v402, %v514
      %516 = vmatmul.f32.gmra.mxu0 %v240
      %v517 = vpop.f32.mrf.mxu0
      %v518 = vadd.f32 %v405, %v517
      %519 = vmatmul.f32.gmra.mxu0 %v241
      %v520 = vpop.f32.mrf.mxu0
      %v521 = vadd.f32 %v408, %v520
      %522 = vmatmul.f32.gmra.mxu0 %v242
      %v523 = vpop.f32.mrf.mxu0
      %v524 = vadd.f32 %v411, %v523
      %525 = vmatmul.f32.gmra.mxu0 %v243
      %v526 = vpop.f32.mrf.mxu0
      %v527 = vadd.f32 %v414, %v526
      %528 = vmatmul.f32.gmra.mxu0 %v244
      %v529 = vpop.f32.mrf.mxu0
      %v530 = vadd.f32 %v417, %v529
      %531 = vmatmul.f32.gmra.mxu0 %v245
      %v532 = vpop.f32.mrf.mxu0
      %v533 = vadd.f32 %v420, %v532
      %534 = vmatmul.f32.gmra.mxu0 %v246
      %v535 = vpop.f32.mrf.mxu0
      %v536 = vadd.f32 %v423, %v535
      %537 = vdwg.mxu0
      %v538 = vld [vmem:[%s203 + $0x2] sm:$0xff]
      %v539 = vld [vmem:[%s203 + $0xa] sm:$0xff]
      %v540 = vld [vmem:[%s203 + $0x1a] sm:$0xff]
      %v541 = vld [vmem:[%s203 + $0x22] sm:$0xff]
      %v542 = vld [vmem:[%s203 + $0x32] sm:$0xff]
      %v543 = vld [vmem:[%s203 + $0x3a] sm:$0xff]
      %v544 = vld [vmem:[%s203 + $0x4a] sm:$0xff]
      %v545 = vld [vmem:[%s203 + $0x52] sm:$0xff]
      %v546 = vld [vmem:[%s203 + $0x62] sm:$0xff]
      %v547 = vld [vmem:[%s203 + $0x6a] sm:$0xff]
      %v548 = vld [vmem:[%s203 + $0x7a] sm:$0xff]
      %v549 = vld [vmem:[%s203 + $0x82] sm:$0xff]
      %v550 = vld [vmem:[%s203 + $0x92] sm:$0xff]
      %v551 = vld [vmem:[%s203 + $0x9a] sm:$0xff]
      %v552 = vld [vmem:[%s203 + $0xaa] sm:$0xff]
      %v553 = vld [vmem:[%s203 + $0xb2] sm:$0xff]
      %v554 = vld [vmem:[%s203 + $0xc2] sm:$0xff]
      %v555 = vld [vmem:[%s203 + $0xca] sm:$0xff]
      %v556 = vld [vmem:[%s203 + $0xda] sm:$0xff]
      %v557 = vld [vmem:[%s203 + $0xe2] sm:$0xff]
      %v558 = vld [vmem:[%s203 + $0xf2] sm:$0xff]
      %v559 = vld [vmem:[%s203 + $0xfa] sm:$0xff]
      %v560 = vld [vmem:[%s203 + $0x10a] sm:$0xff]
      %v561 = vld [vmem:[%s203 + $0x112] sm:$0xff]
      %v562 = vld [vmem:[%s203 + $0x122] sm:$0xff]
      %v563 = vld [vmem:[%s203 + $0x12a] sm:$0xff]
      %v564 = vld [vmem:[%s203 + $0x13a] sm:$0xff]
      %v565 = vld [vmem:[%s203 + $0x142] sm:$0xff]
      %v566 = vld [vmem:[%s203 + $0x152] sm:$0xff]
      %v567 = vld [vmem:[%s203 + $0x15a] sm:$0xff]
      %v568 = vld [vmem:[%s203 + $0x16a] sm:$0xff]
      %v569 = vld [vmem:[%s203 + $0x172] sm:$0xff]
      %s570 = scalar_lea.vmem %s1, 256
      %v571 = vld [vmem:[%s570] sm:$0xff]
      %v572 = vld [vmem:[%s570 + $0x8] sm:$0xff]
      %v573 = vld [vmem:[%s570 + $0x10] sm:$0xff]
      %v574 = vld [vmem:[%s570 + $0x18] sm:$0xff]
      %v575 = vld [vmem:[%s570 + $0x20] sm:$0xff]
      %v576 = vld [vmem:[%s570 + $0x28] sm:$0xff]
      %v577 = vld [vmem:[%s570 + $0x30] sm:$0xff]
      %v578 = vld [vmem:[%s570 + $0x38] sm:$0xff]
      %v579 = vld [vmem:[%s570 + $0x40] sm:$0xff]
      %v580 = vld [vmem:[%s570 + $0x48] sm:$0xff]
      %v581 = vld [vmem:[%s570 + $0x50] sm:$0xff]
      %v582 = vld [vmem:[%s570 + $0x58] sm:$0xff]
      %v583 = vld [vmem:[%s570 + $0x60] sm:$0xff]
      %v584 = vld [vmem:[%s570 + $0x68] sm:$0xff]
      %v585 = vld [vmem:[%s570 + $0x70] sm:$0xff]
      %v586 = vld [vmem:[%s570 + $0x78] sm:$0xff]
      %587 = vmatpush.msra.mxu0 %v586
      %588 = vmatpush.msra.mxu0 %v585
      %589 = vmatpush.msra.mxu0 %v584
      %590 = vmatpush.msra.mxu0 %v583
      %591 = vmatpush.msra.mxu0 %v582
      %592 = vmatpush.msra.mxu0 %v581
      %593 = vmatpush.msra.mxu0 %v580
      %594 = vmatpush.msra.mxu0 %v579
      %595 = vmatpush.msra.mxu0 %v578
      %596 = vmatpush.msra.mxu0 %v577
      %597 = vmatpush.msra.mxu0 %v576
      %598 = vmatpush.msra.mxu0 %v575
      %599 = vmatpush.msra.mxu0 %v574
      %600 = vmatpush.msra.mxu0 %v573
      %601 = vmatpush.msra.mxu0 %v572
      %602 = vmatpush.msra.mxu0 %v571
      %603 = vmatmul.f32.gmra.mxu0 %v538
      %v604 = vpop.f32.mrf.mxu0
      %v605 = vadd.f32 0.0, %v604
      %606 = vmatmul.f32.gmra.mxu0 %v539
      %v607 = vpop.f32.mrf.mxu0
      %v608 = vadd.f32 0.0, %v607
      %609 = vmatmul.f32.gmra.mxu0 %v540
      %v610 = vpop.f32.mrf.mxu0
      %v611 = vadd.f32 0.0, %v610
      %612 = vmatmul.f32.gmra.mxu0 %v541
      %v613 = vpop.f32.mrf.mxu0
      %v614 = vadd.f32 0.0, %v613
      %615 = vmatmul.f32.gmra.mxu0 %v542
      %v616 = vpop.f32.mrf.mxu0
      %v617 = vadd.f32 0.0, %v616
      %618 = vmatmul.f32.gmra.mxu0 %v543
      %v619 = vpop.f32.mrf.mxu0
      %v620 = vadd.f32 0.0, %v619
      %621 = vmatmul.f32.gmra.mxu0 %v544
      %v622 = vpop.f32.mrf.mxu0
      %v623 = vadd.f32 0.0, %v622
      %624 = vmatmul.f32.gmra.mxu0 %v545
      %v625 = vpop.f32.mrf.mxu0
      %v626 = vadd.f32 0.0, %v625
      %627 = vmatmul.f32.gmra.mxu0 %v546
      %v628 = vpop.f32.mrf.mxu0
      %v629 = vadd.f32 0.0, %v628
      %630 = vmatmul.f32.gmra.mxu0 %v547
      %v631 = vpop.f32.mrf.mxu0
      %v632 = vadd.f32 0.0, %v631
      %633 = vmatmul.f32.gmra.mxu0 %v548
      %v634 = vpop.f32.mrf.mxu0
      %v635 = vadd.f32 0.0, %v634
      %636 = vmatmul.f32.gmra.mxu0 %v549
      %v637 = vpop.f32.mrf.mxu0
      %v638 = vadd.f32 0.0, %v637
      %639 = vmatmul.f32.gmra.mxu0 %v550
      %v640 = vpop.f32.mrf.mxu0
      %v641 = vadd.f32 0.0, %v640
      %642 = vmatmul.f32.gmra.mxu0 %v551
      %v643 = vpop.f32.mrf.mxu0
      %v644 = vadd.f32 0.0, %v643
      %645 = vmatmul.f32.gmra.mxu0 %v552
      %v646 = vpop.f32.mrf.mxu0
      %v647 = vadd.f32 0.0, %v646
      %648 = vmatmul.f32.gmra.mxu0 %v553
      %v649 = vpop.f32.mrf.mxu0
      %v650 = vadd.f32 0.0, %v649
      %651 = vmatmul.f32.gmra.mxu0 %v554
      %v652 = vpop.f32.mrf.mxu0
      %v653 = vadd.f32 0.0, %v652
      %654 = vmatmul.f32.gmra.mxu0 %v555
      %v655 = vpop.f32.mrf.mxu0
      %v656 = vadd.f32 0.0, %v655
      %657 = vmatmul.f32.gmra.mxu0 %v556
      %v658 = vpop.f32.mrf.mxu0
      %v659 = vadd.f32 0.0, %v658
      %660 = vmatmul.f32.gmra.mxu0 %v557
      %v661 = vpop.f32.mrf.mxu0
      %v662 = vadd.f32 0.0, %v661
      %663 = vmatmul.f32.gmra.mxu0 %v558
      %v664 = vpop.f32.mrf.mxu0
      %v665 = vadd.f32 0.0, %v664
      %666 = vmatmul.f32.gmra.mxu0 %v559
      %v667 = vpop.f32.mrf.mxu0
      %v668 = vadd.f32 0.0, %v667
      %669 = vmatmul.f32.gmra.mxu0 %v560
      %v670 = vpop.f32.mrf.mxu0
      %v671 = vadd.f32 0.0, %v670
      %672 = vmatmul.f32.gmra.mxu0 %v561
      %v673 = vpop.f32.mrf.mxu0
      %v674 = vadd.f32 0.0, %v673
      %675 = vmatmul.f32.gmra.mxu0 %v562
      %v676 = vpop.f32.mrf.mxu0
      %v677 = vadd.f32 0.0, %v676
      %678 = vmatmul.f32.gmra.mxu0 %v563
      %v679 = vpop.f32.mrf.mxu0
      %v680 = vadd.f32 0.0, %v679
      %681 = vmatmul.f32.gmra.mxu0 %v564
      %v682 = vpop.f32.mrf.mxu0
      %v683 = vadd.f32 0.0, %v682
      %684 = vmatmul.f32.gmra.mxu0 %v565
      %v685 = vpop.f32.mrf.mxu0
      %v686 = vadd.f32 0.0, %v685
      %687 = vmatmul.f32.gmra.mxu0 %v566
      %v688 = vpop.f32.mrf.mxu0
      %v689 = vadd.f32 0.0, %v688
      %690 = vmatmul.f32.gmra.mxu0 %v567
      %v691 = vpop.f32.mrf.mxu0
      %v692 = vadd.f32 0.0, %v691
      %693 = vmatmul.f32.gmra.mxu0 %v568
      %v694 = vpop.f32.mrf.mxu0
      %v695 = vadd.f32 0.0, %v694
      %696 = vmatmul.f32.gmra.mxu0 %v569
      %v697 = vpop.f32.mrf.mxu0
      %v698 = vadd.f32 0.0, %v697
      %699 = vdwg.mxu0
      %v700 = vadd.f32 %v443, %v605
      %v701 = vadd.f32 %v446, %v608
      %v702 = vadd.f32 %v449, %v611
      %v703 = vadd.f32 %v452, %v614
      %v704 = vadd.f32 %v455, %v617
      %v705 = vadd.f32 %v458, %v620
      %v706 = vadd.f32 %v461, %v623
      %v707 = vadd.f32 %v464, %v626
      %v708 = vadd.f32 %v467, %v629
      %v709 = vadd.f32 %v470, %v632
      %v710 = vadd.f32 %v473, %v635
      %v711 = vadd.f32 %v476, %v638
      %v712 = vadd.f32 %v479, %v641
      %v713 = vadd.f32 %v482, %v644
      %v714 = vadd.f32 %v485, %v647
      %v715 = vadd.f32 %v488, %v650
      %v716 = vadd.f32 %v491, %v653
      %v717 = vadd.f32 %v494, %v656
      %v718 = vadd.f32 %v497, %v659
      %v719 = vadd.f32 %v500, %v662
      %v720 = vadd.f32 %v503, %v665
      %v721 = vadd.f32 %v506, %v668
      %v722 = vadd.f32 %v509, %v671
      %v723 = vadd.f32 %v512, %v674
      %v724 = vadd.f32 %v515, %v677
      %v725 = vadd.f32 %v518, %v680
      %v726 = vadd.f32 %v521, %v683
      %v727 = vadd.f32 %v524, %v686
      %v728 = vadd.f32 %v527, %v689
      %v729 = vadd.f32 %v530, %v692
      %v730 = vadd.f32 %v533, %v695
      %v731 = vadd.f32 %v536, %v698
      %s732 = scalar_lea.vmem %s203, 24
      %v733 = vld [vmem:[%s732] sm:$0xff]
      %v734 = vld [vmem:[%s732 + $0x8] sm:$0xff]
      %v735 = vld [vmem:[%s732 + $0x18] sm:$0xff]
      %v736 = vld [vmem:[%s732 + $0x20] sm:$0xff]
      %v737 = vld [vmem:[%s732 + $0x30] sm:$0xff]
      %v738 = vld [vmem:[%s732 + $0x38] sm:$0xff]
      %v739 = vld [vmem:[%s732 + $0x48] sm:$0xff]
      %v740 = vld [vmem:[%s732 + $0x50] sm:$0xff]
      %v741 = vld [vmem:[%s732 + $0x60] sm:$0xff]
      %v742 = vld [vmem:[%s732 + $0x68] sm:$0xff]
      %v743 = vld [vmem:[%s732 + $0x78] sm:$0xff]
      %v744 = vld [vmem:[%s732 + $0x80] sm:$0xff]
      %v745 = vld [vmem:[%s732 + $0x90] sm:$0xff]
      %v746 = vld [vmem:[%s732 + $0x98] sm:$0xff]
      %v747 = vld [vmem:[%s732 + $0xa8] sm:$0xff]
      %v748 = vld [vmem:[%s732 + $0xb0] sm:$0xff]
      %v749 = vld [vmem:[%s732 + $0xc0] sm:$0xff]
      %v750 = vld [vmem:[%s732 + $0xc8] sm:$0xff]
      %v751 = vld [vmem:[%s732 + $0xd8] sm:$0xff]
      %v752 = vld [vmem:[%s732 + $0xe0] sm:$0xff]
      %v753 = vld [vmem:[%s732 + $0xf0] sm:$0xff]
      %v754 = vld [vmem:[%s732 + $0xf8] sm:$0xff]
      %v755 = vld [vmem:[%s732 + $0x108] sm:$0xff]
      %v756 = vld [vmem:[%s732 + $0x110] sm:$0xff]
      %v757 = vld [vmem:[%s732 + $0x120] sm:$0xff]
      %v758 = vld [vmem:[%s732 + $0x128] sm:$0xff]
      %v759 = vld [vmem:[%s732 + $0x138] sm:$0xff]
      %v760 = vld [vmem:[%s732 + $0x140] sm:$0xff]
      %v761 = vld [vmem:[%s732 + $0x150] sm:$0xff]
      %v762 = vld [vmem:[%s732 + $0x158] sm:$0xff]
      %v763 = vld [vmem:[%s732 + $0x168] sm:$0xff]
      %v764 = vld [vmem:[%s732 + $0x170] sm:$0xff]
      %s765 = scalar_lea.vmem %s1, 384
      %v766 = vld [vmem:[%s765] sm:$0xff]
      %v767 = vld [vmem:[%s765 + $0x8] sm:$0xff]
      %v768 = vld [vmem:[%s765 + $0x10] sm:$0xff]
      %v769 = vld [vmem:[%s765 + $0x18] sm:$0xff]
      %v770 = vld [vmem:[%s765 + $0x20] sm:$0xff]
      %v771 = vld [vmem:[%s765 + $0x28] sm:$0xff]
      %v772 = vld [vmem:[%s765 + $0x30] sm:$0xff]
      %v773 = vld [vmem:[%s765 + $0x38] sm:$0xff]
      %v774 = vld [vmem:[%s765 + $0x40] sm:$0xff]
      %v775 = vld [vmem:[%s765 + $0x48] sm:$0xff]
      %v776 = vld [vmem:[%s765 + $0x50] sm:$0xff]
      %v777 = vld [vmem:[%s765 + $0x58] sm:$0xff]
      %v778 = vld [vmem:[%s765 + $0x60] sm:$0xff]
      %v779 = vld [vmem:[%s765 + $0x68] sm:$0xff]
      %v780 = vld [vmem:[%s765 + $0x70] sm:$0xff]
      %v781 = vld [vmem:[%s765 + $0x78] sm:$0xff]
      %782 = vmatpush.msra.mxu0 %v781
      %783 = vmatpush.msra.mxu0 %v780
      %784 = vmatpush.msra.mxu0 %v779
      %785 = vmatpush.msra.mxu0 %v778
      %786 = vmatpush.msra.mxu0 %v777
      %787 = vmatpush.msra.mxu0 %v776
      %788 = vmatpush.msra.mxu0 %v775
      %789 = vmatpush.msra.mxu0 %v774
      %790 = vmatpush.msra.mxu0 %v773
      %791 = vmatpush.msra.mxu0 %v772
      %792 = vmatpush.msra.mxu0 %v771
      %793 = vmatpush.msra.mxu0 %v770
      %794 = vmatpush.msra.mxu0 %v769
      %795 = vmatpush.msra.mxu0 %v768
      %796 = vmatpush.msra.mxu0 %v767
      %797 = vmatpush.msra.mxu0 %v766
      %798 = vmatmul.f32.gmra.mxu0 %v733
      %v799 = vpop.f32.mrf.mxu0
      %v800 = vadd.f32 0.0, %v799
      %801 = vmatmul.f32.gmra.mxu0 %v734
      %v802 = vpop.f32.mrf.mxu0
      %v803 = vadd.f32 0.0, %v802
      %804 = vmatmul.f32.gmra.mxu0 %v735
      %v805 = vpop.f32.mrf.mxu0
      %v806 = vadd.f32 0.0, %v805
      %807 = vmatmul.f32.gmra.mxu0 %v736
      %v808 = vpop.f32.mrf.mxu0
      %v809 = vadd.f32 0.0, %v808
      %810 = vmatmul.f32.gmra.mxu0 %v737
      %v811 = vpop.f32.mrf.mxu0
      %v812 = vadd.f32 0.0, %v811
      %813 = vmatmul.f32.gmra.mxu0 %v738
      %v814 = vpop.f32.mrf.mxu0
      %v815 = vadd.f32 0.0, %v814
      %816 = vmatmul.f32.gmra.mxu0 %v739
      %v817 = vpop.f32.mrf.mxu0
      %v818 = vadd.f32 0.0, %v817
      %819 = vmatmul.f32.gmra.mxu0 %v740
      %v820 = vpop.f32.mrf.mxu0
      %v821 = vadd.f32 0.0, %v820
      %822 = vmatmul.f32.gmra.mxu0 %v741
      %v823 = vpop.f32.mrf.mxu0
      %v824 = vadd.f32 0.0, %v823
      %825 = vmatmul.f32.gmra.mxu0 %v742
      %v826 = vpop.f32.mrf.mxu0
      %v827 = vadd.f32 0.0, %v826
      %828 = vmatmul.f32.gmra.mxu0 %v743
      %v829 = vpop.f32.mrf.mxu0
      %v830 = vadd.f32 0.0, %v829
      %831 = vmatmul.f32.gmra.mxu0 %v744
      %v832 = vpop.f32.mrf.mxu0
      %v833 = vadd.f32 0.0, %v832
      %834 = vmatmul.f32.gmra.mxu0 %v745
      %v835 = vpop.f32.mrf.mxu0
      %v836 = vadd.f32 0.0, %v835
      %837 = vmatmul.f32.gmra.mxu0 %v746
      %v838 = vpop.f32.mrf.mxu0
      %v839 = vadd.f32 0.0, %v838
      %840 = vmatmul.f32.gmra.mxu0 %v747
      %v841 = vpop.f32.mrf.mxu0
      %v842 = vadd.f32 0.0, %v841
      %843 = vmatmul.f32.gmra.mxu0 %v748
      %v844 = vpop.f32.mrf.mxu0
      %v845 = vadd.f32 0.0, %v844
      %846 = vmatmul.f32.gmra.mxu0 %v749
      %v847 = vpop.f32.mrf.mxu0
      %v848 = vadd.f32 0.0, %v847
      %849 = vmatmul.f32.gmra.mxu0 %v750
      %v850 = vpop.f32.mrf.mxu0
      %v851 = vadd.f32 0.0, %v850
      %852 = vmatmul.f32.gmra.mxu0 %v751
      %v853 = vpop.f32.mrf.mxu0
      %v854 = vadd.f32 0.0, %v853
      %855 = vmatmul.f32.gmra.mxu0 %v752
      %v856 = vpop.f32.mrf.mxu0
      %v857 = vadd.f32 0.0, %v856
      %858 = vmatmul.f32.gmra.mxu0 %v753
      %v859 = vpop.f32.mrf.mxu0
      %v860 = vadd.f32 0.0, %v859
      %861 = vmatmul.f32.gmra.mxu0 %v754
      %v862 = vpop.f32.mrf.mxu0
      %v863 = vadd.f32 0.0, %v862
      %864 = vmatmul.f32.gmra.mxu0 %v755
      %v865 = vpop.f32.mrf.mxu0
      %v866 = vadd.f32 0.0, %v865
      %867 = vmatmul.f32.gmra.mxu0 %v756
      %v868 = vpop.f32.mrf.mxu0
      %v869 = vadd.f32 0.0, %v868
      %870 = vmatmul.f32.gmra.mxu0 %v757
      %v871 = vpop.f32.mrf.mxu0
      %v872 = vadd.f32 0.0, %v871
      %873 = vmatmul.f32.gmra.mxu0 %v758
      %v874 = vpop.f32.mrf.mxu0
      %v875 = vadd.f32 0.0, %v874
      %876 = vmatmul.f32.gmra.mxu0 %v759
      %v877 = vpop.f32.mrf.mxu0
      %v878 = vadd.f32 0.0, %v877
      %879 = vmatmul.f32.gmra.mxu0 %v760
      %v880 = vpop.f32.mrf.mxu0
      %v881 = vadd.f32 0.0, %v880
      %882 = vmatmul.f32.gmra.mxu0 %v761
      %v883 = vpop.f32.mrf.mxu0
      %v884 = vadd.f32 0.0, %v883
      %885 = vmatmul.f32.gmra.mxu0 %v762
      %v886 = vpop.f32.mrf.mxu0
      %v887 = vadd.f32 0.0, %v886
      %888 = vmatmul.f32.gmra.mxu0 %v763
      %v889 = vpop.f32.mrf.mxu0
      %v890 = vadd.f32 0.0, %v889
      %891 = vmatmul.f32.gmra.mxu0 %v764
      %v892 = vpop.f32.mrf.mxu0
      %v893 = vadd.f32 0.0, %v892
      %894 = vdwg.mxu0
      %v895 = vadd.f32 %v700, %v800
      %v896 = vadd.f32 %v701, %v803
      %v897 = vadd.f32 %v702, %v806
      %v898 = vadd.f32 %v703, %v809
      %v899 = vadd.f32 %v704, %v812
      %v900 = vadd.f32 %v705, %v815
      %v901 = vadd.f32 %v706, %v818
      %v902 = vadd.f32 %v707, %v821
      %v903 = vadd.f32 %v708, %v824
      %v904 = vadd.f32 %v709, %v827
      %v905 = vadd.f32 %v710, %v830
      %v906 = vadd.f32 %v711, %v833
      %v907 = vadd.f32 %v712, %v836
      %v908 = vadd.f32 %v713, %v839
      %v909 = vadd.f32 %v714, %v842
      %v910 = vadd.f32 %v715, %v845
      %v911 = vadd.f32 %v716, %v848
      %v912 = vadd.f32 %v717, %v851
      %v913 = vadd.f32 %v718, %v854
      %v914 = vadd.f32 %v719, %v857
      %v915 = vadd.f32 %v720, %v860
      %v916 = vadd.f32 %v721, %v863
      %v917 = vadd.f32 %v722, %v866
      %v918 = vadd.f32 %v723, %v869
      %v919 = vadd.f32 %v724, %v872
      %v920 = vadd.f32 %v725, %v875
      %v921 = vadd.f32 %v726, %v878
      %v922 = vadd.f32 %v727, %v881
      %v923 = vadd.f32 %v728, %v884
      %v924 = vadd.f32 %v729, %v887
      %v925 = vadd.f32 %v730, %v890
      %v926 = vadd.f32 %v731, %v893
      %v927 = vld [vmem:[%s732 + $0x1] sm:$0xff]
      %v928 = vld [vmem:[%s732 + $0x9] sm:$0xff]
      %v929 = vld [vmem:[%s732 + $0x19] sm:$0xff]
      %v930 = vld [vmem:[%s732 + $0x21] sm:$0xff]
      %v931 = vld [vmem:[%s732 + $0x31] sm:$0xff]
      %v932 = vld [vmem:[%s732 + $0x39] sm:$0xff]
      %v933 = vld [vmem:[%s732 + $0x49] sm:$0xff]
      %v934 = vld [vmem:[%s732 + $0x51] sm:$0xff]
      %v935 = vld [vmem:[%s732 + $0x61] sm:$0xff]
      %v936 = vld [vmem:[%s732 + $0x69] sm:$0xff]
      %v937 = vld [vmem:[%s732 + $0x79] sm:$0xff]
      %v938 = vld [vmem:[%s732 + $0x81] sm:$0xff]
      %v939 = vld [vmem:[%s732 + $0x91] sm:$0xff]
      %v940 = vld [vmem:[%s732 + $0x99] sm:$0xff]
      %v941 = vld [vmem:[%s732 + $0xa9] sm:$0xff]
      %v942 = vld [vmem:[%s732 + $0xb1] sm:$0xff]
      %v943 = vld [vmem:[%s732 + $0xc1] sm:$0xff]
      %v944 = vld [vmem:[%s732 + $0xc9] sm:$0xff]
      %v945 = vld [vmem:[%s732 + $0xd9] sm:$0xff]
      %v946 = vld [vmem:[%s732 + $0xe1] sm:$0xff]
      %v947 = vld [vmem:[%s732 + $0xf1] sm:$0xff]
      %v948 = vld [vmem:[%s732 + $0xf9] sm:$0xff]
      %v949 = vld [vmem:[%s732 + $0x109] sm:$0xff]
      %v950 = vld [vmem:[%s732 + $0x111] sm:$0xff]
      %v951 = vld [vmem:[%s732 + $0x121] sm:$0xff]
      %v952 = vld [vmem:[%s732 + $0x129] sm:$0xff]
      %v953 = vld [vmem:[%s732 + $0x139] sm:$0xff]
      %v954 = vld [vmem:[%s732 + $0x141] sm:$0xff]
      %v955 = vld [vmem:[%s732 + $0x151] sm:$0xff]
      %v956 = vld [vmem:[%s732 + $0x159] sm:$0xff]
      %v957 = vld [vmem:[%s732 + $0x169] sm:$0xff]
      %v958 = vld [vmem:[%s732 + $0x171] sm:$0xff]
      %s959 = scalar_lea.vmem %s1, 512
      %v960 = vld [vmem:[%s959] sm:$0xff]
      %v961 = vld [vmem:[%s959 + $0x8] sm:$0xff]
      %v962 = vld [vmem:[%s959 + $0x10] sm:$0xff]
      %v963 = vld [vmem:[%s959 + $0x18] sm:$0xff]
      %v964 = vld [vmem:[%s959 + $0x20] sm:$0xff]
      %v965 = vld [vmem:[%s959 + $0x28] sm:$0xff]
      %v966 = vld [vmem:[%s959 + $0x30] sm:$0xff]
      %v967 = vld [vmem:[%s959 + $0x38] sm:$0xff]
      %v968 = vld [vmem:[%s959 + $0x40] sm:$0xff]
      %v969 = vld [vmem:[%s959 + $0x48] sm:$0xff]
      %v970 = vld [vmem:[%s959 + $0x50] sm:$0xff]
      %v971 = vld [vmem:[%s959 + $0x58] sm:$0xff]
      %v972 = vld [vmem:[%s959 + $0x60] sm:$0xff]
      %v973 = vld [vmem:[%s959 + $0x68] sm:$0xff]
      %v974 = vld [vmem:[%s959 + $0x70] sm:$0xff]
      %v975 = vld [vmem:[%s959 + $0x78] sm:$0xff]
      %976 = vmatpush.msra.mxu0 %v975
      %977 = vmatpush.msra.mxu0 %v974
      %978 = vmatpush.msra.mxu0 %v973
      %979 = vmatpush.msra.mxu0 %v972
      %980 = vmatpush.msra.mxu0 %v971
      %981 = vmatpush.msra.mxu0 %v970
      %982 = vmatpush.msra.mxu0 %v969
      %983 = vmatpush.msra.mxu0 %v968
      %984 = vmatpush.msra.mxu0 %v967
      %985 = vmatpush.msra.mxu0 %v966
      %986 = vmatpush.msra.mxu0 %v965
      %987 = vmatpush.msra.mxu0 %v964
      %988 = vmatpush.msra.mxu0 %v963
      %989 = vmatpush.msra.mxu0 %v962
      %990 = vmatpush.msra.mxu0 %v961
      %991 = vmatpush.msra.mxu0 %v960
      %992 = vmatmul.f32.gmra.mxu0 %v927
      %v993 = vpop.f32.mrf.mxu0
      %v994 = vadd.f32 0.0, %v993
      %995 = vmatmul.f32.gmra.mxu0 %v928
      %v996 = vpop.f32.mrf.mxu0
      %v997 = vadd.f32 0.0, %v996
      %998 = vmatmul.f32.gmra.mxu0 %v929
      %v999 = vpop.f32.mrf.mxu0
      %v1000 = vadd.f32 0.0, %v999
      %1001 = vmatmul.f32.gmra.mxu0 %v930
      %v1002 = vpop.f32.mrf.mxu0
      %v1003 = vadd.f32 0.0, %v1002
      %1004 = vmatmul.f32.gmra.mxu0 %v931
      %v1005 = vpop.f32.mrf.mxu0
      %v1006 = vadd.f32 0.0, %v1005
      %1007 = vmatmul.f32.gmra.mxu0 %v932
      %v1008 = vpop.f32.mrf.mxu0
      %v1009 = vadd.f32 0.0, %v1008
      %1010 = vmatmul.f32.gmra.mxu0 %v933
      %v1011 = vpop.f32.mrf.mxu0
      %v1012 = vadd.f32 0.0, %v1011
      %1013 = vmatmul.f32.gmra.mxu0 %v934
      %v1014 = vpop.f32.mrf.mxu0
      %v1015 = vadd.f32 0.0, %v1014
      %1016 = vmatmul.f32.gmra.mxu0 %v935
      %v1017 = vpop.f32.mrf.mxu0
      %v1018 = vadd.f32 0.0, %v1017
      %1019 = vmatmul.f32.gmra.mxu0 %v936
      %v1020 = vpop.f32.mrf.mxu0
      %v1021 = vadd.f32 0.0, %v1020
      %1022 = vmatmul.f32.gmra.mxu0 %v937
      %v1023 = vpop.f32.mrf.mxu0
      %v1024 = vadd.f32 0.0, %v1023
      %1025 = vmatmul.f32.gmra.mxu0 %v938
      %v1026 = vpop.f32.mrf.mxu0
      %v1027 = vadd.f32 0.0, %v1026
      %1028 = vmatmul.f32.gmra.mxu0 %v939
      %v1029 = vpop.f32.mrf.mxu0
      %v1030 = vadd.f32 0.0, %v1029
      %1031 = vmatmul.f32.gmra.mxu0 %v940
      %v1032 = vpop.f32.mrf.mxu0
      %v1033 = vadd.f32 0.0, %v1032
      %1034 = vmatmul.f32.gmra.mxu0 %v941
      %v1035 = vpop.f32.mrf.mxu0
      %v1036 = vadd.f32 0.0, %v1035
      %1037 = vmatmul.f32.gmra.mxu0 %v942
      %v1038 = vpop.f32.mrf.mxu0
      %v1039 = vadd.f32 0.0, %v1038
      %1040 = vmatmul.f32.gmra.mxu0 %v943
      %v1041 = vpop.f32.mrf.mxu0
      %v1042 = vadd.f32 0.0, %v1041
      %1043 = vmatmul.f32.gmra.mxu0 %v944
      %v1044 = vpop.f32.mrf.mxu0
      %v1045 = vadd.f32 0.0, %v1044
      %1046 = vmatmul.f32.gmra.mxu0 %v945
      %v1047 = vpop.f32.mrf.mxu0
      %v1048 = vadd.f32 0.0, %v1047
      %1049 = vmatmul.f32.gmra.mxu0 %v946
      %v1050 = vpop.f32.mrf.mxu0
      %v1051 = vadd.f32 0.0, %v1050
      %1052 = vmatmul.f32.gmra.mxu0 %v947
      %v1053 = vpop.f32.mrf.mxu0
      %v1054 = vadd.f32 0.0, %v1053
      %1055 = vmatmul.f32.gmra.mxu0 %v948
      %v1056 = vpop.f32.mrf.mxu0
      %v1057 = vadd.f32 0.0, %v1056
      %1058 = vmatmul.f32.gmra.mxu0 %v949
      %v1059 = vpop.f32.mrf.mxu0
      %v1060 = vadd.f32 0.0, %v1059
      %1061 = vmatmul.f32.gmra.mxu0 %v950
      %v1062 = vpop.f32.mrf.mxu0
      %v1063 = vadd.f32 0.0, %v1062
      %1064 = vmatmul.f32.gmra.mxu0 %v951
      %v1065 = vpop.f32.mrf.mxu0
      %v1066 = vadd.f32 0.0, %v1065
      %1067 = vmatmul.f32.gmra.mxu0 %v952
      %v1068 = vpop.f32.mrf.mxu0
      %v1069 = vadd.f32 0.0, %v1068
      %1070 = vmatmul.f32.gmra.mxu0 %v953
      %v1071 = vpop.f32.mrf.mxu0
      %v1072 = vadd.f32 0.0, %v1071
      %1073 = vmatmul.f32.gmra.mxu0 %v954
      %v1074 = vpop.f32.mrf.mxu0
      %v1075 = vadd.f32 0.0, %v1074
      %1076 = vmatmul.f32.gmra.mxu0 %v955
      %v1077 = vpop.f32.mrf.mxu0
      %v1078 = vadd.f32 0.0, %v1077
      %1079 = vmatmul.f32.gmra.mxu0 %v956
      %v1080 = vpop.f32.mrf.mxu0
      %v1081 = vadd.f32 0.0, %v1080
      %1082 = vmatmul.f32.gmra.mxu0 %v957
      %v1083 = vpop.f32.mrf.mxu0
      %v1084 = vadd.f32 0.0, %v1083
      %1085 = vmatmul.f32.gmra.mxu0 %v958
      %v1086 = vpop.f32.mrf.mxu0
      %v1087 = vadd.f32 0.0, %v1086
      %1088 = vdwg.mxu0
      %v1089 = vadd.f32 %v895, %v994
      %v1090 = vadd.f32 %v896, %v997
      %v1091 = vadd.f32 %v897, %v1000
      %v1092 = vadd.f32 %v898, %v1003
      %v1093 = vadd.f32 %v899, %v1006
      %v1094 = vadd.f32 %v900, %v1009
      %v1095 = vadd.f32 %v901, %v1012
      %v1096 = vadd.f32 %v902, %v1015
      %v1097 = vadd.f32 %v903, %v1018
      %v1098 = vadd.f32 %v904, %v1021
      %v1099 = vadd.f32 %v905, %v1024
      %v1100 = vadd.f32 %v906, %v1027
      %v1101 = vadd.f32 %v907, %v1030
      %v1102 = vadd.f32 %v908, %v1033
      %v1103 = vadd.f32 %v909, %v1036
      %v1104 = vadd.f32 %v910, %v1039
      %v1105 = vadd.f32 %v911, %v1042
      %v1106 = vadd.f32 %v912, %v1045
      %v1107 = vadd.f32 %v913, %v1048
      %v1108 = vadd.f32 %v914, %v1051
      %v1109 = vadd.f32 %v915, %v1054
      %v1110 = vadd.f32 %v916, %v1057
      %v1111 = vadd.f32 %v917, %v1060
      %v1112 = vadd.f32 %v918, %v1063
      %v1113 = vadd.f32 %v919, %v1066
      %v1114 = vadd.f32 %v920, %v1069
      %v1115 = vadd.f32 %v921, %v1072
      %v1116 = vadd.f32 %v922, %v1075
      %v1117 = vadd.f32 %v923, %v1078
      %v1118 = vadd.f32 %v924, %v1081
      %v1119 = vadd.f32 %v925, %v1084
      %v1120 = vadd.f32 %v926, %v1087
      %v1121 = vld [vmem:[%s732 + $0x2] sm:$0xff]
      %v1122 = vld [vmem:[%s732 + $0xa] sm:$0xff]
      %v1123 = vld [vmem:[%s732 + $0x1a] sm:$0xff]
      %v1124 = vld [vmem:[%s732 + $0x22] sm:$0xff]
      %v1125 = vld [vmem:[%s732 + $0x32] sm:$0xff]
      %v1126 = vld [vmem:[%s732 + $0x3a] sm:$0xff]
      %v1127 = vld [vmem:[%s732 + $0x4a] sm:$0xff]
      %v1128 = vld [vmem:[%s732 + $0x52] sm:$0xff]
      %v1129 = vld [vmem:[%s732 + $0x62] sm:$0xff]
      %v1130 = vld [vmem:[%s732 + $0x6a] sm:$0xff]
      %v1131 = vld [vmem:[%s732 + $0x7a] sm:$0xff]
      %v1132 = vld [vmem:[%s732 + $0x82] sm:$0xff]
      %v1133 = vld [vmem:[%s732 + $0x92] sm:$0xff]
      %v1134 = vld [vmem:[%s732 + $0x9a] sm:$0xff]
      %v1135 = vld [vmem:[%s732 + $0xaa] sm:$0xff]
      %v1136 = vld [vmem:[%s732 + $0xb2] sm:$0xff]
      %v1137 = vld [vmem:[%s732 + $0xc2] sm:$0xff]
      %v1138 = vld [vmem:[%s732 + $0xca] sm:$0xff]
      %v1139 = vld [vmem:[%s732 + $0xda] sm:$0xff]
      %v1140 = vld [vmem:[%s732 + $0xe2] sm:$0xff]
      %v1141 = vld [vmem:[%s732 + $0xf2] sm:$0xff]
      %v1142 = vld [vmem:[%s732 + $0xfa] sm:$0xff]
      %v1143 = vld [vmem:[%s732 + $0x10a] sm:$0xff]
      %v1144 = vld [vmem:[%s732 + $0x112] sm:$0xff]
      %v1145 = vld [vmem:[%s732 + $0x122] sm:$0xff]
      %v1146 = vld [vmem:[%s732 + $0x12a] sm:$0xff]
      %v1147 = vld [vmem:[%s732 + $0x13a] sm:$0xff]
      %v1148 = vld [vmem:[%s732 + $0x142] sm:$0xff]
      %v1149 = vld [vmem:[%s732 + $0x152] sm:$0xff]
      %v1150 = vld [vmem:[%s732 + $0x15a] sm:$0xff]
      %v1151 = vld [vmem:[%s732 + $0x16a] sm:$0xff]
      %v1152 = vld [vmem:[%s732 + $0x172] sm:$0xff]
      %s1153 = scalar_lea.vmem %s1, 640
      %v1154 = vld [vmem:[%s1153] sm:$0xff]
      %v1155 = vld [vmem:[%s1153 + $0x8] sm:$0xff]
      %v1156 = vld [vmem:[%s1153 + $0x10] sm:$0xff]
      %v1157 = vld [vmem:[%s1153 + $0x18] sm:$0xff]
      %v1158 = vld [vmem:[%s1153 + $0x20] sm:$0xff]
      %v1159 = vld [vmem:[%s1153 + $0x28] sm:$0xff]
      %v1160 = vld [vmem:[%s1153 + $0x30] sm:$0xff]
      %v1161 = vld [vmem:[%s1153 + $0x38] sm:$0xff]
      %v1162 = vld [vmem:[%s1153 + $0x40] sm:$0xff]
      %v1163 = vld [vmem:[%s1153 + $0x48] sm:$0xff]
      %v1164 = vld [vmem:[%s1153 + $0x50] sm:$0xff]
      %v1165 = vld [vmem:[%s1153 + $0x58] sm:$0xff]
      %v1166 = vld [vmem:[%s1153 + $0x60] sm:$0xff]
      %v1167 = vld [vmem:[%s1153 + $0x68] sm:$0xff]
      %v1168 = vld [vmem:[%s1153 + $0x70] sm:$0xff]
      %v1169 = vld [vmem:[%s1153 + $0x78] sm:$0xff]
      %1170 = vmatpush.msra.mxu0 %v1169
      %1171 = vmatpush.msra.mxu0 %v1168
      %1172 = vmatpush.msra.mxu0 %v1167
      %1173 = vmatpush.msra.mxu0 %v1166
      %1174 = vmatpush.msra.mxu0 %v1165
      %1175 = vmatpush.msra.mxu0 %v1164
      %1176 = vmatpush.msra.mxu0 %v1163
      %1177 = vmatpush.msra.mxu0 %v1162
      %1178 = vmatpush.msra.mxu0 %v1161
      %1179 = vmatpush.msra.mxu0 %v1160
      %1180 = vmatpush.msra.mxu0 %v1159
      %1181 = vmatpush.msra.mxu0 %v1158
      %1182 = vmatpush.msra.mxu0 %v1157
      %1183 = vmatpush.msra.mxu0 %v1156
      %1184 = vmatpush.msra.mxu0 %v1155
      %1185 = vmatpush.msra.mxu0 %v1154
      %1186 = vmatmul.f32.gmra.mxu0 %v1121
      %v1187 = vpop.f32.mrf.mxu0
      %v1188 = vadd.f32 0.0, %v1187
      %1189 = vmatmul.f32.gmra.mxu0 %v1122
      %v1190 = vpop.f32.mrf.mxu0
      %v1191 = vadd.f32 0.0, %v1190
      %1192 = vmatmul.f32.gmra.mxu0 %v1123
      %v1193 = vpop.f32.mrf.mxu0
      %v1194 = vadd.f32 0.0, %v1193
      %1195 = vmatmul.f32.gmra.mxu0 %v1124
      %v1196 = vpop.f32.mrf.mxu0
      %v1197 = vadd.f32 0.0, %v1196
      %1198 = vmatmul.f32.gmra.mxu0 %v1125
      %v1199 = vpop.f32.mrf.mxu0
      %v1200 = vadd.f32 0.0, %v1199
      %1201 = vmatmul.f32.gmra.mxu0 %v1126
      %v1202 = vpop.f32.mrf.mxu0
      %v1203 = vadd.f32 0.0, %v1202
      %1204 = vmatmul.f32.gmra.mxu0 %v1127
      %v1205 = vpop.f32.mrf.mxu0
      %v1206 = vadd.f32 0.0, %v1205
      %1207 = vmatmul.f32.gmra.mxu0 %v1128
      %v1208 = vpop.f32.mrf.mxu0
      %v1209 = vadd.f32 0.0, %v1208
      %1210 = vmatmul.f32.gmra.mxu0 %v1129
      %v1211 = vpop.f32.mrf.mxu0
      %v1212 = vadd.f32 0.0, %v1211
      %1213 = vmatmul.f32.gmra.mxu0 %v1130
      %v1214 = vpop.f32.mrf.mxu0
      %v1215 = vadd.f32 0.0, %v1214
      %1216 = vmatmul.f32.gmra.mxu0 %v1131
      %v1217 = vpop.f32.mrf.mxu0
      %v1218 = vadd.f32 0.0, %v1217
      %1219 = vmatmul.f32.gmra.mxu0 %v1132
      %v1220 = vpop.f32.mrf.mxu0
      %v1221 = vadd.f32 0.0, %v1220
      %1222 = vmatmul.f32.gmra.mxu0 %v1133
      %v1223 = vpop.f32.mrf.mxu0
      %v1224 = vadd.f32 0.0, %v1223
      %1225 = vmatmul.f32.gmra.mxu0 %v1134
      %v1226 = vpop.f32.mrf.mxu0
      %v1227 = vadd.f32 0.0, %v1226
      %1228 = vmatmul.f32.gmra.mxu0 %v1135
      %v1229 = vpop.f32.mrf.mxu0
      %v1230 = vadd.f32 0.0, %v1229
      %1231 = vmatmul.f32.gmra.mxu0 %v1136
      %v1232 = vpop.f32.mrf.mxu0
      %v1233 = vadd.f32 0.0, %v1232
      %1234 = vmatmul.f32.gmra.mxu0 %v1137
      %v1235 = vpop.f32.mrf.mxu0
      %v1236 = vadd.f32 0.0, %v1235
      %1237 = vmatmul.f32.gmra.mxu0 %v1138
      %v1238 = vpop.f32.mrf.mxu0
      %v1239 = vadd.f32 0.0, %v1238
      %1240 = vmatmul.f32.gmra.mxu0 %v1139
      %v1241 = vpop.f32.mrf.mxu0
      %v1242 = vadd.f32 0.0, %v1241
      %1243 = vmatmul.f32.gmra.mxu0 %v1140
      %v1244 = vpop.f32.mrf.mxu0
      %v1245 = vadd.f32 0.0, %v1244
      %1246 = vmatmul.f32.gmra.mxu0 %v1141
      %v1247 = vpop.f32.mrf.mxu0
      %v1248 = vadd.f32 0.0, %v1247
      %1249 = vmatmul.f32.gmra.mxu0 %v1142
      %v1250 = vpop.f32.mrf.mxu0
      %v1251 = vadd.f32 0.0, %v1250
      %1252 = vmatmul.f32.gmra.mxu0 %v1143
      %v1253 = vpop.f32.mrf.mxu0
      %v1254 = vadd.f32 0.0, %v1253
      %1255 = vmatmul.f32.gmra.mxu0 %v1144
      %v1256 = vpop.f32.mrf.mxu0
      %v1257 = vadd.f32 0.0, %v1256
      %1258 = vmatmul.f32.gmra.mxu0 %v1145
      %v1259 = vpop.f32.mrf.mxu0
      %v1260 = vadd.f32 0.0, %v1259
      %1261 = vmatmul.f32.gmra.mxu0 %v1146
      %v1262 = vpop.f32.mrf.mxu0
      %v1263 = vadd.f32 0.0, %v1262
      %1264 = vmatmul.f32.gmra.mxu0 %v1147
      %v1265 = vpop.f32.mrf.mxu0
      %v1266 = vadd.f32 0.0, %v1265
      %1267 = vmatmul.f32.gmra.mxu0 %v1148
      %v1268 = vpop.f32.mrf.mxu0
      %v1269 = vadd.f32 0.0, %v1268
      %1270 = vmatmul.f32.gmra.mxu0 %v1149
      %v1271 = vpop.f32.mrf.mxu0
      %v1272 = vadd.f32 0.0, %v1271
      %1273 = vmatmul.f32.gmra.mxu0 %v1150
      %v1274 = vpop.f32.mrf.mxu0
      %v1275 = vadd.f32 0.0, %v1274
      %1276 = vmatmul.f32.gmra.mxu0 %v1151
      %v1277 = vpop.f32.mrf.mxu0
      %v1278 = vadd.f32 0.0, %v1277
      %1279 = vmatmul.f32.gmra.mxu0 %v1152
      %v1280 = vpop.f32.mrf.mxu0
      %v1281 = vadd.f32 0.0, %v1280
      %1282 = vdwg.mxu0
      %v1283 = vadd.f32 %v1089, %v1188
      %v1284 = vadd.f32 %v1090, %v1191
      %v1285 = vadd.f32 %v1091, %v1194
      %v1286 = vadd.f32 %v1092, %v1197
      %v1287 = vadd.f32 %v1093, %v1200
      %v1288 = vadd.f32 %v1094, %v1203
      %v1289 = vadd.f32 %v1095, %v1206
      %v1290 = vadd.f32 %v1096, %v1209
      %v1291 = vadd.f32 %v1097, %v1212
      %v1292 = vadd.f32 %v1098, %v1215
      %v1293 = vadd.f32 %v1099, %v1218
      %v1294 = vadd.f32 %v1100, %v1221
      %v1295 = vadd.f32 %v1101, %v1224
      %v1296 = vadd.f32 %v1102, %v1227
      %v1297 = vadd.f32 %v1103, %v1230
      %v1298 = vadd.f32 %v1104, %v1233
      %v1299 = vadd.f32 %v1105, %v1236
      %v1300 = vadd.f32 %v1106, %v1239
      %v1301 = vadd.f32 %v1107, %v1242
      %v1302 = vadd.f32 %v1108, %v1245
      %v1303 = vadd.f32 %v1109, %v1248
      %v1304 = vadd.f32 %v1110, %v1251
      %v1305 = vadd.f32 %v1111, %v1254
      %v1306 = vadd.f32 %v1112, %v1257
      %v1307 = vadd.f32 %v1113, %v1260
      %v1308 = vadd.f32 %v1114, %v1263
      %v1309 = vadd.f32 %v1115, %v1266
      %v1310 = vadd.f32 %v1116, %v1269
      %v1311 = vadd.f32 %v1117, %v1272
      %v1312 = vadd.f32 %v1118, %v1275
      %v1313 = vadd.f32 %v1119, %v1278
      %v1314 = vadd.f32 %v1120, %v1281
      %s1315 = scalar_lea.vmem %s203, 48
      %v1316 = vld [vmem:[%s1315] sm:$0xff]
      %v1317 = vld [vmem:[%s1315 + $0x8] sm:$0xff]
      %v1318 = vld [vmem:[%s1315 + $0x18] sm:$0xff]
      %v1319 = vld [vmem:[%s1315 + $0x20] sm:$0xff]
      %v1320 = vld [vmem:[%s1315 + $0x30] sm:$0xff]
      %v1321 = vld [vmem:[%s1315 + $0x38] sm:$0xff]
      %v1322 = vld [vmem:[%s1315 + $0x48] sm:$0xff]
      %v1323 = vld [vmem:[%s1315 + $0x50] sm:$0xff]
      %v1324 = vld [vmem:[%s1315 + $0x60] sm:$0xff]
      %v1325 = vld [vmem:[%s1315 + $0x68] sm:$0xff]
      %v1326 = vld [vmem:[%s1315 + $0x78] sm:$0xff]
      %v1327 = vld [vmem:[%s1315 + $0x80] sm:$0xff]
      %v1328 = vld [vmem:[%s1315 + $0x90] sm:$0xff]
      %v1329 = vld [vmem:[%s1315 + $0x98] sm:$0xff]
      %v1330 = vld [vmem:[%s1315 + $0xa8] sm:$0xff]
      %v1331 = vld [vmem:[%s1315 + $0xb0] sm:$0xff]
      %v1332 = vld [vmem:[%s1315 + $0xc0] sm:$0xff]
      %v1333 = vld [vmem:[%s1315 + $0xc8] sm:$0xff]
      %v1334 = vld [vmem:[%s1315 + $0xd8] sm:$0xff]
      %v1335 = vld [vmem:[%s1315 + $0xe0] sm:$0xff]
      %v1336 = vld [vmem:[%s1315 + $0xf0] sm:$0xff]
      %v1337 = vld [vmem:[%s1315 + $0xf8] sm:$0xff]
      %v1338 = vld [vmem:[%s1315 + $0x108] sm:$0xff]
      %v1339 = vld [vmem:[%s1315 + $0x110] sm:$0xff]
      %v1340 = vld [vmem:[%s1315 + $0x120] sm:$0xff]
      %v1341 = vld [vmem:[%s1315 + $0x128] sm:$0xff]
      %v1342 = vld [vmem:[%s1315 + $0x138] sm:$0xff]
      %v1343 = vld [vmem:[%s1315 + $0x140] sm:$0xff]
      %v1344 = vld [vmem:[%s1315 + $0x150] sm:$0xff]
      %v1345 = vld [vmem:[%s1315 + $0x158] sm:$0xff]
      %v1346 = vld [vmem:[%s1315 + $0x168] sm:$0xff]
      %v1347 = vld [vmem:[%s1315 + $0x170] sm:$0xff]
      %s1348 = scalar_lea.vmem %s1, 768
      %v1349 = vld [vmem:[%s1348] sm:$0xff]
      %v1350 = vld [vmem:[%s1348 + $0x8] sm:$0xff]
      %v1351 = vld [vmem:[%s1348 + $0x10] sm:$0xff]
      %v1352 = vld [vmem:[%s1348 + $0x18] sm:$0xff]
      %v1353 = vld [vmem:[%s1348 + $0x20] sm:$0xff]
      %v1354 = vld [vmem:[%s1348 + $0x28] sm:$0xff]
      %v1355 = vld [vmem:[%s1348 + $0x30] sm:$0xff]
      %v1356 = vld [vmem:[%s1348 + $0x38] sm:$0xff]
      %v1357 = vld [vmem:[%s1348 + $0x40] sm:$0xff]
      %v1358 = vld [vmem:[%s1348 + $0x48] sm:$0xff]
      %v1359 = vld [vmem:[%s1348 + $0x50] sm:$0xff]
      %v1360 = vld [vmem:[%s1348 + $0x58] sm:$0xff]
      %v1361 = vld [vmem:[%s1348 + $0x60] sm:$0xff]
      %v1362 = vld [vmem:[%s1348 + $0x68] sm:$0xff]
      %v1363 = vld [vmem:[%s1348 + $0x70] sm:$0xff]
      %v1364 = vld [vmem:[%s1348 + $0x78] sm:$0xff]
      %1365 = vmatpush.msra.mxu0 %v1364
      %1366 = vmatpush.msra.mxu0 %v1363
      %1367 = vmatpush.msra.mxu0 %v1362
      %1368 = vmatpush.msra.mxu0 %v1361
      %1369 = vmatpush.msra.mxu0 %v1360
      %1370 = vmatpush.msra.mxu0 %v1359
      %1371 = vmatpush.msra.mxu0 %v1358
      %1372 = vmatpush.msra.mxu0 %v1357
      %1373 = vmatpush.msra.mxu0 %v1356
      %1374 = vmatpush.msra.mxu0 %v1355
      %1375 = vmatpush.msra.mxu0 %v1354
      %1376 = vmatpush.msra.mxu0 %v1353
      %1377 = vmatpush.msra.mxu0 %v1352
      %1378 = vmatpush.msra.mxu0 %v1351
      %1379 = vmatpush.msra.mxu0 %v1350
      %1380 = vmatpush.msra.mxu0 %v1349
      %1381 = vmatmul.f32.gmra.mxu0 %v1316
      %v1382 = vpop.f32.mrf.mxu0
      %v1383 = vadd.f32 0.0, %v1382
      %1384 = vmatmul.f32.gmra.mxu0 %v1317
      %v1385 = vpop.f32.mrf.mxu0
      %v1386 = vadd.f32 0.0, %v1385
      %1387 = vmatmul.f32.gmra.mxu0 %v1318
      %v1388 = vpop.f32.mrf.mxu0
      %v1389 = vadd.f32 0.0, %v1388
      %1390 = vmatmul.f32.gmra.mxu0 %v1319
      %v1391 = vpop.f32.mrf.mxu0
      %v1392 = vadd.f32 0.0, %v1391
      %1393 = vmatmul.f32.gmra.mxu0 %v1320
      %v1394 = vpop.f32.mrf.mxu0
      %v1395 = vadd.f32 0.0, %v1394
      %1396 = vmatmul.f32.gmra.mxu0 %v1321
      %v1397 = vpop.f32.mrf.mxu0
      %v1398 = vadd.f32 0.0, %v1397
      %1399 = vmatmul.f32.gmra.mxu0 %v1322
      %v1400 = vpop.f32.mrf.mxu0
      %v1401 = vadd.f32 0.0, %v1400
      %1402 = vmatmul.f32.gmra.mxu0 %v1323
      %v1403 = vpop.f32.mrf.mxu0
      %v1404 = vadd.f32 0.0, %v1403
      %1405 = vmatmul.f32.gmra.mxu0 %v1324
      %v1406 = vpop.f32.mrf.mxu0
      %v1407 = vadd.f32 0.0, %v1406
      %1408 = vmatmul.f32.gmra.mxu0 %v1325
      %v1409 = vpop.f32.mrf.mxu0
      %v1410 = vadd.f32 0.0, %v1409
      %1411 = vmatmul.f32.gmra.mxu0 %v1326
      %v1412 = vpop.f32.mrf.mxu0
      %v1413 = vadd.f32 0.0, %v1412
      %1414 = vmatmul.f32.gmra.mxu0 %v1327
      %v1415 = vpop.f32.mrf.mxu0
      %v1416 = vadd.f32 0.0, %v1415
      %1417 = vmatmul.f32.gmra.mxu0 %v1328
      %v1418 = vpop.f32.mrf.mxu0
      %v1419 = vadd.f32 0.0, %v1418
      %1420 = vmatmul.f32.gmra.mxu0 %v1329
      %v1421 = vpop.f32.mrf.mxu0
      %v1422 = vadd.f32 0.0, %v1421
      %1423 = vmatmul.f32.gmra.mxu0 %v1330
      %v1424 = vpop.f32.mrf.mxu0
      %v1425 = vadd.f32 0.0, %v1424
      %1426 = vmatmul.f32.gmra.mxu0 %v1331
      %v1427 = vpop.f32.mrf.mxu0
      %v1428 = vadd.f32 0.0, %v1427
      %1429 = vmatmul.f32.gmra.mxu0 %v1332
      %v1430 = vpop.f32.mrf.mxu0
      %v1431 = vadd.f32 0.0, %v1430
      %1432 = vmatmul.f32.gmra.mxu0 %v1333
      %v1433 = vpop.f32.mrf.mxu0
      %v1434 = vadd.f32 0.0, %v1433
      %1435 = vmatmul.f32.gmra.mxu0 %v1334
      %v1436 = vpop.f32.mrf.mxu0
      %v1437 = vadd.f32 0.0, %v1436
      %1438 = vmatmul.f32.gmra.mxu0 %v1335
      %v1439 = vpop.f32.mrf.mxu0
      %v1440 = vadd.f32 0.0, %v1439
      %1441 = vmatmul.f32.gmra.mxu0 %v1336
      %v1442 = vpop.f32.mrf.mxu0
      %v1443 = vadd.f32 0.0, %v1442
      %1444 = vmatmul.f32.gmra.mxu0 %v1337
      %v1445 = vpop.f32.mrf.mxu0
      %v1446 = vadd.f32 0.0, %v1445
      %1447 = vmatmul.f32.gmra.mxu0 %v1338
      %v1448 = vpop.f32.mrf.mxu0
      %v1449 = vadd.f32 0.0, %v1448
      %1450 = vmatmul.f32.gmra.mxu0 %v1339
      %v1451 = vpop.f32.mrf.mxu0
      %v1452 = vadd.f32 0.0, %v1451
      %1453 = vmatmul.f32.gmra.mxu0 %v1340
      %v1454 = vpop.f32.mrf.mxu0
      %v1455 = vadd.f32 0.0, %v1454
      %1456 = vmatmul.f32.gmra.mxu0 %v1341
      %v1457 = vpop.f32.mrf.mxu0
      %v1458 = vadd.f32 0.0, %v1457
      %1459 = vmatmul.f32.gmra.mxu0 %v1342
      %v1460 = vpop.f32.mrf.mxu0
      %v1461 = vadd.f32 0.0, %v1460
      %1462 = vmatmul.f32.gmra.mxu0 %v1343
      %v1463 = vpop.f32.mrf.mxu0
      %v1464 = vadd.f32 0.0, %v1463
      %1465 = vmatmul.f32.gmra.mxu0 %v1344
      %v1466 = vpop.f32.mrf.mxu0
      %v1467 = vadd.f32 0.0, %v1466
      %1468 = vmatmul.f32.gmra.mxu0 %v1345
      %v1469 = vpop.f32.mrf.mxu0
      %v1470 = vadd.f32 0.0, %v1469
      %1471 = vmatmul.f32.gmra.mxu0 %v1346
      %v1472 = vpop.f32.mrf.mxu0
      %v1473 = vadd.f32 0.0, %v1472
      %1474 = vmatmul.f32.gmra.mxu0 %v1347
      %v1475 = vpop.f32.mrf.mxu0
      %v1476 = vadd.f32 0.0, %v1475
      %1477 = vdwg.mxu0
      %v1478 = vadd.f32 %v1283, %v1383
      %v1479 = vadd.f32 %v1284, %v1386
      %v1480 = vadd.f32 %v1285, %v1389
      %v1481 = vadd.f32 %v1286, %v1392
      %v1482 = vadd.f32 %v1287, %v1395
      %v1483 = vadd.f32 %v1288, %v1398
      %v1484 = vadd.f32 %v1289, %v1401
      %v1485 = vadd.f32 %v1290, %v1404
      %v1486 = vadd.f32 %v1291, %v1407
      %v1487 = vadd.f32 %v1292, %v1410
      %v1488 = vadd.f32 %v1293, %v1413
      %v1489 = vadd.f32 %v1294, %v1416
      %v1490 = vadd.f32 %v1295, %v1419
      %v1491 = vadd.f32 %v1296, %v1422
      %v1492 = vadd.f32 %v1297, %v1425
      %v1493 = vadd.f32 %v1298, %v1428
      %v1494 = vadd.f32 %v1299, %v1431
      %v1495 = vadd.f32 %v1300, %v1434
      %v1496 = vadd.f32 %v1301, %v1437
      %v1497 = vadd.f32 %v1302, %v1440
      %v1498 = vadd.f32 %v1303, %v1443
      %v1499 = vadd.f32 %v1304, %v1446
      %v1500 = vadd.f32 %v1305, %v1449
      %v1501 = vadd.f32 %v1306, %v1452
      %v1502 = vadd.f32 %v1307, %v1455
      %v1503 = vadd.f32 %v1308, %v1458
      %v1504 = vadd.f32 %v1309, %v1461
      %v1505 = vadd.f32 %v1310, %v1464
      %v1506 = vadd.f32 %v1311, %v1467
      %v1507 = vadd.f32 %v1312, %v1470
      %v1508 = vadd.f32 %v1313, %v1473
      %v1509 = vadd.f32 %v1314, %v1476
      %v1510 = vld [vmem:[%s1315 + $0x1] sm:$0xff]
      %v1511 = vld [vmem:[%s1315 + $0x9] sm:$0xff]
      %v1512 = vld [vmem:[%s1315 + $0x19] sm:$0xff]
      %v1513 = vld [vmem:[%s1315 + $0x21] sm:$0xff]
      %v1514 = vld [vmem:[%s1315 + $0x31] sm:$0xff]
      %v1515 = vld [vmem:[%s1315 + $0x39] sm:$0xff]
      %v1516 = vld [vmem:[%s1315 + $0x49] sm:$0xff]
      %v1517 = vld [vmem:[%s1315 + $0x51] sm:$0xff]
      %v1518 = vld [vmem:[%s1315 + $0x61] sm:$0xff]
      %v1519 = vld [vmem:[%s1315 + $0x69] sm:$0xff]
      %v1520 = vld [vmem:[%s1315 + $0x79] sm:$0xff]
      %v1521 = vld [vmem:[%s1315 + $0x81] sm:$0xff]
      %v1522 = vld [vmem:[%s1315 + $0x91] sm:$0xff]
      %v1523 = vld [vmem:[%s1315 + $0x99] sm:$0xff]
      %v1524 = vld [vmem:[%s1315 + $0xa9] sm:$0xff]
      %v1525 = vld [vmem:[%s1315 + $0xb1] sm:$0xff]
      %v1526 = vld [vmem:[%s1315 + $0xc1] sm:$0xff]
      %v1527 = vld [vmem:[%s1315 + $0xc9] sm:$0xff]
      %v1528 = vld [vmem:[%s1315 + $0xd9] sm:$0xff]
      %v1529 = vld [vmem:[%s1315 + $0xe1] sm:$0xff]
      %v1530 = vld [vmem:[%s1315 + $0xf1] sm:$0xff]
      %v1531 = vld [vmem:[%s1315 + $0xf9] sm:$0xff]
      %v1532 = vld [vmem:[%s1315 + $0x109] sm:$0xff]
      %v1533 = vld [vmem:[%s1315 + $0x111] sm:$0xff]
      %v1534 = vld [vmem:[%s1315 + $0x121] sm:$0xff]
      %v1535 = vld [vmem:[%s1315 + $0x129] sm:$0xff]
      %v1536 = vld [vmem:[%s1315 + $0x139] sm:$0xff]
      %v1537 = vld [vmem:[%s1315 + $0x141] sm:$0xff]
      %v1538 = vld [vmem:[%s1315 + $0x151] sm:$0xff]
      %v1539 = vld [vmem:[%s1315 + $0x159] sm:$0xff]
      %v1540 = vld [vmem:[%s1315 + $0x169] sm:$0xff]
      %v1541 = vld [vmem:[%s1315 + $0x171] sm:$0xff]
      %s1542 = scalar_lea.vmem %s1, 896
      %v1543 = vld [vmem:[%s1542] sm:$0xff]
      %v1544 = vld [vmem:[%s1542 + $0x8] sm:$0xff]
      %v1545 = vld [vmem:[%s1542 + $0x10] sm:$0xff]
      %v1546 = vld [vmem:[%s1542 + $0x18] sm:$0xff]
      %v1547 = vld [vmem:[%s1542 + $0x20] sm:$0xff]
      %v1548 = vld [vmem:[%s1542 + $0x28] sm:$0xff]
      %v1549 = vld [vmem:[%s1542 + $0x30] sm:$0xff]
      %v1550 = vld [vmem:[%s1542 + $0x38] sm:$0xff]
      %v1551 = vld [vmem:[%s1542 + $0x40] sm:$0xff]
      %v1552 = vld [vmem:[%s1542 + $0x48] sm:$0xff]
      %v1553 = vld [vmem:[%s1542 + $0x50] sm:$0xff]
      %v1554 = vld [vmem:[%s1542 + $0x58] sm:$0xff]
      %v1555 = vld [vmem:[%s1542 + $0x60] sm:$0xff]
      %v1556 = vld [vmem:[%s1542 + $0x68] sm:$0xff]
      %v1557 = vld [vmem:[%s1542 + $0x70] sm:$0xff]
      %v1558 = vld [vmem:[%s1542 + $0x78] sm:$0xff]
      %1559 = vmatpush.msra.mxu0 %v1558
      %1560 = vmatpush.msra.mxu0 %v1557
      %1561 = vmatpush.msra.mxu0 %v1556
      %1562 = vmatpush.msra.mxu0 %v1555
      %1563 = vmatpush.msra.mxu0 %v1554
      %1564 = vmatpush.msra.mxu0 %v1553
      %1565 = vmatpush.msra.mxu0 %v1552
      %1566 = vmatpush.msra.mxu0 %v1551
      %1567 = vmatpush.msra.mxu0 %v1550
      %1568 = vmatpush.msra.mxu0 %v1549
      %1569 = vmatpush.msra.mxu0 %v1548
      %1570 = vmatpush.msra.mxu0 %v1547
      %1571 = vmatpush.msra.mxu0 %v1546
      %1572 = vmatpush.msra.mxu0 %v1545
      %1573 = vmatpush.msra.mxu0 %v1544
      %1574 = vmatpush.msra.mxu0 %v1543
      %1575 = vmatmul.f32.gmra.mxu0 %v1510
      %v1576 = vpop.f32.mrf.mxu0
      %v1577 = vadd.f32 0.0, %v1576
      %1578 = vmatmul.f32.gmra.mxu0 %v1511
      %v1579 = vpop.f32.mrf.mxu0
      %v1580 = vadd.f32 0.0, %v1579
      %1581 = vmatmul.f32.gmra.mxu0 %v1512
      %v1582 = vpop.f32.mrf.mxu0
      %v1583 = vadd.f32 0.0, %v1582
      %1584 = vmatmul.f32.gmra.mxu0 %v1513
      %v1585 = vpop.f32.mrf.mxu0
      %v1586 = vadd.f32 0.0, %v1585
      %1587 = vmatmul.f32.gmra.mxu0 %v1514
      %v1588 = vpop.f32.mrf.mxu0
      %v1589 = vadd.f32 0.0, %v1588
      %1590 = vmatmul.f32.gmra.mxu0 %v1515
      %v1591 = vpop.f32.mrf.mxu0
      %v1592 = vadd.f32 0.0, %v1591
      %1593 = vmatmul.f32.gmra.mxu0 %v1516
      %v1594 = vpop.f32.mrf.mxu0
      %v1595 = vadd.f32 0.0, %v1594
      %1596 = vmatmul.f32.gmra.mxu0 %v1517
      %v1597 = vpop.f32.mrf.mxu0
      %v1598 = vadd.f32 0.0, %v1597
      %1599 = vmatmul.f32.gmra.mxu0 %v1518
      %v1600 = vpop.f32.mrf.mxu0
      %v1601 = vadd.f32 0.0, %v1600
      %1602 = vmatmul.f32.gmra.mxu0 %v1519
      %v1603 = vpop.f32.mrf.mxu0
      %v1604 = vadd.f32 0.0, %v1603
      %1605 = vmatmul.f32.gmra.mxu0 %v1520
      %v1606 = vpop.f32.mrf.mxu0
      %v1607 = vadd.f32 0.0, %v1606
      %1608 = vmatmul.f32.gmra.mxu0 %v1521
      %v1609 = vpop.f32.mrf.mxu0
      %v1610 = vadd.f32 0.0, %v1609
      %1611 = vmatmul.f32.gmra.mxu0 %v1522
      %v1612 = vpop.f32.mrf.mxu0
      %v1613 = vadd.f32 0.0, %v1612
      %1614 = vmatmul.f32.gmra.mxu0 %v1523
      %v1615 = vpop.f32.mrf.mxu0
      %v1616 = vadd.f32 0.0, %v1615
      %1617 = vmatmul.f32.gmra.mxu0 %v1524
      %v1618 = vpop.f32.mrf.mxu0
      %v1619 = vadd.f32 0.0, %v1618
      %1620 = vmatmul.f32.gmra.mxu0 %v1525
      %v1621 = vpop.f32.mrf.mxu0
      %v1622 = vadd.f32 0.0, %v1621
      %1623 = vmatmul.f32.gmra.mxu0 %v1526
      %v1624 = vpop.f32.mrf.mxu0
      %v1625 = vadd.f32 0.0, %v1624
      %1626 = vmatmul.f32.gmra.mxu0 %v1527
      %v1627 = vpop.f32.mrf.mxu0
      %v1628 = vadd.f32 0.0, %v1627
      %1629 = vmatmul.f32.gmra.mxu0 %v1528
      %v1630 = vpop.f32.mrf.mxu0
      %v1631 = vadd.f32 0.0, %v1630
      %1632 = vmatmul.f32.gmra.mxu0 %v1529
      %v1633 = vpop.f32.mrf.mxu0
      %v1634 = vadd.f32 0.0, %v1633
      %1635 = vmatmul.f32.gmra.mxu0 %v1530
      %v1636 = vpop.f32.mrf.mxu0
      %v1637 = vadd.f32 0.0, %v1636
      %1638 = vmatmul.f32.gmra.mxu0 %v1531
      %v1639 = vpop.f32.mrf.mxu0
      %v1640 = vadd.f32 0.0, %v1639
      %1641 = vmatmul.f32.gmra.mxu0 %v1532
      %v1642 = vpop.f32.mrf.mxu0
      %v1643 = vadd.f32 0.0, %v1642
      %1644 = vmatmul.f32.gmra.mxu0 %v1533
      %v1645 = vpop.f32.mrf.mxu0
      %v1646 = vadd.f32 0.0, %v1645
      %1647 = vmatmul.f32.gmra.mxu0 %v1534
      %v1648 = vpop.f32.mrf.mxu0
      %v1649 = vadd.f32 0.0, %v1648
      %1650 = vmatmul.f32.gmra.mxu0 %v1535
      %v1651 = vpop.f32.mrf.mxu0
      %v1652 = vadd.f32 0.0, %v1651
      %1653 = vmatmul.f32.gmra.mxu0 %v1536
      %v1654 = vpop.f32.mrf.mxu0
      %v1655 = vadd.f32 0.0, %v1654
      %1656 = vmatmul.f32.gmra.mxu0 %v1537
      %v1657 = vpop.f32.mrf.mxu0
      %v1658 = vadd.f32 0.0, %v1657
      %1659 = vmatmul.f32.gmra.mxu0 %v1538
      %v1660 = vpop.f32.mrf.mxu0
      %v1661 = vadd.f32 0.0, %v1660
      %1662 = vmatmul.f32.gmra.mxu0 %v1539
      %v1663 = vpop.f32.mrf.mxu0
      %v1664 = vadd.f32 0.0, %v1663
      %1665 = vmatmul.f32.gmra.mxu0 %v1540
      %v1666 = vpop.f32.mrf.mxu0
      %v1667 = vadd.f32 0.0, %v1666
      %1668 = vmatmul.f32.gmra.mxu0 %v1541
      %v1669 = vpop.f32.mrf.mxu0
      %v1670 = vadd.f32 0.0, %v1669
      %1671 = vdwg.mxu0
      %v1672 = vadd.f32 %v1478, %v1577
      %v1673 = vadd.f32 %v1479, %v1580
      %v1674 = vadd.f32 %v1480, %v1583
      %v1675 = vadd.f32 %v1481, %v1586
      %v1676 = vadd.f32 %v1482, %v1589
      %v1677 = vadd.f32 %v1483, %v1592
      %v1678 = vadd.f32 %v1484, %v1595
      %v1679 = vadd.f32 %v1485, %v1598
      %v1680 = vadd.f32 %v1486, %v1601
      %v1681 = vadd.f32 %v1487, %v1604
      %v1682 = vadd.f32 %v1488, %v1607
      %v1683 = vadd.f32 %v1489, %v1610
      %v1684 = vadd.f32 %v1490, %v1613
      %v1685 = vadd.f32 %v1491, %v1616
      %v1686 = vadd.f32 %v1492, %v1619
      %v1687 = vadd.f32 %v1493, %v1622
      %v1688 = vadd.f32 %v1494, %v1625
      %v1689 = vadd.f32 %v1495, %v1628
      %v1690 = vadd.f32 %v1496, %v1631
      %v1691 = vadd.f32 %v1497, %v1634
      %v1692 = vadd.f32 %v1498, %v1637
      %v1693 = vadd.f32 %v1499, %v1640
      %v1694 = vadd.f32 %v1500, %v1643
      %v1695 = vadd.f32 %v1501, %v1646
      %v1696 = vadd.f32 %v1502, %v1649
      %v1697 = vadd.f32 %v1503, %v1652
      %v1698 = vadd.f32 %v1504, %v1655
      %v1699 = vadd.f32 %v1505, %v1658
      %v1700 = vadd.f32 %v1506, %v1661
      %v1701 = vadd.f32 %v1507, %v1664
      %v1702 = vadd.f32 %v1508, %v1667
      %v1703 = vadd.f32 %v1509, %v1670
      %v1704 = vld [vmem:[%s1315 + $0x2] sm:$0xff]
      %v1705 = vld [vmem:[%s1315 + $0xa] sm:$0xff]
      %v1706 = vld [vmem:[%s1315 + $0x1a] sm:$0xff]
      %v1707 = vld [vmem:[%s1315 + $0x22] sm:$0xff]
      %v1708 = vld [vmem:[%s1315 + $0x32] sm:$0xff]
      %v1709 = vld [vmem:[%s1315 + $0x3a] sm:$0xff]
      %v1710 = vld [vmem:[%s1315 + $0x4a] sm:$0xff]
      %v1711 = vld [vmem:[%s1315 + $0x52] sm:$0xff]
      %v1712 = vld [vmem:[%s1315 + $0x62] sm:$0xff]
      %v1713 = vld [vmem:[%s1315 + $0x6a] sm:$0xff]
      %v1714 = vld [vmem:[%s1315 + $0x7a] sm:$0xff]
      %v1715 = vld [vmem:[%s1315 + $0x82] sm:$0xff]
      %v1716 = vld [vmem:[%s1315 + $0x92] sm:$0xff]
      %v1717 = vld [vmem:[%s1315 + $0x9a] sm:$0xff]
      %v1718 = vld [vmem:[%s1315 + $0xaa] sm:$0xff]
      %v1719 = vld [vmem:[%s1315 + $0xb2] sm:$0xff]
      %v1720 = vld [vmem:[%s1315 + $0xc2] sm:$0xff]
      %v1721 = vld [vmem:[%s1315 + $0xca] sm:$0xff]
      %v1722 = vld [vmem:[%s1315 + $0xda] sm:$0xff]
      %v1723 = vld [vmem:[%s1315 + $0xe2] sm:$0xff]
      %v1724 = vld [vmem:[%s1315 + $0xf2] sm:$0xff]
      %v1725 = vld [vmem:[%s1315 + $0xfa] sm:$0xff]
      %v1726 = vld [vmem:[%s1315 + $0x10a] sm:$0xff]
      %v1727 = vld [vmem:[%s1315 + $0x112] sm:$0xff]
      %v1728 = vld [vmem:[%s1315 + $0x122] sm:$0xff]
      %v1729 = vld [vmem:[%s1315 + $0x12a] sm:$0xff]
      %v1730 = vld [vmem:[%s1315 + $0x13a] sm:$0xff]
      %v1731 = vld [vmem:[%s1315 + $0x142] sm:$0xff]
      %v1732 = vld [vmem:[%s1315 + $0x152] sm:$0xff]
      %v1733 = vld [vmem:[%s1315 + $0x15a] sm:$0xff]
      %v1734 = vld [vmem:[%s1315 + $0x16a] sm:$0xff]
      %v1735 = vld [vmem:[%s1315 + $0x172] sm:$0xff]
      %s1736 = scalar_lea.vmem %s1, 1024
      %v1737 = vld [vmem:[%s1736] sm:$0xff]
      %v1738 = vld [vmem:[%s1736 + $0x8] sm:$0xff]
      %v1739 = vld [vmem:[%s1736 + $0x10] sm:$0xff]
      %v1740 = vld [vmem:[%s1736 + $0x18] sm:$0xff]
      %v1741 = vld [vmem:[%s1736 + $0x20] sm:$0xff]
      %v1742 = vld [vmem:[%s1736 + $0x28] sm:$0xff]
      %v1743 = vld [vmem:[%s1736 + $0x30] sm:$0xff]
      %v1744 = vld [vmem:[%s1736 + $0x38] sm:$0xff]
      %v1745 = vld [vmem:[%s1736 + $0x40] sm:$0xff]
      %v1746 = vld [vmem:[%s1736 + $0x48] sm:$0xff]
      %v1747 = vld [vmem:[%s1736 + $0x50] sm:$0xff]
      %v1748 = vld [vmem:[%s1736 + $0x58] sm:$0xff]
      %v1749 = vld [vmem:[%s1736 + $0x60] sm:$0xff]
      %v1750 = vld [vmem:[%s1736 + $0x68] sm:$0xff]
      %v1751 = vld [vmem:[%s1736 + $0x70] sm:$0xff]
      %v1752 = vld [vmem:[%s1736 + $0x78] sm:$0xff]
      %1753 = vmatpush.msra.mxu0 %v1752
      %1754 = vmatpush.msra.mxu0 %v1751
      %1755 = vmatpush.msra.mxu0 %v1750
      %1756 = vmatpush.msra.mxu0 %v1749
      %1757 = vmatpush.msra.mxu0 %v1748
      %1758 = vmatpush.msra.mxu0 %v1747
      %1759 = vmatpush.msra.mxu0 %v1746
      %1760 = vmatpush.msra.mxu0 %v1745
      %1761 = vmatpush.msra.mxu0 %v1744
      %1762 = vmatpush.msra.mxu0 %v1743
      %1763 = vmatpush.msra.mxu0 %v1742
      %1764 = vmatpush.msra.mxu0 %v1741
      %1765 = vmatpush.msra.mxu0 %v1740
      %1766 = vmatpush.msra.mxu0 %v1739
      %1767 = vmatpush.msra.mxu0 %v1738
      %1768 = vmatpush.msra.mxu0 %v1737
      %1769 = vmatmul.f32.gmra.mxu0 %v1704
      %v1770 = vpop.f32.mrf.mxu0
      %v1771 = vadd.f32 0.0, %v1770
      %1772 = vmatmul.f32.gmra.mxu0 %v1705
      %v1773 = vpop.f32.mrf.mxu0
      %v1774 = vadd.f32 0.0, %v1773
      %1775 = vmatmul.f32.gmra.mxu0 %v1706
      %v1776 = vpop.f32.mrf.mxu0
      %v1777 = vadd.f32 0.0, %v1776
      %1778 = vmatmul.f32.gmra.mxu0 %v1707
      %v1779 = vpop.f32.mrf.mxu0
      %v1780 = vadd.f32 0.0, %v1779
      %1781 = vmatmul.f32.gmra.mxu0 %v1708
      %v1782 = vpop.f32.mrf.mxu0
      %v1783 = vadd.f32 0.0, %v1782
      %1784 = vmatmul.f32.gmra.mxu0 %v1709
      %v1785 = vpop.f32.mrf.mxu0
      %v1786 = vadd.f32 0.0, %v1785
      %1787 = vmatmul.f32.gmra.mxu0 %v1710
      %v1788 = vpop.f32.mrf.mxu0
      %v1789 = vadd.f32 0.0, %v1788
      %1790 = vmatmul.f32.gmra.mxu0 %v1711
      %v1791 = vpop.f32.mrf.mxu0
      %v1792 = vadd.f32 0.0, %v1791
      %1793 = vmatmul.f32.gmra.mxu0 %v1712
      %v1794 = vpop.f32.mrf.mxu0
      %v1795 = vadd.f32 0.0, %v1794
      %1796 = vmatmul.f32.gmra.mxu0 %v1713
      %v1797 = vpop.f32.mrf.mxu0
      %v1798 = vadd.f32 0.0, %v1797
      %1799 = vmatmul.f32.gmra.mxu0 %v1714
      %v1800 = vpop.f32.mrf.mxu0
      %v1801 = vadd.f32 0.0, %v1800
      %1802 = vmatmul.f32.gmra.mxu0 %v1715
      %v1803 = vpop.f32.mrf.mxu0
      %v1804 = vadd.f32 0.0, %v1803
      %1805 = vmatmul.f32.gmra.mxu0 %v1716
      %v1806 = vpop.f32.mrf.mxu0
      %v1807 = vadd.f32 0.0, %v1806
      %1808 = vmatmul.f32.gmra.mxu0 %v1717
      %v1809 = vpop.f32.mrf.mxu0
      %v1810 = vadd.f32 0.0, %v1809
      %1811 = vmatmul.f32.gmra.mxu0 %v1718
      %v1812 = vpop.f32.mrf.mxu0
      %v1813 = vadd.f32 0.0, %v1812
      %1814 = vmatmul.f32.gmra.mxu0 %v1719
      %v1815 = vpop.f32.mrf.mxu0
      %v1816 = vadd.f32 0.0, %v1815
      %1817 = vmatmul.f32.gmra.mxu0 %v1720
      %v1818 = vpop.f32.mrf.mxu0
      %v1819 = vadd.f32 0.0, %v1818
      %1820 = vmatmul.f32.gmra.mxu0 %v1721
      %v1821 = vpop.f32.mrf.mxu0
      %v1822 = vadd.f32 0.0, %v1821
      %1823 = vmatmul.f32.gmra.mxu0 %v1722
      %v1824 = vpop.f32.mrf.mxu0
      %v1825 = vadd.f32 0.0, %v1824
      %1826 = vmatmul.f32.gmra.mxu0 %v1723
      %v1827 = vpop.f32.mrf.mxu0
      %v1828 = vadd.f32 0.0, %v1827
      %1829 = vmatmul.f32.gmra.mxu0 %v1724
      %v1830 = vpop.f32.mrf.mxu0
      %v1831 = vadd.f32 0.0, %v1830
      %1832 = vmatmul.f32.gmra.mxu0 %v1725
      %v1833 = vpop.f32.mrf.mxu0
      %v1834 = vadd.f32 0.0, %v1833
      %1835 = vmatmul.f32.gmra.mxu0 %v1726
      %v1836 = vpop.f32.mrf.mxu0
      %v1837 = vadd.f32 0.0, %v1836
      %1838 = vmatmul.f32.gmra.mxu0 %v1727
      %v1839 = vpop.f32.mrf.mxu0
      %v1840 = vadd.f32 0.0, %v1839
      %1841 = vmatmul.f32.gmra.mxu0 %v1728
      %v1842 = vpop.f32.mrf.mxu0
      %v1843 = vadd.f32 0.0, %v1842
      %1844 = vmatmul.f32.gmra.mxu0 %v1729
      %v1845 = vpop.f32.mrf.mxu0
      %v1846 = vadd.f32 0.0, %v1845
      %1847 = vmatmul.f32.gmra.mxu0 %v1730
      %v1848 = vpop.f32.mrf.mxu0
      %v1849 = vadd.f32 0.0, %v1848
      %1850 = vmatmul.f32.gmra.mxu0 %v1731
      %v1851 = vpop.f32.mrf.mxu0
      %v1852 = vadd.f32 0.0, %v1851
      %1853 = vmatmul.f32.gmra.mxu0 %v1732
      %v1854 = vpop.f32.mrf.mxu0
      %v1855 = vadd.f32 0.0, %v1854
      %1856 = vmatmul.f32.gmra.mxu0 %v1733
      %v1857 = vpop.f32.mrf.mxu0
      %v1858 = vadd.f32 0.0, %v1857
      %1859 = vmatmul.f32.gmra.mxu0 %v1734
      %v1860 = vpop.f32.mrf.mxu0
      %v1861 = vadd.f32 0.0, %v1860
      %1862 = vmatmul.f32.gmra.mxu0 %v1735
      %v1863 = vpop.f32.mrf.mxu0
      %v1864 = vadd.f32 0.0, %v1863
      %1865 = vdwg.mxu0
      %v1866 = vadd.f32 %v1672, %v1771
      %v1867 = vadd.f32 %v1673, %v1774
      %v1868 = vadd.f32 %v1674, %v1777
      %v1869 = vadd.f32 %v1675, %v1780
      %v1870 = vadd.f32 %v1676, %v1783
      %v1871 = vadd.f32 %v1677, %v1786
      %v1872 = vadd.f32 %v1678, %v1789
      %v1873 = vadd.f32 %v1679, %v1792
      %v1874 = vadd.f32 %v1680, %v1795
      %v1875 = vadd.f32 %v1681, %v1798
      %v1876 = vadd.f32 %v1682, %v1801
      %v1877 = vadd.f32 %v1683, %v1804
      %v1878 = vadd.f32 %v1684, %v1807
      %v1879 = vadd.f32 %v1685, %v1810
      %v1880 = vadd.f32 %v1686, %v1813
      %v1881 = vadd.f32 %v1687, %v1816
      %v1882 = vadd.f32 %v1688, %v1819
      %v1883 = vadd.f32 %v1689, %v1822
      %v1884 = vadd.f32 %v1690, %v1825
      %v1885 = vadd.f32 %v1691, %v1828
      %v1886 = vadd.f32 %v1692, %v1831
      %v1887 = vadd.f32 %v1693, %v1834
      %v1888 = vadd.f32 %v1694, %v1837
      %v1889 = vadd.f32 %v1695, %v1840
      %v1890 = vadd.f32 %v1696, %v1843
      %v1891 = vadd.f32 %v1697, %v1846
      %v1892 = vadd.f32 %v1698, %v1849
      %v1893 = vadd.f32 %v1699, %v1852
      %v1894 = vadd.f32 %v1700, %v1855
      %v1895 = vadd.f32 %v1701, %v1858
      %v1896 = vadd.f32 %v1702, %v1861
      %v1897 = vadd.f32 %v1703, %v1864
      %1898 = vst [vmem:[%s208] sm:$0xff] %v1866
      %1899 = vst [vmem:[%s208 + $0x8] sm:$0xff] %v1867
      %1900 = vst [vmem:[%s208 + $0x10] sm:$0xff] %v1868
      %1901 = vst [vmem:[%s208 + $0x18] sm:$0xff] %v1869
      %1902 = vst [vmem:[%s208 + $0x20] sm:$0xff] %v1870
      %1903 = vst [vmem:[%s208 + $0x28] sm:$0xff] %v1871
      %1904 = vst [vmem:[%s208 + $0x30] sm:$0xff] %v1872
      %1905 = vst [vmem:[%s208 + $0x38] sm:$0xff] %v1873
      %1906 = vst [vmem:[%s208 + $0x40] sm:$0xff] %v1874
      %1907 = vst [vmem:[%s208 + $0x48] sm:$0xff] %v1875
      %1908 = vst [vmem:[%s208 + $0x50] sm:$0xff] %v1876
      %1909 = vst [vmem:[%s208 + $0x58] sm:$0xff] %v1877
      %1910 = vst [vmem:[%s208 + $0x60] sm:$0xff] %v1878
      %1911 = vst [vmem:[%s208 + $0x68] sm:$0xff] %v1879
      %1912 = vst [vmem:[%s208 + $0x70] sm:$0xff] %v1880
      %1913 = vst [vmem:[%s208 + $0x78] sm:$0xff] %v1881
      %1914 = vst [vmem:[%s208 + $0x80] sm:$0xff] %v1882
      %1915 = vst [vmem:[%s208 + $0x88] sm:$0xff] %v1883
      %1916 = vst [vmem:[%s208 + $0x90] sm:$0xff] %v1884
      %1917 = vst [vmem:[%s208 + $0x98] sm:$0xff] %v1885
      %1918 = vst [vmem:[%s208 + $0xa0] sm:$0xff] %v1886
      %1919 = vst [vmem:[%s208 + $0xa8] sm:$0xff] %v1887
      %1920 = vst [vmem:[%s208 + $0xb0] sm:$0xff] %v1888
      %1921 = vst [vmem:[%s208 + $0xb8] sm:$0xff] %v1889
      %1922 = vst [vmem:[%s208 + $0xc0] sm:$0xff] %v1890
      %1923 = vst [vmem:[%s208 + $0xc8] sm:$0xff] %v1891
      %1924 = vst [vmem:[%s208 + $0xd0] sm:$0xff] %v1892
      %1925 = vst [vmem:[%s208 + $0xd8] sm:$0xff] %v1893
      %1926 = vst [vmem:[%s208 + $0xe0] sm:$0xff] %v1894
      %1927 = vst [vmem:[%s208 + $0xe8] sm:$0xff] %v1895
      %1928 = vst [vmem:[%s208 + $0xf0] sm:$0xff] %v1896
      %1929 = vst [vmem:[%s208 + $0xf8] sm:$0xff] %v1897
      %v1930 = vadd.f32 %v1866, %v1867
      %v1931 = vadd.f32 %v1930, %v1868
      %v1932 = vadd.f32 %v1931, %v1869
      %v1933 = vadd.f32 %v1932, %v1870
      %v1934 = vadd.f32 %v1933, %v1871
      %v1935 = vadd.f32 %v1934, %v1872
      %v1936 = vadd.f32 %v1935, %v1873
      %v1937 = vadd.f32 %v1936, %v1874
      %v1938 = vadd.f32 %v1937, %v1875
      %v1939 = vadd.f32 %v1938, %v1876
      %v1940 = vadd.f32 %v1939, %v1877
      %v1941 = vadd.f32 %v1940, %v1878
      %v1942 = vadd.f32 %v1941, %v1879
      %v1943 = vadd.f32 %v1942, %v1880
      %v1944 = vadd.f32 %v1943, %v1881
      %v1945 = vadd.f32 %v1944, %v1882
      %v1946 = vadd.f32 %v1945, %v1883
      %v1947 = vadd.f32 %v1946, %v1884
      %v1948 = vadd.f32 %v1947, %v1885
      %v1949 = vadd.f32 %v1948, %v1886
      %v1950 = vadd.f32 %v1949, %v1887
      %v1951 = vadd.f32 %v1950, %v1888
      %v1952 = vadd.f32 %v1951, %v1889
      %v1953 = vadd.f32 %v1952, %v1890
      %v1954 = vadd.f32 %v1953, %v1891
      %v1955 = vadd.f32 %v1954, %v1892
      %v1956 = vadd.f32 %v1955, %v1893
      %v1957 = vadd.f32 %v1956, %v1894
      %v1958 = vadd.f32 %v1957, %v1895
      %v1959 = vadd.f32 %v1958, %v1896
      %v1960 = vadd.f32 %v1959, %v1897
      %v1961 = vrot.slane %v1960, 4
      %v1962 = vadd.f32 %v1960, %v1961
      %v1963 = vrot.slane %v1962, 2
      %v1964 = vadd.f32 %v1962, %v1963
      %v1965 = vrot.slane %v1964, 1
      %v1966 = vadd.f32 %v1964, %v1965
      %1967 = vst [vmem:[%s211] sm:$0x1] %v1966
      %v1968 = vmul.f32 %v1866, %v1866
      %v1969 = vmul.f32 %v1867, %v1867
      %v1970 = vmul.f32 %v1868, %v1868
      %v1971 = vmul.f32 %v1869, %v1869
      %v1972 = vmul.f32 %v1870, %v1870
      %v1973 = vmul.f32 %v1871, %v1871
      %v1974 = vmul.f32 %v1872, %v1872
      %v1975 = vmul.f32 %v1873, %v1873
      %v1976 = vmul.f32 %v1874, %v1874
      %v1977 = vmul.f32 %v1875, %v1875
      %v1978 = vmul.f32 %v1876, %v1876
      %v1979 = vmul.f32 %v1877, %v1877
      %v1980 = vmul.f32 %v1878, %v1878
      %v1981 = vmul.f32 %v1879, %v1879
      %v1982 = vmul.f32 %v1880, %v1880
      %v1983 = vmul.f32 %v1881, %v1881
      %v1984 = vmul.f32 %v1882, %v1882
      %v1985 = vmul.f32 %v1883, %v1883
      %v1986 = vmul.f32 %v1884, %v1884
      %v1987 = vmul.f32 %v1885, %v1885
      %v1988 = vmul.f32 %v1886, %v1886
      %v1989 = vmul.f32 %v1887, %v1887
      %v1990 = vmul.f32 %v1888, %v1888
      %v1991 = vmul.f32 %v1889, %v1889
      %v1992 = vmul.f32 %v1890, %v1890
      %v1993 = vmul.f32 %v1891, %v1891
      %v1994 = vmul.f32 %v1892, %v1892
      %v1995 = vmul.f32 %v1893, %v1893
      %v1996 = vmul.f32 %v1894, %v1894
      %v1997 = vmul.f32 %v1895, %v1895
      %v1998 = vmul.f32 %v1896, %v1896
      %v1999 = vmul.f32 %v1897, %v1897
      %v2000 = vadd.f32 %v1968, %v1969
      %v2001 = vadd.f32 %v2000, %v1970
      %v2002 = vadd.f32 %v2001, %v1971
      %v2003 = vadd.f32 %v2002, %v1972
      %v2004 = vadd.f32 %v2003, %v1973
      %v2005 = vadd.f32 %v2004, %v1974
      %v2006 = vadd.f32 %v2005, %v1975
      %v2007 = vadd.f32 %v2006, %v1976
      %v2008 = vadd.f32 %v2007, %v1977
      %v2009 = vadd.f32 %v2008, %v1978
      %v2010 = vadd.f32 %v2009, %v1979
      %v2011 = vadd.f32 %v2010, %v1980
      %v2012 = vadd.f32 %v2011, %v1981
      %v2013 = vadd.f32 %v2012, %v1982
      %v2014 = vadd.f32 %v2013, %v1983
      %v2015 = vadd.f32 %v2014, %v1984
      %v2016 = vadd.f32 %v2015, %v1985
      %v2017 = vadd.f32 %v2016, %v1986
      %v2018 = vadd.f32 %v2017, %v1987
      %v2019 = vadd.f32 %v2018, %v1988
      %v2020 = vadd.f32 %v2019, %v1989
      %v2021 = vadd.f32 %v2020, %v1990
      %v2022 = vadd.f32 %v2021, %v1991
      %v2023 = vadd.f32 %v2022, %v1992
      %v2024 = vadd.f32 %v2023, %v1993
      %v2025 = vadd.f32 %v2024, %v1994
      %v2026 = vadd.f32 %v2025, %v1995
      %v2027 = vadd.f32 %v2026, %v1996
      %v2028 = vadd.f32 %v2027, %v1997
      %v2029 = vadd.f32 %v2028, %v1998
      %v2030 = vadd.f32 %v2029, %v1999
      %v2031 = vrot.slane %v2030, 4
      %v2032 = vadd.f32 %v2030, %v2031
      %v2033 = vrot.slane %v2032, 2
      %v2034 = vadd.f32 %v2032, %v2033
      %v2035 = vrot.slane %v2034, 1
      %v2036 = vadd.f32 %v2034, %v2035
      %2037 = vst [vmem:[%s214] sm:$0x1] %v2036
      %p2038 = scmp.lt.s32.totalorder %s16, 1
      %s2039 = scalar_select %p2038, %s16, 1
      %s2040 = smul.addr %s2039, 32
      %s2041 = smul.addr %s2040, 8
      %s2042 = scalar_lea.vmem %s2, %s2041
      %p2043 = scmp.lt.s32.totalorder %s16, 1
      %s2044 = scalar_select %p2043, %s16, 1
      %s2045 = scalar_lea.vmem %s3, %s2044
      %p2046 = scmp.lt.s32.totalorder %s16, 1
      %s2047 = scalar_select %p2046, %s16, 1
      %s2048 = scalar_lea.vmem %s4, %s2047
      // Predicated region
      $region29: #{basic_block_forward.3} parent=27 // pred_check
        %p2049 = pneg %p81
      $region30: #{basic_block_forward.3} parent=27 // pred_check_branch
        %2051 = sbr.rel (%p2049) target = $region32
      $region31: #{basic_block_forward.3} parent=27 // pred_region
        _
      $region32: #{basic_block_forward.3} parent=27 // pred_fallthru
        _
      // Predicated region
      $region33: #{basic_block_forward.3} parent=27 // pred_check
        %p2052 = pneg %p107
      $region34: #{basic_block_forward.3} parent=27 // pred_check_branch
        %2054 = sbr.rel (%p2052) target = $region36
      $region35: #{basic_block_forward.3} parent=27 // pred_region
        _
      $region36: #{basic_block_forward.3} parent=27 // pred_fallthru
        _
      // Predicated region
      $region37: #{basic_block_forward.3} parent=27 // pred_check
        %p2055 = pneg %p133
      $region38: #{basic_block_forward.3} parent=27 // pred_check_branch
        %2057 = sbr.rel (%p2055) target = $region40
      $region39: #{basic_block_forward.3} parent=27 // pred_region
        _
      $region40: #{basic_block_forward.3} parent=27 // pred_fallthru
        _
    $region28: #{basic_block_forward.3} parent=5 // pred_fallthru
      _
    %p2058 = scmp.le.s32.totalorder 2, %s11
    // Predicated region
    $region41: #{basic_block_forward.3} parent=5 // pred_check
      %p2059 = pneg %p2058
    $region42: #{basic_block_forward.3} parent=5 // pred_check_branch
      %2061 = sbr.rel (%p2059) target = $region44
    $region43: #{basic_block_forward.3} parent=5 // pred_region
      %s2062 = ssub.s32 %s11, 2
      // Predicated region
      $region45: #{basic_block_forward.3} parent=43 // pred_check
        %p2063 = pneg %p87
      $region46: #{basic_block_forward.3} parent=43 // pred_check_branch
        %2065 = sbr.rel (%p2063) target = $region48
      $region47: #{basic_block_forward.3} parent=43 // pred_region
        %p2066 = scmp.lt.s32.totalorder %s17, 1
        %s2067 = scalar_select %p2066, %s17, 1
        %s2068 = smul.addr %s2067, 32
        %s2069 = smul.addr %s2068, 8
        %s2070 = scalar_lea.vmem %s2, %s2069
      $region48: #{basic_block_forward.3} parent=43 // pred_fallthru
        _
      // Predicated region
      $region49: #{basic_block_forward.3} parent=43 // pred_check
        %p2071 = pneg %p113
      $region50: #{basic_block_forward.3} parent=43 // pred_check_branch
        %2073 = sbr.rel (%p2071) target = $region52
      $region51: #{basic_block_forward.3} parent=43 // pred_region
        %p2074 = scmp.lt.s32.totalorder %s17, 1
        %s2075 = scalar_select %p2074, %s17, 1
        %s2076 = scalar_lea.vmem %s3, %s2075
      $region52: #{basic_block_forward.3} parent=43 // pred_fallthru
        _
      // Predicated region
      $region53: #{basic_block_forward.3} parent=43 // pred_check
        %p2077 = pneg %p139
      $region54: #{basic_block_forward.3} parent=43 // pred_check_branch
        %2079 = sbr.rel (%p2077) target = $region56
      $region55: #{basic_block_forward.3} parent=43 // pred_region
        %p2080 = scmp.lt.s32.totalorder %s17, 1
        %s2081 = scalar_select %p2080, %s17, 1
        %s2082 = scalar_lea.vmem %s4, %s2081
      $region56: #{basic_block_forward.3} parent=43 // pred_fallthru
        _
    $region44: #{basic_block_forward.3} parent=5 // pred_fallthru
      _
  $region6: #{basic_block_forward.3} parent=0 // loop_footer
    %s15 = sadd.s32 1, %s11
  $region7: #{basic_block_forward.3} parent=0 // loop_footer_branch
    %10 = sbr.rel target = $region3
  $region8: #{basic_block_forward.3} parent=0 // loop_exit
    _

</llo_original>
